<compile_context>
chip_gen: v6e
topology: v6e:2x2x1
jax: 0.10.0
libtpu: 0.0.40
codegen_flags: <defaults>
</compile_context>

<pallas_src>
import functools
import math

import jax
import jax.numpy as jnp
from jax.experimental import pallas as pl
from jax.experimental.pallas import tpu as pltpu


def _round_up(x: int, m: int) -> int:
  return ((x + m - 1) // m) * m


# ----------------------------------------------------------------------------
# Fused encoder-stack + classifier kernel
# ----------------------------------------------------------------------------
def transformer_stack_kernel(
    x_ref,        # (Bt, S, D)   bf16 input embeddings (consumed at layer 0)
    kbias_ref,    # (Bt, 1, S)   f32  additive key-padding bias (0 / -1e30)
    wqkv_ref, bqkv_ref,     # (L, D, 3D) bf16 / (L, 1, 3D) f32
    wo_ref, bo_ref,         # (L, D, D)  bf16 / (L, 1, D)  f32
    g1_ref, be1_ref,        # (L, 1, D)  f32
    w1_ref, b1_ref,         # (L, D, F)  bf16 / (L, 1, F)  f32
    w2_ref, b2_ref,         # (L, F, D)  bf16 / (L, 1, D)  f32
    g2_ref, be2_ref,        # (L, 1, D)  f32
    cw1_ref, cb1_ref,       # (D, D)  bf16 / (1, D)  f32  classifier layer 1
    cw2_ref, cb2_ref,       # (D, Cp) bf16 / (1, Cp) f32  classifier layer 2
    logits_ref,             # (Bt, S, Cp) f32 output (lane-dense, Cp = pad128)
    act_ref,                # (Bt*S, D) f32 VMEM scratch, resident over layers
    *, nhead: int, eps: float = 1e-5):
  """One grid step = one encoder layer on one batch block (+ fused classifier
  epilogue on the last layer)."""
  layer = pl.program_id(1)
  nlayers = pl.num_programs(1)

  bt, S, D = x_ref.shape
  n = bt * S
  hd = D // nhead
  scale = 1.0 / math.sqrt(hd)
  neg = jnp.float32(-1e30)

  # Layer 0: load embeddings into the resident VMEM activation buffer.  The
  # activations never go back to HBM -- only the final logits do.
  @pl.when(layer == 0)
  def _():
    act_ref[...] = x_ref[...].reshape(n, D).astype(jnp.float32)

  x = act_ref[...]                              # (n, D) f32 residual stream
  xb = x.astype(jnp.bfloat16)

  # ---- multi-head self-attention -------------------------------------------
  # Fused QKV: one lane-dense (n, D) @ (D, 3D) MXU matmul + single bias row.
  qkv = jnp.dot(xb, wqkv_ref[layer], preferred_element_type=jnp.float32)
  qkv = qkv + bqkv_ref[layer]                   # (n, 3D)

  kb = kbias_ref[...]                           # (Bt, 1, S)
  row = jax.lax.broadcasted_iota(jnp.int32, (S, S), 0)
  col = jax.lax.broadcasted_iota(jnp.int32, (S, S), 1)
  causal = (col <= row)[None, :, :]             # (1, S, S)

  # Per-head scores/context (static loop; per-head slices are cheap static
  # lane slices -- no H-way broadcast, no per-head projection matmuls).
  ctx_heads = []
  for h in range(nhead):
    q3 = (qkv[:, h * hd:(h + 1) * hd] * scale).reshape(bt, S, hd)
    k3 = qkv[:, D + h * hd:D + (h + 1) * hd].reshape(bt, S, hd)
    v3 = qkv[:, 2 * D + h * hd:2 * D + (h + 1) * hd].reshape(bt, S, hd)
    s = jnp.einsum('bqd,bkd->bqk', q3.astype(jnp.bfloat16),
                   k3.astype(jnp.bfloat16),
                   preferred_element_type=jnp.float32)      # (Bt, S, S)
    s = s + kb                                              # key padding bias
    s = jnp.where(causal, s, neg)                           # causal mask
    m = jnp.max(s, axis=-1, keepdims=True)
    p = jnp.exp(s - m)
    p = p * pl.reciprocal(jnp.sum(p, axis=-1, keepdims=True), approx=True)
    ctx = jnp.einsum('bqk,bkd->bqd', p.astype(jnp.bfloat16),
                     v3.astype(jnp.bfloat16),
                     preferred_element_type=jnp.float32)    # (Bt, S, hd)
    ctx_heads.append(ctx.reshape(n, hd))

  # Head-concatenated context -> single (n, D) @ (D, D) output projection.
  ctx = jnp.concatenate(ctx_heads, axis=-1).astype(jnp.bfloat16)   # (n, D)
  attn = jnp.dot(ctx, wo_ref[layer], preferred_element_type=jnp.float32)
  attn = attn + bo_ref[layer]

  # ---- residual + LayerNorm 1 (post-LN) ------------------------------------
  h1 = x + attn
  mu1 = jnp.mean(h1, axis=-1, keepdims=True)
  var1 = jnp.mean(jnp.square(h1 - mu1), axis=-1, keepdims=True)
  h1 = (h1 - mu1) * jax.lax.rsqrt(var1 + eps) * g1_ref[layer] + be1_ref[layer]

  # ---- feed-forward (Linear -> ReLU -> Linear) ------------------------------
  f = jnp.dot(h1.astype(jnp.bfloat16), w1_ref[layer],
              preferred_element_type=jnp.float32) + b1_ref[layer]
  f = jnp.maximum(f, 0.0)
  f = jnp.dot(f.astype(jnp.bfloat16), w2_ref[layer],
              preferred_element_type=jnp.float32) + b2_ref[layer]

  # ---- residual + LayerNorm 2 ----------------------------------------------
  h2 = h1 + f
  mu2 = jnp.mean(h2, axis=-1, keepdims=True)
  var2 = jnp.mean(jnp.square(h2 - mu2), axis=-1, keepdims=True)
  h2 = (h2 - mu2) * jax.lax.rsqrt(var2 + eps) * g2_ref[layer] + be2_ref[layer]

  act_ref[...] = h2

  # ---- fused per-token classifier epilogue on the last layer ---------------
  @pl.when(layer == nlayers - 1)
  def _():
    cp = logits_ref.shape[-1]
    c = jnp.dot(h2.astype(jnp.bfloat16), cw1_ref[...],
                preferred_element_type=jnp.float32) + cb1_ref[...]
    c = jnp.maximum(c, 0.0)
    logit = jnp.dot(c.astype(jnp.bfloat16), cw2_ref[...],
                    preferred_element_type=jnp.float32) + cb2_ref[...]
    logits_ref[...] = logit.reshape(bt, S, cp)


# ----------------------------------------------------------------------------
# Wrapper (pallas_call plumbing)
# ----------------------------------------------------------------------------
def transformer_encode_and_classify(x, key_bias, layers, cls, *, nhead,
                                    num_classes, block_b=None):
  """x: (B, S, D) bf16; key_bias: (B, 1, S) f32; layers: dict of (L, ...)
  stacked weights; cls: classifier weights. Returns (B, S, num_classes) f32."""
  B, S, D = x.shape
  L = layers['wqkv'].shape[0]
  Cp = _round_up(num_classes, 128)                   # lane-dense logits slab

  cw1, cb1, cw2, cb2 = cls['w1'], cls['b1'], cls['w2'], cls['b2']
  if Cp != num_classes:
    cw2 = jnp.pad(cw2, ((0, 0), (0, Cp - num_classes)))
    cb2 = jnp.pad(cb2, ((0, 0), (0, Cp - num_classes)))

  if block_b is None:
    # ~512 rows per block keeps the MXU fed while bounding the (rows, d_ff)
    # f32 FFN intermediate for v7x's 64 MiB VMEM; >=2 batch blocks when B > 1
    # so megacore sharding (v7x second TensorCore) has work to split.
    block_b = max(1, min(B, 512 // max(S, 1)))
    if B > 1:
      block_b = min(block_b, -(-B // 2))
  Bp = _round_up(B, block_b)
  if Bp != B:
    x = jnp.pad(x, ((0, Bp - B), (0, 0), (0, 0)))
    key_bias = jnp.pad(key_bias, ((0, Bp - B), (0, 0), (0, 0)))

  layer_names = ('wqkv', 'bqkv', 'wo', 'bo', 'g1', 'be1',
                 'w1', 'b1', 'w2', 'b2', 'g2', 'be2')
  lw = [layers[k] for k in layer_names]
  cw = [cw1, cb1, cw2, cb2]

  def resident(w):
    # Whole-array block + constant index map => DMA'd once, VMEM-resident for
    # the entire grid; the kernel indexes the stacked layer axis itself.
    return pl.BlockSpec(w.shape, lambda b, l, _nd=w.ndim: (0,) * _nd)

  in_specs = ([pl.BlockSpec((block_b, S, D), lambda b, l: (b, 0, 0)),
               pl.BlockSpec((block_b, 1, S), lambda b, l: (b, 0, 0))]
              + [resident(w) for w in lw] + [resident(w) for w in cw])

  out = pl.pallas_call(
      functools.partial(transformer_stack_kernel, nhead=nhead),
      out_shape=jax.ShapeDtypeStruct((Bp, S, Cp), jnp.float32),
      grid_spec=pltpu.PrefetchScalarGridSpec(
          num_scalar_prefetch=0,
          grid=(Bp // block_b, L),                  # (batch blocks, layers)
          in_specs=in_specs,
          out_specs=pl.BlockSpec((block_b, S, Cp), lambda b, l: (b, 0, 0)),
          scratch_shapes=[pltpu.VMEM((block_b * S, D), jnp.float32)]),
      compiler_params=pltpu.CompilerParams(
          # Batch axis "parallel" (megacore sharding; on v7x this can be
          # swapped for pltpu.CORE_PARALLEL); layer axis carries the resident
          # activations/accumulation -> "arbitrary".
          dimension_semantics=("parallel", "arbitrary"),
          vmem_limit_bytes=48 * 1024 * 1024),
  )(x, key_bias, *lw, *cw)
  return out[:B, :, :num_classes]


# ----------------------------------------------------------------------------
# Parameter init (deterministic, synthetic).  Weight matrices are bf16
# (halves DMA bytes, MXU-native); biases / LayerNorm params stay f32.
# ----------------------------------------------------------------------------
def init_params(key, *, num_activities, hidden_size, max_timestamps,
                nhead, nlayers, num_classes, d_ff=2048):
  D = 2 * hidden_size

  def nrm(k, shape, scale=0.05, dtype=jnp.float32):
    return (scale * jax.random.normal(k, shape)).astype(dtype)

  keys = jax.random.split(key, 3 + nlayers)
  params = {
      'tok_emb': nrm(keys[0], (num_activities, hidden_size), 0.1),
      'pos_emb': nrm(keys[1], (max_timestamps, hidden_size), 0.1),
  }
  per_layer = []
  for i in range(nlayers):
    lk = jax.random.split(keys[2 + i], 8)
    per_layer.append({
        # Fused in-proj (equivalent to PyTorch in_proj_weight.T, columns
        # ordered [q | k | v], heads consecutive hd-wide column groups).
        'wqkv': nrm(lk[0], (D, 3 * D), dtype=jnp.bfloat16),
        'bqkv': nrm(lk[1], (1, 3 * D), 0.01),
        'wo':   nrm(lk[2], (D, D), dtype=jnp.bfloat16),
        'bo':   nrm(lk[3], (1, D), 0.01),
        'g1':   jnp.ones((1, D), jnp.float32),
        'be1':  jnp.zeros((1, D), jnp.float32),
        'w1':   nrm(lk[4], (D, d_ff), dtype=jnp.bfloat16),
        'b1':   nrm(lk[5], (1, d_ff), 0.01),
        'w2':   nrm(lk[6], (d_ff, D), dtype=jnp.bfloat16),
        'b2':   nrm(lk[7], (1, D), 0.01),
        'g2':   jnp.ones((1, D), jnp.float32),
        'be2':  jnp.zeros((1, D), jnp.float32),
    })
  # Stack per-layer weights along a leading nlayers axis -> one pallas_call,
  # VMEM-resident for the whole grid.
  params['layers'] = {k: jnp.stack([lp[k] for lp in per_layer], axis=0)
                      for k in per_layer[0]}
  ck = jax.random.split(keys[2 + nlayers], 4)
  params['cls'] = {
      'w1': nrm(ck[0], (D, D), dtype=jnp.bfloat16),
      'b1': nrm(ck[1], (1, D), 0.01),
      'w2': nrm(ck[2], (D, num_classes), dtype=jnp.bfloat16),
      'b2': nrm(ck[3], (1, num_classes), 0.01),
  }
  return params


# ----------------------------------------------------------------------------
# Full forward pass (embedding gathers are glue in plain JAX; hot path Pallas)
# ----------------------------------------------------------------------------
def forward(params, activity_ids, padding_mask, *, nhead):
  """activity_ids, padding_mask: (S, B); returns logits (S, B, num_classes)."""
  S, B = activity_ids.shape
  H = params['tok_emb'].shape[1]

  tok = params['tok_emb'][activity_ids]                       # (S, B, H)
  pos = params['pos_emb'][jnp.arange(S)][:, None, :]          # (S, 1, H)
  pos = jnp.broadcast_to(pos, (S, B, H))
  embs = jnp.concatenate([tok, pos], axis=-1)                 # (S, B, 2H)
  # bf16 into the kernel (halves activation HBM traffic); f32 math inside.
  x = jnp.transpose(embs, (1, 0, 2)).astype(jnp.bfloat16)     # (B, S, D)

  # Key-padding additive bias (B, 1, S): 0 where real token, -1e30 where pad
  # (finite sentinel so fully masked rows give uniform weights, never NaN --
  # differs from PyTorch's -inf/NaN behavior only on fully padded rows).
  key_bias = jnp.where(padding_mask.T, 0.0, -1e30).astype(jnp.float32)
  key_bias = key_bias[:, None, :]                             # (B, 1, S)

  C = params['cls']['w2'].shape[1]
  logits = transformer_encode_and_classify(
      x, key_bias, params['layers'], params['cls'],
      nhead=nhead, num_classes=C)                             # (B, S, C)
  return jnp.transpose(logits, (1, 0, 2))                     # (S, B, C)


# ----------------------------------------------------------------------------
if __name__ == "__main__":
  num_activities = 10
  hidden_size = 32          # d_model = 2 * hidden_size = 64
  max_timestamps = 16
  nhead = 4
  nlayers = 2
  num_classes = 8
  S, B = 8, 2

  key = jax.random.PRNGKey(0)
  pkey, ikey = jax.random.split(key)
  params = init_params(pkey,
                       num_activities=num_activities,
                       hidden_size=hidden_size,
                       max_timestamps=max_timestamps,
                       nhead=nhead,
                       nlayers=nlayers,
                       num_classes=num_classes)

  activity_ids = jax.random.randint(ikey, (S, B), 0, num_activities,
                                    dtype=jnp.int32)
  # padding_mask: True = real token (PyTorch code negates it for the encoder).
  lengths = jnp.array([S, S - 2], dtype=jnp.int32)            # batch 1 padded
  padding_mask = jnp.arange(S)[:, None] < lengths[None, :]    # (S, B) bool

  fwd = jax.jit(functools.partial(forward, nhead=nhead))
  logits = fwd(params, activity_ids, padding_mask)
  jax.block_until_ready(logits)
  assert logits.shape == (S, B, num_classes)
  assert bool(jnp.all(jnp.isfinite(logits)))
  print("KERNEL_OK")
</pallas_src>

<mosaic_0001>
module attributes {stable_mosaic.version = 11 : i64} {
  func.func @transformer_stack_kernel(%arg0: i32, %arg1: i32, %arg2: memref<1x8x64xbf16, #tpu.memory_space<vmem>>, %arg3: memref<1x1x8xf32, #tpu.memory_space<vmem>>, %arg4: memref<2x64x192xbf16, #tpu.memory_space<vmem>>, %arg5: memref<2x1x192xf32, #tpu.memory_space<vmem>>, %arg6: memref<2x64x64xbf16, #tpu.memory_space<vmem>>, %arg7: memref<2x1x64xf32, #tpu.memory_space<vmem>>, %arg8: memref<2x1x64xf32, #tpu.memory_space<vmem>>, %arg9: memref<2x1x64xf32, #tpu.memory_space<vmem>>, %arg10: memref<2x64x2048xbf16, #tpu.memory_space<vmem>>, %arg11: memref<2x1x2048xf32, #tpu.memory_space<vmem>>, %arg12: memref<2x2048x64xbf16, #tpu.memory_space<vmem>>, %arg13: memref<2x1x64xf32, #tpu.memory_space<vmem>>, %arg14: memref<2x1x64xf32, #tpu.memory_space<vmem>>, %arg15: memref<2x1x64xf32, #tpu.memory_space<vmem>>, %arg16: memref<64x64xbf16, #tpu.memory_space<vmem>>, %arg17: memref<1x64xf32, #tpu.memory_space<vmem>>, %arg18: memref<64x128xbf16, #tpu.memory_space<vmem>>, %arg19: memref<1x128xf32, #tpu.memory_space<vmem>>, %arg20: memref<1x8x128xf32, #tpu.memory_space<vmem>>, %arg21: memref<8x64xf32, #tpu.memory_space<vmem>>) attributes {dimension_semantics = [#tpu.dimension_semantics<parallel>, #tpu.dimension_semantics<arbitrary>], iteration_bounds = array<i64: 2, 2>, scalar_prefetch = 0 : i64, scratch_operands = 1 : i64, tpu.core_type = #tpu.core_type<tc>, window_params = [{transform_indices = @transform_0, window_bounds = array<i64: 1, 8, 64>}, {transform_indices = @transform_1, window_bounds = array<i64: 1, 1, 8>}, {pipeline_mode = #tpu.pipeline_mode<synchronous>, transform_indices = @transform_2, window_bounds = array<i64: 2, 64, 192>}, {pipeline_mode = #tpu.pipeline_mode<synchronous>, transform_indices = @transform_3, window_bounds = array<i64: 2, 1, 192>}, {pipeline_mode = #tpu.pipeline_mode<synchronous>, transform_indices = @transform_4, window_bounds = array<i64: 2, 64, 64>}, {pipeline_mode = #tpu.pipeline_mode<synchronous>, transform_indices = @transform_5, window_bounds = array<i64: 2, 1, 64>}, {pipeline_mode = #tpu.pipeline_mode<synchronous>, transform_indices = @transform_6, window_bounds = array<i64: 2, 1, 64>}, {pipeline_mode = #tpu.pipeline_mode<synchronous>, transform_indices = @transform_7, window_bounds = array<i64: 2, 1, 64>}, {pipeline_mode = #tpu.pipeline_mode<synchronous>, transform_indices = @transform_8, window_bounds = array<i64: 2, 64, 2048>}, {pipeline_mode = #tpu.pipeline_mode<synchronous>, transform_indices = @transform_9, window_bounds = array<i64: 2, 1, 2048>}, {pipeline_mode = #tpu.pipeline_mode<synchronous>, transform_indices = @transform_10, window_bounds = array<i64: 2, 2048, 64>}, {pipeline_mode = #tpu.pipeline_mode<synchronous>, transform_indices = @transform_11, window_bounds = array<i64: 2, 1, 64>}, {pipeline_mode = #tpu.pipeline_mode<synchronous>, transform_indices = @transform_12, window_bounds = array<i64: 2, 1, 64>}, {pipeline_mode = #tpu.pipeline_mode<synchronous>, transform_indices = @transform_13, window_bounds = array<i64: 2, 1, 64>}, {pipeline_mode = #tpu.pipeline_mode<synchronous>, transform_indices = @transform_14, window_bounds = array<i64: 64, 64>}, {pipeline_mode = #tpu.pipeline_mode<synchronous>, transform_indices = @transform_15, window_bounds = array<i64: 1, 64>}, {pipeline_mode = #tpu.pipeline_mode<synchronous>, transform_indices = @transform_16, window_bounds = array<i64: 64, 128>}, {pipeline_mode = #tpu.pipeline_mode<synchronous>, transform_indices = @transform_17, window_bounds = array<i64: 1, 128>}, {transform_indices = @transform_18, window_bounds = array<i64: 1, 8, 128>}]} {
    %c0_i32 = arith.constant 0 : i32
    %0 = arith.cmpi eq, %arg1, %c0_i32 : i32
    %1 = arith.extui %0 : i1 to i32
    %c0_i32_0 = arith.constant 0 : i32
    %2 = arith.cmpi ne, %1, %c0_i32_0 : i32
    scf.if %2 {
      %c0_70 = arith.constant 0 : index
      %c0_71 = arith.constant 0 : index
      %c0_72 = arith.constant 0 : index
      %230 = vector.load %arg2[%c0_70, %c0_71, %c0_72] : memref<1x8x64xbf16, #tpu.memory_space<vmem>>, vector<1x8x64xbf16>
      %231 = vector.shape_cast %230 : vector<1x8x64xbf16> to vector<8x64xbf16>
      %232 = arith.extf %231 : vector<8x64xbf16> to vector<8x64xf32>
      %c0_73 = arith.constant 0 : index
      %c0_74 = arith.constant 0 : index
      %233 = vector.load %arg21[%c0_73, %c0_74] : memref<8x64xf32, #tpu.memory_space<vmem>>, vector<8x64xf32>
      tpu.vector_store %arg21[%c0_73, %c0_74], %232 {strides = array<i32>} : memref<8x64xf32, #tpu.memory_space<vmem>>, vector<8x64xf32>,
    } else {
    }
    %c0 = arith.constant 0 : index
    %c0_1 = arith.constant 0 : index
    %3 = vector.load %arg21[%c0, %c0_1] : memref<8x64xf32, #tpu.memory_space<vmem>>, vector<8x64xf32>
    %4 = arith.truncf %3 : vector<8x64xf32> to vector<8x64xbf16>
    %5 = arith.index_cast %arg1 : i32 to index
    %c0_2 = arith.constant 0 : index
    %c0_3 = arith.constant 0 : index
    %6 = vector.load %arg4[%5, %c0_2, %c0_3] : memref<2x64x192xbf16, #tpu.memory_space<vmem>>, vector<1x64x192xbf16>
    %7 = vector.shape_cast %6 : vector<1x64x192xbf16> to vector<64x192xbf16>
    %cst = arith.constant dense<0.000000e+00> : vector<8x192xf32>
    %8 = tpu.matmul %4, %7, %cst {dimension_numbers = #tpu.dot_dimension_numbers<[1], [0], [0], [1], [0, 0, 1, 1], [], []>} : vector<8x64xbf16>, vector<64x192xbf16>, vector<8x192xf32> -> vector<8x192xf32>
    %9 = arith.index_cast %arg1 : i32 to index
    %c0_4 = arith.constant 0 : index
    %c0_5 = arith.constant 0 : index
    %10 = vector.load %arg5[%9, %c0_4, %c0_5] : memref<2x1x192xf32, #tpu.memory_space<vmem>>, vector<1x1x192xf32>
    %11 = vector.shape_cast %10 : vector<1x1x192xf32> to vector<1x192xf32>
    %12 = vector.broadcast %11 : vector<1x192xf32> to vector<8x192xf32>
    %13 = arith.addf %8, %12 : vector<8x192xf32>
    %c0_6 = arith.constant 0 : index
    %c0_7 = arith.constant 0 : index
    %c0_8 = arith.constant 0 : index
    %14 = vector.load %arg3[%c0_6, %c0_7, %c0_8] : memref<1x1x8xf32, #tpu.memory_space<vmem>>, vector<1x1x8xf32>
    %15 = tpu.iota {dimensions = array<i32: 0>} : vector<8x8xi32>
    %16 = tpu.iota {dimensions = array<i32: 1>} : vector<8x8xi32>
    %17 = arith.cmpi sle, %16, %15 : vector<8x8xi32>
    %18 = vector.shape_cast %17 : vector<8x8xi1> to vector<1x8x8xi1>
    %19 = vector.extract_strided_slice %13 {offsets = [0, 0], sizes = [8, 16], strides = [1, 1]} : vector<8x192xf32> to vector<8x16xf32>
    %cst_9 = arith.constant 2.500000e-01 : f32
    %20 = vector.broadcast %cst_9 : f32 to vector<8x16xf32>
    %21 = arith.mulf %19, %20 : vector<8x16xf32>
    %22 = vector.shape_cast %21 : vector<8x16xf32> to vector<1x8x16xf32>
    %23 = vector.extract_strided_slice %13 {offsets = [0, 64], sizes = [8, 16], strides = [1, 1]} : vector<8x192xf32> to vector<8x16xf32>
    %24 = vector.shape_cast %23 : vector<8x16xf32> to vector<1x8x16xf32>
    %25 = vector.extract_strided_slice %13 {offsets = [0, 128], sizes = [8, 16], strides = [1, 1]} : vector<8x192xf32> to vector<8x16xf32>
    %26 = vector.shape_cast %25 : vector<8x16xf32> to vector<1x8x16xf32>
    %27 = arith.truncf %22 : vector<1x8x16xf32> to vector<1x8x16xbf16>
    %28 = arith.truncf %24 : vector<1x8x16xf32> to vector<1x8x16xbf16>
    "tpu.trace_start"() <{level = 10 : i32, message = "bqd,bkd->bqk"}> : () -> ()
    %cst_10 = arith.constant dense<0.000000e+00> : vector<1x8x8xf32>
    %29 = tpu.matmul %27, %28, %cst_10 {dimension_numbers = #tpu.dot_dimension_numbers<[2], [2], [1], [1], [0, 0, 0, 1, 1, 1], [0], [0]>} : vector<1x8x16xbf16>, vector<1x8x16xbf16>, vector<1x8x8xf32> -> vector<1x8x8xf32>
    "tpu.trace_stop"() : () -> ()
    %30 = vector.broadcast %14 : vector<1x1x8xf32> to vector<1x8x8xf32>
    %31 = arith.addf %29, %30 : vector<1x8x8xf32>
    %cst_11 = arith.constant -1.000000e+30 : f32
    %32 = vector.broadcast %cst_11 : f32 to vector<1x8x8xf32>
    %33 = arith.select %18, %31, %32 : vector<1x8x8xi1>, vector<1x8x8xf32>
    %cst_12 = arith.constant dense<0xFF800000> : vector<1x8xf32>
    %34 = vector.multi_reduction <maximumf>, %33, %cst_12 [2] : vector<1x8x8xf32> to vector<1x8xf32>
    %35 = vector.shape_cast %34 : vector<1x8xf32> to vector<1x8x1xf32>
    %36 = vector.broadcast %35 : vector<1x8x1xf32> to vector<1x8x8xf32>
    %37 = arith.subf %33, %36 : vector<1x8x8xf32>
    %38 = math.exp %37 : vector<1x8x8xf32>
    %cst_13 = arith.constant dense<0.000000e+00> : vector<1x8xf32>
    %39 = vector.multi_reduction <add>, %38, %cst_13 [2] : vector<1x8x8xf32> to vector<1x8xf32>
    %40 = vector.shape_cast %39 : vector<1x8xf32> to vector<1x8x1xf32>
    %41 = tpu.reciprocal %40 {approx = true} : vector<1x8x1xf32> -> vector<1x8x1xf32>
    %42 = vector.broadcast %41 : vector<1x8x1xf32> to vector<1x8x8xf32>
    %43 = arith.mulf %38, %42 : vector<1x8x8xf32>
    %44 = arith.truncf %43 : vector<1x8x8xf32> to vector<1x8x8xbf16>
    %45 = arith.truncf %26 : vector<1x8x16xf32> to vector<1x8x16xbf16>
    "tpu.trace_start"() <{level = 10 : i32, message = "bqk,bkd->bqd"}> : () -> ()
    %cst_14 = arith.constant dense<0.000000e+00> : vector<1x8x16xf32>
    %46 = tpu.matmul %44, %45, %cst_14 {dimension_numbers = #tpu.dot_dimension_numbers<[2], [1], [1], [2], [0, 0, 0, 1, 1, 2], [0], [0]>} : vector<1x8x8xbf16>, vector<1x8x16xbf16>, vector<1x8x16xf32> -> vector<1x8x16xf32>
    "tpu.trace_stop"() : () -> ()
    %47 = vector.shape_cast %46 : vector<1x8x16xf32> to vector<8x16xf32>
    %48 = vector.extract_strided_slice %13 {offsets = [0, 16], sizes = [8, 16], strides = [1, 1]} : vector<8x192xf32> to vector<8x16xf32>
    %cst_15 = arith.constant 2.500000e-01 : f32
    %49 = vector.broadcast %cst_15 : f32 to vector<8x16xf32>
    %50 = arith.mulf %48, %49 : vector<8x16xf32>
    %51 = vector.shape_cast %50 : vector<8x16xf32> to vector<1x8x16xf32>
    %52 = vector.extract_strided_slice %13 {offsets = [0, 80], sizes = [8, 16], strides = [1, 1]} : vector<8x192xf32> to vector<8x16xf32>
    %53 = vector.shape_cast %52 : vector<8x16xf32> to vector<1x8x16xf32>
    %54 = vector.extract_strided_slice %13 {offsets = [0, 144], sizes = [8, 16], strides = [1, 1]} : vector<8x192xf32> to vector<8x16xf32>
    %55 = vector.shape_cast %54 : vector<8x16xf32> to vector<1x8x16xf32>
    %56 = arith.truncf %51 : vector<1x8x16xf32> to vector<1x8x16xbf16>
    %57 = arith.truncf %53 : vector<1x8x16xf32> to vector<1x8x16xbf16>
    "tpu.trace_start"() <{level = 10 : i32, message = "bqd,bkd->bqk"}> : () -> ()
    %cst_16 = arith.constant dense<0.000000e+00> : vector<1x8x8xf32>
    %58 = tpu.matmul %56, %57, %cst_16 {dimension_numbers = #tpu.dot_dimension_numbers<[2], [2], [1], [1], [0, 0, 0, 1, 1, 1], [0], [0]>} : vector<1x8x16xbf16>, vector<1x8x16xbf16>, vector<1x8x8xf32> -> vector<1x8x8xf32>
    "tpu.trace_stop"() : () -> ()
    %59 = vector.broadcast %14 : vector<1x1x8xf32> to vector<1x8x8xf32>
    %60 = arith.addf %58, %59 : vector<1x8x8xf32>
    %cst_17 = arith.constant -1.000000e+30 : f32
    %61 = vector.broadcast %cst_17 : f32 to vector<1x8x8xf32>
    %62 = arith.select %18, %60, %61 : vector<1x8x8xi1>, vector<1x8x8xf32>
    %cst_18 = arith.constant dense<0xFF800000> : vector<1x8xf32>
    %63 = vector.multi_reduction <maximumf>, %62, %cst_18 [2] : vector<1x8x8xf32> to vector<1x8xf32>
    %64 = vector.shape_cast %63 : vector<1x8xf32> to vector<1x8x1xf32>
    %65 = vector.broadcast %64 : vector<1x8x1xf32> to vector<1x8x8xf32>
    %66 = arith.subf %62, %65 : vector<1x8x8xf32>
    %67 = math.exp %66 : vector<1x8x8xf32>
    %cst_19 = arith.constant dense<0.000000e+00> : vector<1x8xf32>
    %68 = vector.multi_reduction <add>, %67, %cst_19 [2] : vector<1x8x8xf32> to vector<1x8xf32>
    %69 = vector.shape_cast %68 : vector<1x8xf32> to vector<1x8x1xf32>
    %70 = tpu.reciprocal %69 {approx = true} : vector<1x8x1xf32> -> vector<1x8x1xf32>
    %71 = vector.broadcast %70 : vector<1x8x1xf32> to vector<1x8x8xf32>
    %72 = arith.mulf %67, %71 : vector<1x8x8xf32>
    %73 = arith.truncf %72 : vector<1x8x8xf32> to vector<1x8x8xbf16>
    %74 = arith.truncf %55 : vector<1x8x16xf32> to vector<1x8x16xbf16>
    "tpu.trace_start"() <{level = 10 : i32, message = "bqk,bkd->bqd"}> : () -> ()
    %cst_20 = arith.constant dense<0.000000e+00> : vector<1x8x16xf32>
    %75 = tpu.matmul %73, %74, %cst_20 {dimension_numbers = #tpu.dot_dimension_numbers<[2], [1], [1], [2], [0, 0, 0, 1, 1, 2], [0], [0]>} : vector<1x8x8xbf16>, vector<1x8x16xbf16>, vector<1x8x16xf32> -> vector<1x8x16xf32>
    "tpu.trace_stop"() : () -> ()
    %76 = vector.shape_cast %75 : vector<1x8x16xf32> to vector<8x16xf32>
    %77 = vector.extract_strided_slice %13 {offsets = [0, 32], sizes = [8, 16], strides = [1, 1]} : vector<8x192xf32> to vector<8x16xf32>
    %cst_21 = arith.constant 2.500000e-01 : f32
    %78 = vector.broadcast %cst_21 : f32 to vector<8x16xf32>
    %79 = arith.mulf %77, %78 : vector<8x16xf32>
    %80 = vector.shape_cast %79 : vector<8x16xf32> to vector<1x8x16xf32>
    %81 = vector.extract_strided_slice %13 {offsets = [0, 96], sizes = [8, 16], strides = [1, 1]} : vector<8x192xf32> to vector<8x16xf32>
    %82 = vector.shape_cast %81 : vector<8x16xf32> to vector<1x8x16xf32>
    %83 = vector.extract_strided_slice %13 {offsets = [0, 160], sizes = [8, 16], strides = [1, 1]} : vector<8x192xf32> to vector<8x16xf32>
    %84 = vector.shape_cast %83 : vector<8x16xf32> to vector<1x8x16xf32>
    %85 = arith.truncf %80 : vector<1x8x16xf32> to vector<1x8x16xbf16>
    %86 = arith.truncf %82 : vector<1x8x16xf32> to vector<1x8x16xbf16>
    "tpu.trace_start"() <{level = 10 : i32, message = "bqd,bkd->bqk"}> : () -> ()
    %cst_22 = arith.constant dense<0.000000e+00> : vector<1x8x8xf32>
    %87 = tpu.matmul %85, %86, %cst_22 {dimension_numbers = #tpu.dot_dimension_numbers<[2], [2], [1], [1], [0, 0, 0, 1, 1, 1], [0], [0]>} : vector<1x8x16xbf16>, vector<1x8x16xbf16>, vector<1x8x8xf32> -> vector<1x8x8xf32>
    "tpu.trace_stop"() : () -> ()
    %88 = vector.broadcast %14 : vector<1x1x8xf32> to vector<1x8x8xf32>
    %89 = arith.addf %87, %88 : vector<1x8x8xf32>
    %cst_23 = arith.constant -1.000000e+30 : f32
    %90 = vector.broadcast %cst_23 : f32 to vector<1x8x8xf32>
    %91 = arith.select %18, %89, %90 : vector<1x8x8xi1>, vector<1x8x8xf32>
    %cst_24 = arith.constant dense<0xFF800000> : vector<1x8xf32>
    %92 = vector.multi_reduction <maximumf>, %91, %cst_24 [2] : vector<1x8x8xf32> to vector<1x8xf32>
    %93 = vector.shape_cast %92 : vector<1x8xf32> to vector<1x8x1xf32>
    %94 = vector.broadcast %93 : vector<1x8x1xf32> to vector<1x8x8xf32>
    %95 = arith.subf %91, %94 : vector<1x8x8xf32>
    %96 = math.exp %95 : vector<1x8x8xf32>
    %cst_25 = arith.constant dense<0.000000e+00> : vector<1x8xf32>
    %97 = vector.multi_reduction <add>, %96, %cst_25 [2] : vector<1x8x8xf32> to vector<1x8xf32>
    %98 = vector.shape_cast %97 : vector<1x8xf32> to vector<1x8x1xf32>
    %99 = tpu.reciprocal %98 {approx = true} : vector<1x8x1xf32> -> vector<1x8x1xf32>
    %100 = vector.broadcast %99 : vector<1x8x1xf32> to vector<1x8x8xf32>
    %101 = arith.mulf %96, %100 : vector<1x8x8xf32>
    %102 = arith.truncf %101 : vector<1x8x8xf32> to vector<1x8x8xbf16>
    %103 = arith.truncf %84 : vector<1x8x16xf32> to vector<1x8x16xbf16>
    "tpu.trace_start"() <{level = 10 : i32, message = "bqk,bkd->bqd"}> : () -> ()
    %cst_26 = arith.constant dense<0.000000e+00> : vector<1x8x16xf32>
    %104 = tpu.matmul %102, %103, %cst_26 {dimension_numbers = #tpu.dot_dimension_numbers<[2], [1], [1], [2], [0, 0, 0, 1, 1, 2], [0], [0]>} : vector<1x8x8xbf16>, vector<1x8x16xbf16>, vector<1x8x16xf32> -> vector<1x8x16xf32>
    "tpu.trace_stop"() : () -> ()
    %105 = vector.shape_cast %104 : vector<1x8x16xf32> to vector<8x16xf32>
    %106 = vector.extract_strided_slice %13 {offsets = [0, 48], sizes = [8, 16], strides = [1, 1]} : vector<8x192xf32> to vector<8x16xf32>
    %cst_27 = arith.constant 2.500000e-01 : f32
    %107 = vector.broadcast %cst_27 : f32 to vector<8x16xf32>
    %108 = arith.mulf %106, %107 : vector<8x16xf32>
    %109 = vector.shape_cast %108 : vector<8x16xf32> to vector<1x8x16xf32>
    %110 = vector.extract_strided_slice %13 {offsets = [0, 112], sizes = [8, 16], strides = [1, 1]} : vector<8x192xf32> to vector<8x16xf32>
    %111 = vector.shape_cast %110 : vector<8x16xf32> to vector<1x8x16xf32>
    %112 = vector.extract_strided_slice %13 {offsets = [0, 176], sizes = [8, 16], strides = [1, 1]} : vector<8x192xf32> to vector<8x16xf32>
    %113 = vector.shape_cast %112 : vector<8x16xf32> to vector<1x8x16xf32>
    %114 = arith.truncf %109 : vector<1x8x16xf32> to vector<1x8x16xbf16>
    %115 = arith.truncf %111 : vector<1x8x16xf32> to vector<1x8x16xbf16>
    "tpu.trace_start"() <{level = 10 : i32, message = "bqd,bkd->bqk"}> : () -> ()
    %cst_28 = arith.constant dense<0.000000e+00> : vector<1x8x8xf32>
    %116 = tpu.matmul %114, %115, %cst_28 {dimension_numbers = #tpu.dot_dimension_numbers<[2], [2], [1], [1], [0, 0, 0, 1, 1, 1], [0], [0]>} : vector<1x8x16xbf16>, vector<1x8x16xbf16>, vector<1x8x8xf32> -> vector<1x8x8xf32>
    "tpu.trace_stop"() : () -> ()
    %117 = vector.broadcast %14 : vector<1x1x8xf32> to vector<1x8x8xf32>
    %118 = arith.addf %116, %117 : vector<1x8x8xf32>
    %cst_29 = arith.constant -1.000000e+30 : f32
    %119 = vector.broadcast %cst_29 : f32 to vector<1x8x8xf32>
    %120 = arith.select %18, %118, %119 : vector<1x8x8xi1>, vector<1x8x8xf32>
    %cst_30 = arith.constant dense<0xFF800000> : vector<1x8xf32>
    %121 = vector.multi_reduction <maximumf>, %120, %cst_30 [2] : vector<1x8x8xf32> to vector<1x8xf32>
    %122 = vector.shape_cast %121 : vector<1x8xf32> to vector<1x8x1xf32>
    %123 = vector.broadcast %122 : vector<1x8x1xf32> to vector<1x8x8xf32>
    %124 = arith.subf %120, %123 : vector<1x8x8xf32>
    %125 = math.exp %124 : vector<1x8x8xf32>
    %cst_31 = arith.constant dense<0.000000e+00> : vector<1x8xf32>
    %126 = vector.multi_reduction <add>, %125, %cst_31 [2] : vector<1x8x8xf32> to vector<1x8xf32>
    %127 = vector.shape_cast %126 : vector<1x8xf32> to vector<1x8x1xf32>
    %128 = tpu.reciprocal %127 {approx = true} : vector<1x8x1xf32> -> vector<1x8x1xf32>
    %129 = vector.broadcast %128 : vector<1x8x1xf32> to vector<1x8x8xf32>
    %130 = arith.mulf %125, %129 : vector<1x8x8xf32>
    %131 = arith.truncf %130 : vector<1x8x8xf32> to vector<1x8x8xbf16>
    %132 = arith.truncf %113 : vector<1x8x16xf32> to vector<1x8x16xbf16>
    "tpu.trace_start"() <{level = 10 : i32, message = "bqk,bkd->bqd"}> : () -> ()
    %cst_32 = arith.constant dense<0.000000e+00> : vector<1x8x16xf32>
    %133 = tpu.matmul %131, %132, %cst_32 {dimension_numbers = #tpu.dot_dimension_numbers<[2], [1], [1], [2], [0, 0, 0, 1, 1, 2], [0], [0]>} : vector<1x8x8xbf16>, vector<1x8x16xbf16>, vector<1x8x16xf32> -> vector<1x8x16xf32>
    "tpu.trace_stop"() : () -> ()
    %134 = vector.shape_cast %133 : vector<1x8x16xf32> to vector<8x16xf32>
    %135 = tpu.concatenate %47, %76, %105, %134 in 1 : vector<8x16xf32>, vector<8x16xf32>, vector<8x16xf32>, vector<8x16xf32> -> vector<8x64xf32>
    %136 = arith.truncf %135 : vector<8x64xf32> to vector<8x64xbf16>
    %137 = arith.index_cast %arg1 : i32 to index
    %c0_33 = arith.constant 0 : index
    %c0_34 = arith.constant 0 : index
    %138 = vector.load %arg6[%137, %c0_33, %c0_34] : memref<2x64x64xbf16, #tpu.memory_space<vmem>>, vector<1x64x64xbf16>
    %139 = vector.shape_cast %138 : vector<1x64x64xbf16> to vector<64x64xbf16>
    %cst_35 = arith.constant dense<0.000000e+00> : vector<8x64xf32>
    %140 = tpu.matmul %136, %139, %cst_35 {dimension_numbers = #tpu.dot_dimension_numbers<[1], [0], [0], [1], [0, 0, 1, 1], [], []>} : vector<8x64xbf16>, vector<64x64xbf16>, vector<8x64xf32> -> vector<8x64xf32>
    %141 = arith.index_cast %arg1 : i32 to index
    %c0_36 = arith.constant 0 : index
    %c0_37 = arith.constant 0 : index
    %142 = vector.load %arg7[%141, %c0_36, %c0_37] : memref<2x1x64xf32, #tpu.memory_space<vmem>>, vector<1x1x64xf32>
    %143 = vector.shape_cast %142 : vector<1x1x64xf32> to vector<1x64xf32>
    %144 = vector.broadcast %143 : vector<1x64xf32> to vector<8x64xf32>
    %145 = arith.addf %140, %144 : vector<8x64xf32>
    %146 = arith.addf %3, %145 : vector<8x64xf32>
    %cst_38 = arith.constant dense<0.000000e+00> : vector<8xf32>
    %147 = vector.multi_reduction <add>, %146, %cst_38 [1] : vector<8x64xf32> to vector<8xf32>
    %148 = vector.shape_cast %147 : vector<8xf32> to vector<8x1xf32>
    %cst_39 = arith.constant 6.400000e+01 : f32
    %149 = vector.broadcast %cst_39 : f32 to vector<8x1xf32>
    %150 = arith.divf %148, %149 : vector<8x1xf32>
    %151 = vector.broadcast %150 : vector<8x1xf32> to vector<8x64xf32>
    %152 = arith.subf %146, %151 : vector<8x64xf32>
    %153 = arith.mulf %152, %152 : vector<8x64xf32>
    %cst_40 = arith.constant dense<0.000000e+00> : vector<8xf32>
    %154 = vector.multi_reduction <add>, %153, %cst_40 [1] : vector<8x64xf32> to vector<8xf32>
    %155 = vector.shape_cast %154 : vector<8xf32> to vector<8x1xf32>
    %cst_41 = arith.constant 6.400000e+01 : f32
    %156 = vector.broadcast %cst_41 : f32 to vector<8x1xf32>
    %157 = arith.divf %155, %156 : vector<8x1xf32>
    %158 = vector.broadcast %150 : vector<8x1xf32> to vector<8x64xf32>
    %159 = arith.subf %146, %158 : vector<8x64xf32>
    %cst_42 = arith.constant 9.99999974E-6 : f32
    %160 = vector.broadcast %cst_42 : f32 to vector<8x1xf32>
    %161 = arith.addf %157, %160 : vector<8x1xf32>
    %162 = math.rsqrt %161 : vector<8x1xf32>
    %163 = vector.broadcast %162 : vector<8x1xf32> to vector<8x64xf32>
    %164 = arith.mulf %159, %163 : vector<8x64xf32>
    %165 = arith.index_cast %arg1 : i32 to index
    %c0_43 = arith.constant 0 : index
    %c0_44 = arith.constant 0 : index
    %166 = vector.load %arg8[%165, %c0_43, %c0_44] : memref<2x1x64xf32, #tpu.memory_space<vmem>>, vector<1x1x64xf32>
    %167 = vector.shape_cast %166 : vector<1x1x64xf32> to vector<1x64xf32>
    %168 = vector.broadcast %167 : vector<1x64xf32> to vector<8x64xf32>
    %169 = arith.mulf %164, %168 : vector<8x64xf32>
    %170 = arith.index_cast %arg1 : i32 to index
    %c0_45 = arith.constant 0 : index
    %c0_46 = arith.constant 0 : index
    %171 = vector.load %arg9[%170, %c0_45, %c0_46] : memref<2x1x64xf32, #tpu.memory_space<vmem>>, vector<1x1x64xf32>
    %172 = vector.shape_cast %171 : vector<1x1x64xf32> to vector<1x64xf32>
    %173 = vector.broadcast %172 : vector<1x64xf32> to vector<8x64xf32>
    %174 = arith.addf %169, %173 : vector<8x64xf32>
    %175 = arith.truncf %174 : vector<8x64xf32> to vector<8x64xbf16>
    %176 = arith.index_cast %arg1 : i32 to index
    %c0_47 = arith.constant 0 : index
    %c0_48 = arith.constant 0 : index
    %177 = vector.load %arg10[%176, %c0_47, %c0_48] : memref<2x64x2048xbf16, #tpu.memory_space<vmem>>, vector<1x64x2048xbf16>
    %178 = vector.shape_cast %177 : vector<1x64x2048xbf16> to vector<64x2048xbf16>
    %cst_49 = arith.constant dense<0.000000e+00> : vector<8x2048xf32>
    %179 = tpu.matmul %175, %178, %cst_49 {dimension_numbers = #tpu.dot_dimension_numbers<[1], [0], [0], [1], [0, 0, 1, 1], [], []>} : vector<8x64xbf16>, vector<64x2048xbf16>, vector<8x2048xf32> -> vector<8x2048xf32>
    %180 = arith.index_cast %arg1 : i32 to index
    %c0_50 = arith.constant 0 : index
    %c0_51 = arith.constant 0 : index
    %181 = vector.load %arg11[%180, %c0_50, %c0_51] : memref<2x1x2048xf32, #tpu.memory_space<vmem>>, vector<1x1x2048xf32>
    %182 = vector.shape_cast %181 : vector<1x1x2048xf32> to vector<1x2048xf32>
    %183 = vector.broadcast %182 : vector<1x2048xf32> to vector<8x2048xf32>
    %184 = arith.addf %179, %183 : vector<8x2048xf32>
    %cst_52 = arith.constant 0.000000e+00 : f32
    %185 = vector.broadcast %cst_52 : f32 to vector<8x2048xf32>
    %186 = arith.maximumf %184, %185 : vector<8x2048xf32>
    %187 = arith.truncf %186 : vector<8x2048xf32> to vector<8x2048xbf16>
    %188 = arith.index_cast %arg1 : i32 to index
    %c0_53 = arith.constant 0 : index
    %c0_54 = arith.constant 0 : index
    %189 = vector.load %arg12[%188, %c0_53, %c0_54] : memref<2x2048x64xbf16, #tpu.memory_space<vmem>>, vector<1x2048x64xbf16>
    %190 = vector.shape_cast %189 : vector<1x2048x64xbf16> to vector<2048x64xbf16>
    %cst_55 = arith.constant dense<0.000000e+00> : vector<8x64xf32>
    %191 = tpu.matmul %187, %190, %cst_55 {dimension_numbers = #tpu.dot_dimension_numbers<[1], [0], [0], [1], [0, 0, 1, 1], [], []>} : vector<8x2048xbf16>, vector<2048x64xbf16>, vector<8x64xf32> -> vector<8x64xf32>
    %192 = arith.index_cast %arg1 : i32 to index
    %c0_56 = arith.constant 0 : index
    %c0_57 = arith.constant 0 : index
    %193 = vector.load %arg13[%192, %c0_56, %c0_57] : memref<2x1x64xf32, #tpu.memory_space<vmem>>, vector<1x1x64xf32>
    %194 = vector.shape_cast %193 : vector<1x1x64xf32> to vector<1x64xf32>
    %195 = vector.broadcast %194 : vector<1x64xf32> to vector<8x64xf32>
    %196 = arith.addf %191, %195 : vector<8x64xf32>
    %197 = arith.addf %174, %196 : vector<8x64xf32>
    %cst_58 = arith.constant dense<0.000000e+00> : vector<8xf32>
    %198 = vector.multi_reduction <add>, %197, %cst_58 [1] : vector<8x64xf32> to vector<8xf32>
    %199 = vector.shape_cast %198 : vector<8xf32> to vector<8x1xf32>
    %cst_59 = arith.constant 6.400000e+01 : f32
    %200 = vector.broadcast %cst_59 : f32 to vector<8x1xf32>
    %201 = arith.divf %199, %200 : vector<8x1xf32>
    %202 = vector.broadcast %201 : vector<8x1xf32> to vector<8x64xf32>
    %203 = arith.subf %197, %202 : vector<8x64xf32>
    %204 = arith.mulf %203, %203 : vector<8x64xf32>
    %cst_60 = arith.constant dense<0.000000e+00> : vector<8xf32>
    %205 = vector.multi_reduction <add>, %204, %cst_60 [1] : vector<8x64xf32> to vector<8xf32>
    %206 = vector.shape_cast %205 : vector<8xf32> to vector<8x1xf32>
    %cst_61 = arith.constant 6.400000e+01 : f32
    %207 = vector.broadcast %cst_61 : f32 to vector<8x1xf32>
    %208 = arith.divf %206, %207 : vector<8x1xf32>
    %209 = vector.broadcast %201 : vector<8x1xf32> to vector<8x64xf32>
    %210 = arith.subf %197, %209 : vector<8x64xf32>
    %cst_62 = arith.constant 9.99999974E-6 : f32
    %211 = vector.broadcast %cst_62 : f32 to vector<8x1xf32>
    %212 = arith.addf %208, %211 : vector<8x1xf32>
    %213 = math.rsqrt %212 : vector<8x1xf32>
    %214 = vector.broadcast %213 : vector<8x1xf32> to vector<8x64xf32>
    %215 = arith.mulf %210, %214 : vector<8x64xf32>
    %216 = arith.index_cast %arg1 : i32 to index
    %c0_63 = arith.constant 0 : index
    %c0_64 = arith.constant 0 : index
    %217 = vector.load %arg14[%216, %c0_63, %c0_64] : memref<2x1x64xf32, #tpu.memory_space<vmem>>, vector<1x1x64xf32>
    %218 = vector.shape_cast %217 : vector<1x1x64xf32> to vector<1x64xf32>
    %219 = vector.broadcast %218 : vector<1x64xf32> to vector<8x64xf32>
    %220 = arith.mulf %215, %219 : vector<8x64xf32>
    %221 = arith.index_cast %arg1 : i32 to index
    %c0_65 = arith.constant 0 : index
    %c0_66 = arith.constant 0 : index
    %222 = vector.load %arg15[%221, %c0_65, %c0_66] : memref<2x1x64xf32, #tpu.memory_space<vmem>>, vector<1x1x64xf32>
    %223 = vector.shape_cast %222 : vector<1x1x64xf32> to vector<1x64xf32>
    %224 = vector.broadcast %223 : vector<1x64xf32> to vector<8x64xf32>
    %225 = arith.addf %220, %224 : vector<8x64xf32>
    %c0_67 = arith.constant 0 : index
    %c0_68 = arith.constant 0 : index
    %226 = vector.load %arg21[%c0_67, %c0_68] : memref<8x64xf32, #tpu.memory_space<vmem>>, vector<8x64xf32>
    tpu.vector_store %arg21[%c0_67, %c0_68], %225 {strides = array<i32>} : memref<8x64xf32, #tpu.memory_space<vmem>>, vector<8x64xf32>,
    %c1_i32 = arith.constant 1 : i32
    %227 = arith.cmpi eq, %arg1, %c1_i32 : i32
    %228 = arith.extui %227 : i1 to i32
    %c0_i32_69 = arith.constant 0 : i32
    %229 = arith.cmpi ne, %228, %c0_i32_69 : i32
    scf.if %229 {
      %230 = arith.truncf %225 : vector<8x64xf32> to vector<8x64xbf16>
      %c0_70 = arith.constant 0 : index
      %c0_71 = arith.constant 0 : index
      %231 = vector.load %arg16[%c0_70, %c0_71] : memref<64x64xbf16, #tpu.memory_space<vmem>>, vector<64x64xbf16>
      %cst_72 = arith.constant dense<0.000000e+00> : vector<8x64xf32>
      %232 = tpu.matmul %230, %231, %cst_72 {dimension_numbers = #tpu.dot_dimension_numbers<[1], [0], [0], [1], [0, 0, 1, 1], [], []>} : vector<8x64xbf16>, vector<64x64xbf16>, vector<8x64xf32> -> vector<8x64xf32>
      %c0_73 = arith.constant 0 : index
      %c0_74 = arith.constant 0 : index
      %233 = vector.load %arg17[%c0_73, %c0_74] : memref<1x64xf32, #tpu.memory_space<vmem>>, vector<1x64xf32>
      %234 = vector.broadcast %233 : vector<1x64xf32> to vector<8x64xf32>
      %235 = arith.addf %232, %234 : vector<8x64xf32>
      %cst_75 = arith.constant 0.000000e+00 : f32
      %236 = vector.broadcast %cst_75 : f32 to vector<8x64xf32>
      %237 = arith.maximumf %235, %236 : vector<8x64xf32>
      %238 = arith.truncf %237 : vector<8x64xf32> to vector<8x64xbf16>
      %c0_76 = arith.constant 0 : index
      %c0_77 = arith.constant 0 : index
      %239 = vector.load %arg18[%c0_76, %c0_77] : memref<64x128xbf16, #tpu.memory_space<vmem>>, vector<64x128xbf16>
      %cst_78 = arith.constant dense<0.000000e+00> : vector<8x128xf32>
      %240 = tpu.matmul %238, %239, %cst_78 {dimension_numbers = #tpu.dot_dimension_numbers<[1], [0], [0], [1], [0, 0, 1, 1], [], []>} : vector<8x64xbf16>, vector<64x128xbf16>, vector<8x128xf32> -> vector<8x128xf32>
      %c0_79 = arith.constant 0 : index
      %c0_80 = arith.constant 0 : index
      %241 = vector.load %arg19[%c0_79, %c0_80] : memref<1x128xf32, #tpu.memory_space<vmem>>, vector<1x128xf32>
      %242 = vector.broadcast %241 : vector<1x128xf32> to vector<8x128xf32>
      %243 = arith.addf %240, %242 : vector<8x128xf32>
      %244 = vector.shape_cast %243 : vector<8x128xf32> to vector<1x8x128xf32>
      %c0_81 = arith.constant 0 : index
      %c0_82 = arith.constant 0 : index
      %c0_83 = arith.constant 0 : index
      %245 = vector.load %arg20[%c0_81, %c0_82, %c0_83] : memref<1x8x128xf32, #tpu.memory_space<vmem>>, vector<1x8x128xf32>
      tpu.vector_store %arg20[%c0_81, %c0_82, %c0_83], %244 {strides = array<i32>} : memref<1x8x128xf32, #tpu.memory_space<vmem>>, vector<1x8x128xf32>,
    } else {
    }
    return
  }
  func.func @transform_0(%arg0: i32, %arg1: i32) -> (i32, i32, i32) {
    %c0_i32 = arith.constant 0 : i32
    %c0_i32_0 = arith.constant 0 : i32
    %c0_i32_1 = arith.constant 0 : i32
    return %arg0, %c0_i32, %c0_i32_0 : i32, i32, i32
  }
  func.func @transform_1(%arg0: i32, %arg1: i32) -> (i32, i32, i32) {
    %c0_i32 = arith.constant 0 : i32
    %c0_i32_0 = arith.constant 0 : i32
    %c0_i32_1 = arith.constant 0 : i32
    return %arg0, %c0_i32, %c0_i32_0 : i32, i32, i32
  }
  func.func @transform_2(%arg0: i32, %arg1: i32) -> (i32, i32, i32) {
    %c0_i32 = arith.constant 0 : i32
    %c0_i32_0 = arith.constant 0 : i32
    %c0_i32_1 = arith.constant 0 : i32
    %c0_i32_2 = arith.constant 0 : i32
    return %c0_i32, %c0_i32_0, %c0_i32_1 : i32, i32, i32
  }
  func.func @transform_3(%arg0: i32, %arg1: i32) -> (i32, i32, i32) {
    %c0_i32 = arith.constant 0 : i32
    %c0_i32_0 = arith.constant 0 : i32
    %c0_i32_1 = arith.constant 0 : i32
    %c0_i32_2 = arith.constant 0 : i32
    return %c0_i32, %c0_i32_0, %c0_i32_1 : i32, i32, i32
  }
  func.func @transform_4(%arg0: i32, %arg1: i32) -> (i32, i32, i32) {
    %c0_i32 = arith.constant 0 : i32
    %c0_i32_0 = arith.constant 0 : i32
    %c0_i32_1 = arith.constant 0 : i32
    %c0_i32_2 = arith.constant 0 : i32
    return %c0_i32, %c0_i32_0, %c0_i32_1 : i32, i32, i32
  }
  func.func @transform_5(%arg0: i32, %arg1: i32) -> (i32, i32, i32) {
    %c0_i32 = arith.constant 0 : i32
    %c0_i32_0 = arith.constant 0 : i32
    %c0_i32_1 = arith.constant 0 : i32
    %c0_i32_2 = arith.constant 0 : i32
    return %c0_i32, %c0_i32_0, %c0_i32_1 : i32, i32, i32
  }
  func.func @transform_6(%arg0: i32, %arg1: i32) -> (i32, i32, i32) {
    %c0_i32 = arith.constant 0 : i32
    %c0_i32_0 = arith.constant 0 : i32
    %c0_i32_1 = arith.constant 0 : i32
    %c0_i32_2 = arith.constant 0 : i32
    return %c0_i32, %c0_i32_0, %c0_i32_1 : i32, i32, i32
  }
  func.func @transform_7(%arg0: i32, %arg1: i32) -> (i32, i32, i32) {
    %c0_i32 = arith.constant 0 : i32
    %c0_i32_0 = arith.constant 0 : i32
    %c0_i32_1 = arith.constant 0 : i32
    %c0_i32_2 = arith.constant 0 : i32
    return %c0_i32, %c0_i32_0, %c0_i32_1 : i32, i32, i32
  }
  func.func @transform_8(%arg0: i32, %arg1: i32) -> (i32, i32, i32) {
    %c0_i32 = arith.constant 0 : i32
    %c0_i32_0 = arith.constant 0 : i32
    %c0_i32_1 = arith.constant 0 : i32
    %c0_i32_2 = arith.constant 0 : i32
    return %c0_i32, %c0_i32_0, %c0_i32_1 : i32, i32, i32
  }
  func.func @transform_9(%arg0: i32, %arg1: i32) -> (i32, i32, i32) {
    %c0_i32 = arith.constant 0 : i32
    %c0_i32_0 = arith.constant 0 : i32
    %c0_i32_1 = arith.constant 0 : i32
    %c0_i32_2 = arith.constant 0 : i32
    return %c0_i32, %c0_i32_0, %c0_i32_1 : i32, i32, i32
  }
  func.func @transform_10(%arg0: i32, %arg1: i32) -> (i32, i32, i32) {
    %c0_i32 = arith.constant 0 : i32
    %c0_i32_0 = arith.constant 0 : i32
    %c0_i32_1 = arith.constant 0 : i32
    %c0_i32_2 = arith.constant 0 : i32
    return %c0_i32, %c0_i32_0, %c0_i32_1 : i32, i32, i32
  }
  func.func @transform_11(%arg0: i32, %arg1: i32) -> (i32, i32, i32) {
    %c0_i32 = arith.constant 0 : i32
    %c0_i32_0 = arith.constant 0 : i32
    %c0_i32_1 = arith.constant 0 : i32
    %c0_i32_2 = arith.constant 0 : i32
    return %c0_i32, %c0_i32_0, %c0_i32_1 : i32, i32, i32
  }
  func.func @transform_12(%arg0: i32, %arg1: i32) -> (i32, i32, i32) {
    %c0_i32 = arith.constant 0 : i32
    %c0_i32_0 = arith.constant 0 : i32
    %c0_i32_1 = arith.constant 0 : i32
    %c0_i32_2 = arith.constant 0 : i32
    return %c0_i32, %c0_i32_0, %c0_i32_1 : i32, i32, i32
  }
  func.func @transform_13(%arg0: i32, %arg1: i32) -> (i32, i32, i32) {
    %c0_i32 = arith.constant 0 : i32
    %c0_i32_0 = arith.constant 0 : i32
    %c0_i32_1 = arith.constant 0 : i32
    %c0_i32_2 = arith.constant 0 : i32
    return %c0_i32, %c0_i32_0, %c0_i32_1 : i32, i32, i32
  }
  func.func @transform_14(%arg0: i32, %arg1: i32) -> (i32, i32) {
    %c0_i32 = arith.constant 0 : i32
    %c0_i32_0 = arith.constant 0 : i32
    %c0_i32_1 = arith.constant 0 : i32
    return %c0_i32, %c0_i32_0 : i32, i32
  }
  func.func @transform_15(%arg0: i32, %arg1: i32) -> (i32, i32) {
    %c0_i32 = arith.constant 0 : i32
    %c0_i32_0 = arith.constant 0 : i32
    %c0_i32_1 = arith.constant 0 : i32
    return %c0_i32, %c0_i32_0 : i32, i32
  }
  func.func @transform_16(%arg0: i32, %arg1: i32) -> (i32, i32) {
    %c0_i32 = arith.constant 0 : i32
    %c0_i32_0 = arith.constant 0 : i32
    %c0_i32_1 = arith.constant 0 : i32
    return %c0_i32, %c0_i32_0 : i32, i32
  }
  func.func @transform_17(%arg0: i32, %arg1: i32) -> (i32, i32) {
    %c0_i32 = arith.constant 0 : i32
    %c0_i32_0 = arith.constant 0 : i32
    %c0_i32_1 = arith.constant 0 : i32
    return %c0_i32, %c0_i32_0 : i32, i32
  }
  func.func @transform_18(%arg0: i32, %arg1: i32) -> (i32, i32, i32) {
    %c0_i32 = arith.constant 0 : i32
    %c0_i32_0 = arith.constant 0 : i32
    %c0_i32_1 = arith.constant 0 : i32
    return %arg0, %c0_i32, %c0_i32_0 : i32, i32, i32
  }
}

</mosaic_0001>

<llo_original>
// kernel: forward.1
$region0: #{forward.1}
  #allocation0 [shape = 'u32[]', space=smem, size = 0x4, offset = 0x4, fixed_abs, tag = 'smem constant byte address 0x4 - core index']
  #allocation1 [shape = 'u32[144,128]{1,0:T(1,128)}', space=vmem, size = 0x12000, scoped, tag = 'internal scratch']
  #allocation2 [shape = 'f32[8,64]{1,0:T(8,128)}', space=vmem, size = 0x1000, scoped, tag = 'scratch operand']
  %s0 = inlined_call_operand.vmem [shape: bf16[2,8,64], index: 0, kind: input, shape index: {}]
  %s1 = inlined_call_operand.vmem [shape: f32[2,1,8], index: 1, kind: input, shape index: {}]
  %s2 = inlined_call_operand.vmem [shape: bf16[2,64,192], index: 2, kind: input, shape index: {}]
  %s3 = inlined_call_operand.vmem [shape: f32[2,1,192], index: 3, kind: input, shape index: {}]
  %s4 = inlined_call_operand.vmem [shape: bf16[2,64,64], index: 4, kind: input, shape index: {}]
  %s5 = inlined_call_operand.vmem [shape: f32[2,1,64], index: 5, kind: input, shape index: {}]
  %s6 = inlined_call_operand.vmem [shape: f32[2,1,64], index: 6, kind: input, shape index: {}]
  %s7 = inlined_call_operand.vmem [shape: f32[2,1,64], index: 7, kind: input, shape index: {}]
  %s8 = inlined_call_operand.vmem [shape: bf16[2,64,2048], index: 8, kind: input, shape index: {}]
  %s9 = inlined_call_operand.vmem [shape: f32[2,1,2048], index: 9, kind: input, shape index: {}]
  %s10 = inlined_call_operand.vmem [shape: bf16[2,2048,64], index: 10, kind: input, shape index: {}]
  %s11 = inlined_call_operand.vmem [shape: f32[2,1,64], index: 11, kind: input, shape index: {}]
  %s12 = inlined_call_operand.vmem [shape: f32[2,1,64], index: 12, kind: input, shape index: {}]
  %s13 = inlined_call_operand.vmem [shape: f32[2,1,64], index: 13, kind: input, shape index: {}]
  %s14 = inlined_call_operand.vmem [shape: bf16[64,64], index: 14, kind: input, shape index: {}]
  %s15 = inlined_call_operand.vmem [shape: f32[1,64], index: 15, kind: input, shape index: {}]
  %s16 = inlined_call_operand.vmem [shape: bf16[64,128], index: 16, kind: input, shape index: {}]
  %s17 = inlined_call_operand.vmem [shape: f32[1,128], index: 17, kind: input, shape index: {}]
  %s18 = inlined_call_operand.vmem [shape: f32[2,8,128], index: 18, kind: output, shape index: {}]
  %s19 = sld [smem:[#allocation0]]
  $region113: #{forward.1} parent=0
    _
  %s21 = ssub.s32 1, %s19
  %s22 = scalar_select 0, %s21, %s19
  loop: start=0, step=1, limit=6
  $region2: #{forward.1} parent=0 // loop_pre_header
    _
  $region3: #{forward.1} parent=0 // loop_header
    %s24 = sphi 0, %s28
    %p25 = scmp.ge.s32.totalorder %s24, 6
    %s31 = sphi 0, %s43
    %s32 = sphi 0, %s39
    %s33 = sphi 0, %s31
    %s34 = sphi 0, %s32
    %s35 = sphi 0, %s33
    %s36 = sphi 0, %s34
    %s46 = sphi 0, %s48
    %s49 = sphi 0, %s46
    %s50 = sphi 0, %s49
    %s66 = sphi 0, %s50
    %s72 = sphi 0, %s74
    %s75 = sphi 0, %s72
    %s76 = sphi 0, %s75
    %s92 = sphi 0, %s76
    %s96 = sphi 0, %s96
    %s98 = sphi 0, %s96
    %s99 = sphi 0, %s98
    %s113 = sphi 0, %s99
    %s117 = sphi 0, %s117
    %s119 = sphi 0, %s117
    %s120 = sphi 0, %s119
    %s134 = sphi 0, %s120
    %s138 = sphi 0, %s138
    %s140 = sphi 0, %s138
    %s141 = sphi 0, %s140
    %s155 = sphi 0, %s141
    %s159 = sphi 0, %s159
    %s161 = sphi 0, %s159
    %s162 = sphi 0, %s161
    %s176 = sphi 0, %s162
    %s180 = sphi 0, %s180
    %s182 = sphi 0, %s180
    %s183 = sphi 0, %s182
    %s197 = sphi 0, %s183
    %s201 = sphi 0, %s201
    %s203 = sphi 0, %s201
    %s204 = sphi 0, %s203
    %s218 = sphi 0, %s204
    %s222 = sphi 0, %s222
    %s224 = sphi 0, %s222
    %s225 = sphi 0, %s224
    %s239 = sphi 0, %s225
    %s243 = sphi 0, %s243
    %s245 = sphi 0, %s243
    %s246 = sphi 0, %s245
    %s260 = sphi 0, %s246
    %s264 = sphi 0, %s264
    %s266 = sphi 0, %s264
    %s267 = sphi 0, %s266
    %s281 = sphi 0, %s267
    %s285 = sphi 0, %s285
    %s287 = sphi 0, %s285
    %s288 = sphi 0, %s287
    %s302 = sphi 0, %s288
    %s306 = sphi 0, %s306
    %s308 = sphi 0, %s306
    %s309 = sphi 0, %s308
    %s323 = sphi 0, %s309
    %s327 = sphi 0, %s327
    %s329 = sphi 0, %s327
    %s330 = sphi 0, %s329
    %s344 = sphi 0, %s330
    %s348 = sphi 0, %s348
    %s350 = sphi 0, %s348
    %s351 = sphi 0, %s350
    %s365 = sphi 0, %s351
    %s369 = sphi 0, %s369
    %s371 = sphi 0, %s369
    %s372 = sphi 0, %s371
    %s386 = sphi 0, %s372
    %s390 = sphi 0, %s390
    %s392 = sphi 0, %s390
    %s393 = sphi 0, %s392
    %s407 = sphi 0, %s393
    %s411 = sphi 0, %s411
    %s413 = sphi 0, %s411
    %s414 = sphi 0, %s413
    %s428 = sphi 0, %s414
    %s434 = sphi 0, %s436
    %s437 = sphi 0, %s434
    %s438 = sphi 0, %s437
    %s454 = sphi 0, %s438
  $region4: #{forward.1} parent=0 // loop_header_branch
    %27 = sbr.rel (%p25) target = $region8
  $region5: #{forward.1} parent=0 // loop_body
    %s29 = ssub.s32 %s24, 1
    %s30 = ssub.s32 %s24, 2
    %s37 = sadd.s32 1, %s32
    %p38 = scmp.ge.s32.totalorder %s37, 2
    %s39 = scalar_select %p38, 0, %s37
    %s40 = sadd.s32 1, %s31
    %s41 = scalar_select %p38, %s40, %s31
    %p42 = scmp.ge.s32.totalorder %s41, 2
    %s43 = scalar_select %p42, 0, %s41
    %s44 = ssub.s32 %s31, %s43
    %p45 = scmp.eq.s32.totalorder %s44, 0
    %s47 = sadd.s32 %s46, 1
    %s48 = scalar_select %p45, %s46, %s47
    %p51 = pneg %p45
    %p52 = scmp.eq.s32.totalorder %s24, 3
    %p53 = por %p51, %p52
    %p54 = scmp.ne.s32.totalorder %s46, %s49
    %p55 = scmp.eq.s32.totalorder %s24, 0
    %p56 = por %p54, %p55
    %p57 = scmp.ne.s32.totalorder %s46, %s49
    %p58 = scmp.eq.s32.totalorder %s29, 3
    %p59 = por %p57, %p58
    %p60 = scmp.ne.s32.totalorder %s49, %s50
    %p61 = scmp.eq.s32.totalorder %s29, 0
    %p62 = por %p60, %p61
    %p63 = scmp.ne.s32.totalorder %s49, %s50
    %p64 = scmp.eq.s32.totalorder %s30, 3
    %p65 = por %p63, %p64
    %p67 = scmp.ne.s32.totalorder %s50, %s66
    %p68 = scmp.eq.s32.totalorder %s30, 0
    %p69 = por %p67, %p68
    %s70 = ssub.s32 %s31, %s43
    %p71 = scmp.eq.s32.totalorder %s70, 0
    %s73 = sadd.s32 %s72, 1
    %s74 = scalar_select %p71, %s72, %s73
    %p77 = pneg %p71
    %p78 = scmp.eq.s32.totalorder %s24, 3
    %p79 = por %p77, %p78
    %p80 = scmp.ne.s32.totalorder %s72, %s75
    %p81 = scmp.eq.s32.totalorder %s24, 0
    %p82 = por %p80, %p81
    %p83 = scmp.ne.s32.totalorder %s72, %s75
    %p84 = scmp.eq.s32.totalorder %s29, 3
    %p85 = por %p83, %p84
    %p86 = scmp.ne.s32.totalorder %s75, %s76
    %p87 = scmp.eq.s32.totalorder %s29, 0
    %p88 = por %p86, %p87
    %p89 = scmp.ne.s32.totalorder %s75, %s76
    %p90 = scmp.eq.s32.totalorder %s30, 3
    %p91 = por %p89, %p90
    %p93 = scmp.ne.s32.totalorder %s76, %s92
    %p94 = scmp.eq.s32.totalorder %s30, 0
    %p95 = por %p93, %p94
    %s97 = sadd.s32 %s96, 1
    %p100 = scmp.eq.s32.totalorder %s24, 3
    %p101 = scmp.ne.s32.totalorder %s96, %s98
    %p102 = scmp.eq.s32.totalorder %s24, 0
    %p103 = por %p101, %p102
    %p104 = scmp.ne.s32.totalorder %s96, %s98
    %p105 = scmp.eq.s32.totalorder %s29, 3
    %p106 = por %p104, %p105
    %p107 = scmp.ne.s32.totalorder %s98, %s99
    %p108 = scmp.eq.s32.totalorder %s29, 0
    %p109 = por %p107, %p108
    %p110 = scmp.ne.s32.totalorder %s98, %s99
    %p111 = scmp.eq.s32.totalorder %s30, 3
    %p112 = por %p110, %p111
    %p114 = scmp.ne.s32.totalorder %s99, %s113
    %p115 = scmp.eq.s32.totalorder %s30, 0
    %p116 = por %p114, %p115
    %s118 = sadd.s32 %s117, 1
    %p121 = scmp.eq.s32.totalorder %s24, 3
    %p122 = scmp.ne.s32.totalorder %s117, %s119
    %p123 = scmp.eq.s32.totalorder %s24, 0
    %p124 = por %p122, %p123
    %p125 = scmp.ne.s32.totalorder %s117, %s119
    %p126 = scmp.eq.s32.totalorder %s29, 3
    %p127 = por %p125, %p126
    %p128 = scmp.ne.s32.totalorder %s119, %s120
    %p129 = scmp.eq.s32.totalorder %s29, 0
    %p130 = por %p128, %p129
    %p131 = scmp.ne.s32.totalorder %s119, %s120
    %p132 = scmp.eq.s32.totalorder %s30, 3
    %p133 = por %p131, %p132
    %p135 = scmp.ne.s32.totalorder %s120, %s134
    %p136 = scmp.eq.s32.totalorder %s30, 0
    %p137 = por %p135, %p136
    %s139 = sadd.s32 %s138, 1
    %p142 = scmp.eq.s32.totalorder %s24, 3
    %p143 = scmp.ne.s32.totalorder %s138, %s140
    %p144 = scmp.eq.s32.totalorder %s24, 0
    %p145 = por %p143, %p144
    %p146 = scmp.ne.s32.totalorder %s138, %s140
    %p147 = scmp.eq.s32.totalorder %s29, 3
    %p148 = por %p146, %p147
    %p149 = scmp.ne.s32.totalorder %s140, %s141
    %p150 = scmp.eq.s32.totalorder %s29, 0
    %p151 = por %p149, %p150
    %p152 = scmp.ne.s32.totalorder %s140, %s141
    %p153 = scmp.eq.s32.totalorder %s30, 3
    %p154 = por %p152, %p153
    %p156 = scmp.ne.s32.totalorder %s141, %s155
    %p157 = scmp.eq.s32.totalorder %s30, 0
    %p158 = por %p156, %p157
    %s160 = sadd.s32 %s159, 1
    %p163 = scmp.eq.s32.totalorder %s24, 3
    %p164 = scmp.ne.s32.totalorder %s159, %s161
    %p165 = scmp.eq.s32.totalorder %s24, 0
    %p166 = por %p164, %p165
    %p167 = scmp.ne.s32.totalorder %s159, %s161
    %p168 = scmp.eq.s32.totalorder %s29, 3
    %p169 = por %p167, %p168
    %p170 = scmp.ne.s32.totalorder %s161, %s162
    %p171 = scmp.eq.s32.totalorder %s29, 0
    %p172 = por %p170, %p171
    %p173 = scmp.ne.s32.totalorder %s161, %s162
    %p174 = scmp.eq.s32.totalorder %s30, 3
    %p175 = por %p173, %p174
    %p177 = scmp.ne.s32.totalorder %s162, %s176
    %p178 = scmp.eq.s32.totalorder %s30, 0
    %p179 = por %p177, %p178
    %s181 = sadd.s32 %s180, 1
    %p184 = scmp.eq.s32.totalorder %s24, 3
    %p185 = scmp.ne.s32.totalorder %s180, %s182
    %p186 = scmp.eq.s32.totalorder %s24, 0
    %p187 = por %p185, %p186
    %p188 = scmp.ne.s32.totalorder %s180, %s182
    %p189 = scmp.eq.s32.totalorder %s29, 3
    %p190 = por %p188, %p189
    %p191 = scmp.ne.s32.totalorder %s182, %s183
    %p192 = scmp.eq.s32.totalorder %s29, 0
    %p193 = por %p191, %p192
    %p194 = scmp.ne.s32.totalorder %s182, %s183
    %p195 = scmp.eq.s32.totalorder %s30, 3
    %p196 = por %p194, %p195
    %p198 = scmp.ne.s32.totalorder %s183, %s197
    %p199 = scmp.eq.s32.totalorder %s30, 0
    %p200 = por %p198, %p199
    %s202 = sadd.s32 %s201, 1
    %p205 = scmp.eq.s32.totalorder %s24, 3
    %p206 = scmp.ne.s32.totalorder %s201, %s203
    %p207 = scmp.eq.s32.totalorder %s24, 0
    %p208 = por %p206, %p207
    %p209 = scmp.ne.s32.totalorder %s201, %s203
    %p210 = scmp.eq.s32.totalorder %s29, 3
    %p211 = por %p209, %p210
    %p212 = scmp.ne.s32.totalorder %s203, %s204
    %p213 = scmp.eq.s32.totalorder %s29, 0
    %p214 = por %p212, %p213
    %p215 = scmp.ne.s32.totalorder %s203, %s204
    %p216 = scmp.eq.s32.totalorder %s30, 3
    %p217 = por %p215, %p216
    %p219 = scmp.ne.s32.totalorder %s204, %s218
    %p220 = scmp.eq.s32.totalorder %s30, 0
    %p221 = por %p219, %p220
    %s223 = sadd.s32 %s222, 1
    %p226 = scmp.eq.s32.totalorder %s24, 3
    %p227 = scmp.ne.s32.totalorder %s222, %s224
    %p228 = scmp.eq.s32.totalorder %s24, 0
    %p229 = por %p227, %p228
    %p230 = scmp.ne.s32.totalorder %s222, %s224
    %p231 = scmp.eq.s32.totalorder %s29, 3
    %p232 = por %p230, %p231
    %p233 = scmp.ne.s32.totalorder %s224, %s225
    %p234 = scmp.eq.s32.totalorder %s29, 0
    %p235 = por %p233, %p234
    %p236 = scmp.ne.s32.totalorder %s224, %s225
    %p237 = scmp.eq.s32.totalorder %s30, 3
    %p238 = por %p236, %p237
    %p240 = scmp.ne.s32.totalorder %s225, %s239
    %p241 = scmp.eq.s32.totalorder %s30, 0
    %p242 = por %p240, %p241
    %s244 = sadd.s32 %s243, 1
    %p247 = scmp.eq.s32.totalorder %s24, 3
    %p248 = scmp.ne.s32.totalorder %s243, %s245
    %p249 = scmp.eq.s32.totalorder %s24, 0
    %p250 = por %p248, %p249
    %p251 = scmp.ne.s32.totalorder %s243, %s245
    %p252 = scmp.eq.s32.totalorder %s29, 3
    %p253 = por %p251, %p252
    %p254 = scmp.ne.s32.totalorder %s245, %s246
    %p255 = scmp.eq.s32.totalorder %s29, 0
    %p256 = por %p254, %p255
    %p257 = scmp.ne.s32.totalorder %s245, %s246
    %p258 = scmp.eq.s32.totalorder %s30, 3
    %p259 = por %p257, %p258
    %p261 = scmp.ne.s32.totalorder %s246, %s260
    %p262 = scmp.eq.s32.totalorder %s30, 0
    %p263 = por %p261, %p262
    %s265 = sadd.s32 %s264, 1
    %p268 = scmp.eq.s32.totalorder %s24, 3
    %p269 = scmp.ne.s32.totalorder %s264, %s266
    %p270 = scmp.eq.s32.totalorder %s24, 0
    %p271 = por %p269, %p270
    %p272 = scmp.ne.s32.totalorder %s264, %s266
    %p273 = scmp.eq.s32.totalorder %s29, 3
    %p274 = por %p272, %p273
    %p275 = scmp.ne.s32.totalorder %s266, %s267
    %p276 = scmp.eq.s32.totalorder %s29, 0
    %p277 = por %p275, %p276
    %p278 = scmp.ne.s32.totalorder %s266, %s267
    %p279 = scmp.eq.s32.totalorder %s30, 3
    %p280 = por %p278, %p279
    %p282 = scmp.ne.s32.totalorder %s267, %s281
    %p283 = scmp.eq.s32.totalorder %s30, 0
    %p284 = por %p282, %p283
    %s286 = sadd.s32 %s285, 1
    %p289 = scmp.eq.s32.totalorder %s24, 3
    %p290 = scmp.ne.s32.totalorder %s285, %s287
    %p291 = scmp.eq.s32.totalorder %s24, 0
    %p292 = por %p290, %p291
    %p293 = scmp.ne.s32.totalorder %s285, %s287
    %p294 = scmp.eq.s32.totalorder %s29, 3
    %p295 = por %p293, %p294
    %p296 = scmp.ne.s32.totalorder %s287, %s288
    %p297 = scmp.eq.s32.totalorder %s29, 0
    %p298 = por %p296, %p297
    %p299 = scmp.ne.s32.totalorder %s287, %s288
    %p300 = scmp.eq.s32.totalorder %s30, 3
    %p301 = por %p299, %p300
    %p303 = scmp.ne.s32.totalorder %s288, %s302
    %p304 = scmp.eq.s32.totalorder %s30, 0
    %p305 = por %p303, %p304
    %s307 = sadd.s32 %s306, 1
    %p310 = scmp.eq.s32.totalorder %s24, 3
    %p311 = scmp.ne.s32.totalorder %s306, %s308
    %p312 = scmp.eq.s32.totalorder %s24, 0
    %p313 = por %p311, %p312
    %p314 = scmp.ne.s32.totalorder %s306, %s308
    %p315 = scmp.eq.s32.totalorder %s29, 3
    %p316 = por %p314, %p315
    %p317 = scmp.ne.s32.totalorder %s308, %s309
    %p318 = scmp.eq.s32.totalorder %s29, 0
    %p319 = por %p317, %p318
    %p320 = scmp.ne.s32.totalorder %s308, %s309
    %p321 = scmp.eq.s32.totalorder %s30, 3
    %p322 = por %p320, %p321
    %p324 = scmp.ne.s32.totalorder %s309, %s323
    %p325 = scmp.eq.s32.totalorder %s30, 0
    %p326 = por %p324, %p325
    %s328 = sadd.s32 %s327, 1
    %p331 = scmp.eq.s32.totalorder %s24, 3
    %p332 = scmp.ne.s32.totalorder %s327, %s329
    %p333 = scmp.eq.s32.totalorder %s24, 0
    %p334 = por %p332, %p333
    %p335 = scmp.ne.s32.totalorder %s327, %s329
    %p336 = scmp.eq.s32.totalorder %s29, 3
    %p337 = por %p335, %p336
    %p338 = scmp.ne.s32.totalorder %s329, %s330
    %p339 = scmp.eq.s32.totalorder %s29, 0
    %p340 = por %p338, %p339
    %p341 = scmp.ne.s32.totalorder %s329, %s330
    %p342 = scmp.eq.s32.totalorder %s30, 3
    %p343 = por %p341, %p342
    %p345 = scmp.ne.s32.totalorder %s330, %s344
    %p346 = scmp.eq.s32.totalorder %s30, 0
    %p347 = por %p345, %p346
    %s349 = sadd.s32 %s348, 1
    %p352 = scmp.eq.s32.totalorder %s24, 3
    %p353 = scmp.ne.s32.totalorder %s348, %s350
    %p354 = scmp.eq.s32.totalorder %s24, 0
    %p355 = por %p353, %p354
    %p356 = scmp.ne.s32.totalorder %s348, %s350
    %p357 = scmp.eq.s32.totalorder %s29, 3
    %p358 = por %p356, %p357
    %p359 = scmp.ne.s32.totalorder %s350, %s351
    %p360 = scmp.eq.s32.totalorder %s29, 0
    %p361 = por %p359, %p360
    %p362 = scmp.ne.s32.totalorder %s350, %s351
    %p363 = scmp.eq.s32.totalorder %s30, 3
    %p364 = por %p362, %p363
    %p366 = scmp.ne.s32.totalorder %s351, %s365
    %p367 = scmp.eq.s32.totalorder %s30, 0
    %p368 = por %p366, %p367
    %s370 = sadd.s32 %s369, 1
    %p373 = scmp.eq.s32.totalorder %s24, 3
    %p374 = scmp.ne.s32.totalorder %s369, %s371
    %p375 = scmp.eq.s32.totalorder %s24, 0
    %p376 = por %p374, %p375
    %p377 = scmp.ne.s32.totalorder %s369, %s371
    %p378 = scmp.eq.s32.totalorder %s29, 3
    %p379 = por %p377, %p378
    %p380 = scmp.ne.s32.totalorder %s371, %s372
    %p381 = scmp.eq.s32.totalorder %s29, 0
    %p382 = por %p380, %p381
    %p383 = scmp.ne.s32.totalorder %s371, %s372
    %p384 = scmp.eq.s32.totalorder %s30, 3
    %p385 = por %p383, %p384
    %p387 = scmp.ne.s32.totalorder %s372, %s386
    %p388 = scmp.eq.s32.totalorder %s30, 0
    %p389 = por %p387, %p388
    %s391 = sadd.s32 %s390, 1
    %p394 = scmp.eq.s32.totalorder %s24, 3
    %p395 = scmp.ne.s32.totalorder %s390, %s392
    %p396 = scmp.eq.s32.totalorder %s24, 0
    %p397 = por %p395, %p396
    %p398 = scmp.ne.s32.totalorder %s390, %s392
    %p399 = scmp.eq.s32.totalorder %s29, 3
    %p400 = por %p398, %p399
    %p401 = scmp.ne.s32.totalorder %s392, %s393
    %p402 = scmp.eq.s32.totalorder %s29, 0
    %p403 = por %p401, %p402
    %p404 = scmp.ne.s32.totalorder %s392, %s393
    %p405 = scmp.eq.s32.totalorder %s30, 3
    %p406 = por %p404, %p405
    %p408 = scmp.ne.s32.totalorder %s393, %s407
    %p409 = scmp.eq.s32.totalorder %s30, 0
    %p410 = por %p408, %p409
    %s412 = sadd.s32 %s411, 1
    %p415 = scmp.eq.s32.totalorder %s24, 3
    %p416 = scmp.ne.s32.totalorder %s411, %s413
    %p417 = scmp.eq.s32.totalorder %s24, 0
    %p418 = por %p416, %p417
    %p419 = scmp.ne.s32.totalorder %s411, %s413
    %p420 = scmp.eq.s32.totalorder %s29, 3
    %p421 = por %p419, %p420
    %p422 = scmp.ne.s32.totalorder %s413, %s414
    %p423 = scmp.eq.s32.totalorder %s29, 0
    %p424 = por %p422, %p423
    %p425 = scmp.ne.s32.totalorder %s413, %s414
    %p426 = scmp.eq.s32.totalorder %s30, 3
    %p427 = por %p425, %p426
    %p429 = scmp.ne.s32.totalorder %s414, %s428
    %p430 = scmp.eq.s32.totalorder %s30, 0
    %p431 = por %p429, %p430
    %s432 = ssub.s32 %s31, %s43
    %p433 = scmp.eq.s32.totalorder %s432, 0
    %s435 = sadd.s32 %s434, 1
    %s436 = scalar_select %p433, %s434, %s435
    %p439 = pneg %p433
    %p440 = scmp.eq.s32.totalorder %s24, 3
    %p441 = por %p439, %p440
    %p442 = scmp.ne.s32.totalorder %s434, %s437
    %p443 = scmp.eq.s32.totalorder %s24, 0
    %p444 = por %p442, %p443
    %p445 = scmp.ne.s32.totalorder %s434, %s437
    %p446 = scmp.eq.s32.totalorder %s29, 3
    %p447 = por %p445, %p446
    %p448 = scmp.ne.s32.totalorder %s437, %s438
    %p449 = scmp.eq.s32.totalorder %s29, 0
    %p450 = por %p448, %p449
    %p451 = scmp.ne.s32.totalorder %s437, %s438
    %p452 = scmp.eq.s32.totalorder %s30, 3
    %p453 = por %p451, %p452
    %p455 = scmp.ne.s32.totalorder %s438, %s454
    %p456 = scmp.eq.s32.totalorder %s30, 0
    %p457 = por %p455, %p456
    %p458 = scmp.le.s32.totalorder 1, %s24
    %p459 = scmp.lt.s32.totalorder %s24, 5
    %p460 = pnand %p458, %p459
    %p461 = pneg %p460
    // Predicated region
    $region9: #{forward.1} parent=5 // pred_check
      _
    $region10: #{forward.1} parent=5 // pred_check_branch
      %463 = sbr.rel (%p460) target = $region12
    $region11: #{forward.1} parent=5 // pred_region
      %s464 = ssub.s32 %s24, 1
      // Predicated region
      $region13: #{forward.1} parent=11 // pred_check
        %p465 = pneg %p109
      $region14: #{forward.1} parent=11 // pred_check_branch
        %467 = sbr.rel (%p465) target = $region16
      $region15: #{forward.1} parent=11 // pred_region
        _
      $region16: #{forward.1} parent=11 // pred_fallthru
        _
      // Predicated region
      $region17: #{forward.1} parent=11 // pred_check
        %p468 = pneg %p130
      $region18: #{forward.1} parent=11 // pred_check_branch
        %470 = sbr.rel (%p468) target = $region20
      $region19: #{forward.1} parent=11 // pred_region
        _
      $region20: #{forward.1} parent=11 // pred_fallthru
        _
      // Predicated region
      $region21: #{forward.1} parent=11 // pred_check
        %p471 = pneg %p151
      $region22: #{forward.1} parent=11 // pred_check_branch
        %473 = sbr.rel (%p471) target = $region24
      $region23: #{forward.1} parent=11 // pred_region
        _
      $region24: #{forward.1} parent=11 // pred_fallthru
        _
      // Predicated region
      $region25: #{forward.1} parent=11 // pred_check
        %p474 = pneg %p172
      $region26: #{forward.1} parent=11 // pred_check_branch
        %476 = sbr.rel (%p474) target = $region28
      $region27: #{forward.1} parent=11 // pred_region
        _
      $region28: #{forward.1} parent=11 // pred_fallthru
        _
      // Predicated region
      $region29: #{forward.1} parent=11 // pred_check
        %p477 = pneg %p193
      $region30: #{forward.1} parent=11 // pred_check_branch
        %479 = sbr.rel (%p477) target = $region32
      $region31: #{forward.1} parent=11 // pred_region
        _
      $region32: #{forward.1} parent=11 // pred_fallthru
        _
      // Predicated region
      $region33: #{forward.1} parent=11 // pred_check
        %p480 = pneg %p214
      $region34: #{forward.1} parent=11 // pred_check_branch
        %482 = sbr.rel (%p480) target = $region36
      $region35: #{forward.1} parent=11 // pred_region
        _
      $region36: #{forward.1} parent=11 // pred_fallthru
        _
      // Predicated region
      $region37: #{forward.1} parent=11 // pred_check
        %p483 = pneg %p235
      $region38: #{forward.1} parent=11 // pred_check_branch
        %485 = sbr.rel (%p483) target = $region40
      $region39: #{forward.1} parent=11 // pred_region
        _
      $region40: #{forward.1} parent=11 // pred_fallthru
        _
      // Predicated region
      $region41: #{forward.1} parent=11 // pred_check
        %p486 = pneg %p256
      $region42: #{forward.1} parent=11 // pred_check_branch
        %488 = sbr.rel (%p486) target = $region44
      $region43: #{forward.1} parent=11 // pred_region
        _
      $region44: #{forward.1} parent=11 // pred_fallthru
        _
      // Predicated region
      $region45: #{forward.1} parent=11 // pred_check
        %p489 = pneg %p277
      $region46: #{forward.1} parent=11 // pred_check_branch
        %491 = sbr.rel (%p489) target = $region48
      $region47: #{forward.1} parent=11 // pred_region
        _
      $region48: #{forward.1} parent=11 // pred_fallthru
        _
      // Predicated region
      $region49: #{forward.1} parent=11 // pred_check
        %p492 = pneg %p298
      $region50: #{forward.1} parent=11 // pred_check_branch
        %494 = sbr.rel (%p492) target = $region52
      $region51: #{forward.1} parent=11 // pred_region
        _
      $region52: #{forward.1} parent=11 // pred_fallthru
        _
      // Predicated region
      $region53: #{forward.1} parent=11 // pred_check
        %p495 = pneg %p319
      $region54: #{forward.1} parent=11 // pred_check_branch
        %497 = sbr.rel (%p495) target = $region56
      $region55: #{forward.1} parent=11 // pred_region
        _
      $region56: #{forward.1} parent=11 // pred_fallthru
        _
      // Predicated region
      $region57: #{forward.1} parent=11 // pred_check
        %p498 = pneg %p340
      $region58: #{forward.1} parent=11 // pred_check_branch
        %500 = sbr.rel (%p498) target = $region60
      $region59: #{forward.1} parent=11 // pred_region
        _
      $region60: #{forward.1} parent=11 // pred_fallthru
        _
      // Predicated region
      $region61: #{forward.1} parent=11 // pred_check
        %p501 = pneg %p361
      $region62: #{forward.1} parent=11 // pred_check_branch
        %503 = sbr.rel (%p501) target = $region64
      $region63: #{forward.1} parent=11 // pred_region
        _
      $region64: #{forward.1} parent=11 // pred_fallthru
        _
      // Predicated region
      $region65: #{forward.1} parent=11 // pred_check
        %p504 = pneg %p382
      $region66: #{forward.1} parent=11 // pred_check_branch
        %506 = sbr.rel (%p504) target = $region68
      $region67: #{forward.1} parent=11 // pred_region
        _
      $region68: #{forward.1} parent=11 // pred_fallthru
        _
      // Predicated region
      $region69: #{forward.1} parent=11 // pred_check
        %p507 = pneg %p403
      $region70: #{forward.1} parent=11 // pred_check_branch
        %509 = sbr.rel (%p507) target = $region72
      $region71: #{forward.1} parent=11 // pred_region
        _
      $region72: #{forward.1} parent=11 // pred_fallthru
        _
      // Predicated region
      $region73: #{forward.1} parent=11 // pred_check
        %p510 = pneg %p424
      $region74: #{forward.1} parent=11 // pred_check_branch
        %512 = sbr.rel (%p510) target = $region76
      $region75: #{forward.1} parent=11 // pred_region
        _
      $region76: #{forward.1} parent=11 // pred_fallthru
        _
    $region12: #{forward.1} parent=5 // pred_fallthru
      _
    %p513 = scmp.lt.s32.totalorder %s24, 4
    // Predicated region
    $region77: #{forward.1} parent=5 // pred_check
      %p514 = pneg %p513
    $region78: #{forward.1} parent=5 // pred_check_branch
      %516 = sbr.rel (%p514) target = $region80
    $region79: #{forward.1} parent=5 // pred_region
      // Predicated region
      $region81: #{forward.1} parent=79 // pred_check
        %p517 = pneg %p56
      $region82: #{forward.1} parent=79 // pred_check_branch
        %519 = sbr.rel (%p517) target = $region84
      $region83: #{forward.1} parent=79 // pred_region
        %p520 = scmp.lt.s32.totalorder %s31, 1
        %s521 = scalar_select %p520, %s31, 1
        %s522 = smul.addr %s521, 4
        %s523 = scalar_lea.vmem %s0, %s522
      $region84: #{forward.1} parent=79 // pred_fallthru
        _
      // Predicated region
      $region85: #{forward.1} parent=79 // pred_check
        %p524 = pneg %p82
      $region86: #{forward.1} parent=79 // pred_check_branch
        %526 = sbr.rel (%p524) target = $region88
      $region87: #{forward.1} parent=79 // pred_region
        %p527 = scmp.lt.s32.totalorder %s31, 1
        %s528 = scalar_select %p527, %s31, 1
        %s529 = scalar_lea.vmem %s1, %s528
      $region88: #{forward.1} parent=79 // pred_fallthru
        _
    $region80: #{forward.1} parent=5 // pred_fallthru
      _
    %p530 = scmp.le.s32.totalorder 1, %s24
    %p531 = scmp.lt.s32.totalorder %s24, 5
    %p532 = pnand %p530, %p531
    %p533 = pneg %p532
    // Predicated region
    $region89: #{forward.1} parent=5 // pred_check
      _
    $region90: #{forward.1} parent=5 // pred_check_branch
      %535 = sbr.rel (%p532) target = $region92
    $region91: #{forward.1} parent=5 // pred_region
      %s536 = ssub.s32 %s24, 1
      %p537 = scmp.lt.s32.totalorder %s33, 1
      %s538 = scalar_select %p537, %s33, 1
      %s539 = smul.addr %s538, 4
      %s540 = scalar_lea.vmem %s0, %s539
      %p541 = pneg %p62
      %p542 = pneg %p59
      %p543 = scmp.lt.s32.totalorder %s33, 1
      %s544 = scalar_select %p543, %s33, 1
      %s545 = scalar_lea.vmem %s1, %s544
      %p546 = pneg %p88
      %p547 = pneg %p85
      %p548 = pneg %p109
      %p549 = pneg %p106
      %p550 = pneg %p130
      %p551 = pneg %p127
      %p552 = pneg %p151
      %p553 = pneg %p148
      %p554 = pneg %p172
      %p555 = pneg %p169
      %p556 = pneg %p193
      %p557 = pneg %p190
      %p558 = pneg %p214
      %p559 = pneg %p211
      %p560 = pneg %p235
      %p561 = pneg %p232
      %p562 = pneg %p256
      %p563 = pneg %p253
      %p564 = pneg %p277
      %p565 = pneg %p274
      %p566 = pneg %p298
      %p567 = pneg %p295
      %p568 = pneg %p319
      %p569 = pneg %p316
      %p570 = pneg %p340
      %p571 = pneg %p337
      %p572 = pneg %p361
      %p573 = pneg %p358
      %p574 = pneg %p382
      %p575 = pneg %p379
      %p576 = pneg %p403
      %p577 = pneg %p400
      %p578 = pneg %p424
      %p579 = pneg %p421
      %p580 = pneg %p450
      %p581 = pneg %p447
      %p582 = scmp.lt.s32.totalorder %s33, 1
      %s583 = scalar_select %p582, %s33, 1
      %s584 = smul.addr %s583, 8
      %s585 = scalar_lea.vmem %s18, %s584
      %p586 = scmp.lt.s32.totalorder %s33, 1
      %s587 = scalar_select %p586, %s33, 1
      %s588 = smul.addr %s587, 4
      %s589 = scalar_lea.vmem %s0, %s588
      %p590 = scmp.lt.s32.totalorder %s33, 1
      %s591 = scalar_select %p590, %s33, 1
      %s592 = scalar_lea.vmem %s1, %s591
      %p593 = scmp.lt.s32.totalorder %s33, 1
      %s594 = scalar_select %p593, %s33, 1
      %s595 = smul.addr %s594, 8
      %s596 = scalar_lea.vmem %s18, %s595
      %p598 = scmp.eq.s32.totalorder %s34, 0
      // Predicated region
      $region93: #{forward.1} parent=91 // pred_check
        %p599 = pneg %p598
      $region94: #{forward.1} parent=91 // pred_check_branch
        %601 = sbr.rel (%p599) target = $region96
      $region95: #{forward.1} parent=91 // pred_region
        %v602 = vld [vmem:[%s589] sm:$0xf]
        %v603 = vunpack.c.l.bf16 %v602
        %vm604 = vcmask 523264
        %605 = vst.msk [vmem:[#allocation2] sm:$0xff] %vm604, %v603
      $region96: #{forward.1} parent=91 // pred_fallthru
        _
      %v606 = vld [vmem:[#allocation2] sm:$0xff]
      %v607 = vpack.c.bf16 %v606, %v606
      %s608 = smul.u32 %s34, 16
      %s609 = smul.addr %s608, 4
      %s610 = scalar_lea.vmem %s2, %s609
      %v611 = vld [vmem:[%s610] sm:$0xff]
      %v612 = vld [vmem:[%s610 + $0x8] sm:$0xff]
      %v613 = vld [vmem:[%s610 + $0x10] sm:$0xff]
      %v614 = vld [vmem:[%s610 + $0x18] sm:$0xff]
      %v615 = vld [vmem:[%s610 + $0x20] sm:$0xff]
      %v616 = vld [vmem:[%s610 + $0x28] sm:$0xff]
      %v617 = vld [vmem:[%s610 + $0x30] sm:$0xff]
      %v618 = vld [vmem:[%s610 + $0x38] sm:$0xff]
      %s619 = smul.u32 %s34, 2
      %s620 = scalar_lea.vmem %s3, %s619
      %v621 = vld [vmem:[%s620] sm:$0x3]
      %v623 = vlaneseq
      %v624 = vshrl.u32 %v623, 7
      %v625 = vsub.s32 0, %v624
      %v626 = vrot.slane %v621, %v625
      %v627 = vlaneseq
      %v628 = vshrl.u32 %v627, 7
      %v629 = vsub.s32 1, %v628
      %v630 = vrot.slane %v621, %v629
      %v641 = vunpack.c.l.b16 %v611
      %v642 = vunpack.c.h.b16 %v611
      %v643 = vunpack.c.l.b16 %v612
      %v644 = vunpack.c.h.b16 %v612
      %v645 = vunpack.c.l.b16 %v613
      %v646 = vunpack.c.h.b16 %v613
      %v647 = vunpack.c.l.b16 %v614
      %v648 = vunpack.c.h.b16 %v614
      %v649 = vunpack.c.l.b16 %v615
      %v650 = vunpack.c.h.b16 %v615
      %v651 = vunpack.c.l.b16 %v616
      %v652 = vunpack.c.h.b16 %v616
      %v653 = vunpack.c.l.b16 %v617
      %v654 = vunpack.c.h.b16 %v617
      %v655 = vunpack.c.l.b16 %v618
      %v656 = vunpack.c.h.b16 %v618
      %v657 = vpack.c.b16 %v643, %v641
      %v658 = vpack.c.b16 %v644, %v642
      %v659 = vpack.c.b16 %v647, %v645
      %v660 = vpack.c.b16 %v648, %v646
      %v661 = vpack.c.b16 %v651, %v649
      %v662 = vpack.c.b16 %v652, %v650
      %v663 = vpack.c.b16 %v655, %v653
      %v664 = vpack.c.b16 %v656, %v654
      %vm673 = vcmask 523264
      %v675 = vsel %vm673, %v607, 0
      %677 = vmatprep.subr.bf16.mxu0 0
      %678 = vmatpush1.bf16.msra.mxu0 0
      %679 = vmatprep.subr.bf16.mxu0 0
      %680 = vmatpush1.bf16.msra.mxu0 0
      %681 = vmatprep.subr.bf16.mxu0 0
      %682 = vmatpush1.bf16.msra.mxu0 0
      %683 = vmatprep.subr.bf16.mxu0 0
      %684 = vmatpush1.bf16.msra.mxu0 0
      %685 = vmatprep.subr.bf16.mxu0 %v664
      %686 = vmatpush1.bf16.msra.mxu0 %v663
      %687 = vmatprep.subr.bf16.mxu0 %v662
      %688 = vmatpush1.bf16.msra.mxu0 %v661
      %689 = vmatprep.subr.bf16.mxu0 %v660
      %690 = vmatpush1.bf16.msra.mxu0 %v659
      %691 = vmatprep.subr.bf16.mxu0 %v658
      %692 = vmatpush1.bf16.msra.mxu0 %v657
      %693 = vmatprep.subr.bf16.mxu0 0
      %694 = vmatpush2.bf16.msra.mxu0 0
      %695 = vmatprep.subr.bf16.mxu0 0
      %696 = vmatpush2.bf16.msra.mxu0 0
      %697 = vmatprep.subr.bf16.mxu0 0
      %698 = vmatpush2.bf16.msra.mxu0 0
      %699 = vmatprep.subr.bf16.mxu0 0
      %700 = vmatpush2.bf16.msra.mxu0 0
      %701 = vmatprep.subr.bf16.mxu0 0
      %702 = vmatpush2.bf16.msra.mxu0 0
      %703 = vmatprep.subr.bf16.mxu0 0
      %704 = vmatpush2.bf16.msra.mxu0 0
      %705 = vmatprep.subr.bf16.mxu0 0
      %706 = vmatpush2.bf16.msra.mxu0 0
      %707 = vmatprep.subr.bf16.mxu0 0
      %708 = vmatpush2.bf16.msra.mxu0 0
      %709 = vmatprep.mubr.bf16.mxu0 0
      %710 = vmatmul.mubr.bf16.gmra.mxu0 %v675
      %v711 = vpop.f32.mrf.mxu0
      %v712 = vadd.f32 %v626, %v711
      %v713 = vpop.f32.mrf.mxu0
      %v714 = vadd.f32 %v630, %v713
      %v715 = vpop.f32.mrf.mxu0
      %v716 = vpop.f32.mrf.mxu0
      %717 = vdwg.mxu0
      %v718 = vld [vmem:[%s592] sm:$0x1]
      %v719 = vlaneseq
      %v720 = vshrl.u32 %v719, 7
      %v721 = vlaneseq
      %v722 = vand.u32 %v721, 127
      %vm723 = vcmp.le.s32.totalorder %v722, %v720
      %v724 = vmul.f32 %v712, 0.25
      %v725 = vpack.c.bf16 %v724, %v724
      %v726 = vpack.c.bf16 %v712, %v712
      %v728 = vlaneseq
      %v729 = vshrl.u32 %v728, 7
      %v730 = vsub.s32 0, %v729
      %v731 = vrot.slane %v718, %v730
      %734 = vrot.lane.b32.xlu0 %v726, 64
      %v735 = vpop.permute.xlu0 %734
      %vm736 = vcmask 130048
      %v738 = vsel %vm736, %v725, 0
      %v741 = vsel %vm736, %v735, 0
      %743 = vmatprep.subr.bf16.mxu0 0
      %744 = vmatpush1.bf16.xpose.msra.mxu0 0
      %745 = vmatprep.subr.bf16.mxu0 0
      %746 = vmatpush1.bf16.xpose.msra.mxu0 0
      %747 = vmatprep.subr.bf16.mxu0 0
      %748 = vmatpush1.bf16.xpose.msra.mxu0 0
      %749 = vmatprep.subr.bf16.mxu0 0
      %750 = vmatpush1.bf16.xpose.msra.mxu0 0
      %751 = vmatprep.subr.bf16.mxu0 0
      %752 = vmatpush1.bf16.xpose.msra.mxu0 0
      %753 = vmatprep.subr.bf16.mxu0 0
      %754 = vmatpush1.bf16.xpose.msra.mxu0 0
      %755 = vmatprep.subr.bf16.mxu0 0
      %756 = vmatpush1.bf16.xpose.msra.mxu0 0
      %757 = vmatprep.subr.bf16.mxu0 0
      %758 = vmatpush1.bf16.xpose.msra.mxu0 %v741
      %759 = vmatprep.subr.bf16.mxu0 0
      %760 = vmatpush2.bf16.xpose.msra.mxu0 0
      %761 = vmatprep.subr.bf16.mxu0 0
      %762 = vmatpush2.bf16.xpose.msra.mxu0 0
      %763 = vmatprep.subr.bf16.mxu0 0
      %764 = vmatpush2.bf16.xpose.msra.mxu0 0
      %765 = vmatprep.subr.bf16.mxu0 0
      %766 = vmatpush2.bf16.xpose.msra.mxu0 0
      %767 = vmatprep.subr.bf16.mxu0 0
      %768 = vmatpush2.bf16.xpose.msra.mxu0 0
      %769 = vmatprep.subr.bf16.mxu0 0
      %770 = vmatpush2.bf16.xpose.msra.mxu0 0
      %771 = vmatprep.subr.bf16.mxu0 0
      %772 = vmatpush2.bf16.xpose.msra.mxu0 0
      %773 = vmatprep.subr.bf16.mxu0 0
      %774 = vmatpush2.bf16.xpose.msra.mxu0 0
      %775 = vmatprep.mubr.bf16.mxu0 0
      %776 = vmatmul.mubr.bf16.gmra.mxu0 %v738
      %v777 = vpop.f32.mrf.mxu0
      %v778 = vadd.f32 %v731, %v777
      %v779 = vpop.f32.mrf.mxu0
      %v780 = vpop.f32.mrf.mxu0
      %v781 = vpop.f32.mrf.mxu0
      %782 = vdwg.mxu0
      %v783 = vsel %vm723, %v778, -1e+30
      %vm784 = vcmask 64512
      %v785 = vsel %vm784, %v783, -inf
      %786 = vmax.xlane.f32.xlu0 %v785
      %v787 = vpop.xlane.xlu0 %786
      %v788 = vsub.f32 %v783, %v787
      %v789 = vmul.f32 %v788, 1.442695
      %v790 = vpow.pop %v789
      %v791 = vsel %vm784, %v790, 0.0
      %792 = vadd.xlane.f32.xlu0 %v791
      %v793 = vpop.xlane.xlu0 %792
      %v794 = vrcp.pop %v793
      %v795 = vmul.f32 %v790, %v794
      %v796 = vpack.c.bf16 %v795, %v795
      %v797 = vpack.c.bf16 %v714, %v714
      %v799 = vsel %vm784, %v796, 0
      %vm801 = vcmask 1043456
      %v803 = vsel %vm801, %v797, 0
      %805 = vmatprep.subr.bf16.mxu0 0
      %806 = vmatpush1.bf16.msra.mxu0 0
      %807 = vmatprep.subr.bf16.mxu0 0
      %808 = vmatpush1.bf16.msra.mxu0 0
      %809 = vmatprep.subr.bf16.mxu0 0
      %810 = vmatpush1.bf16.msra.mxu0 0
      %811 = vmatprep.subr.bf16.mxu0 0
      %812 = vmatpush1.bf16.msra.mxu0 0
      %813 = vmatprep.subr.bf16.mxu0 0
      %814 = vmatpush1.bf16.msra.mxu0 0
      %815 = vmatprep.subr.bf16.mxu0 0
      %816 = vmatpush1.bf16.msra.mxu0 0
      %817 = vmatprep.subr.bf16.mxu0 0
      %818 = vmatpush1.bf16.msra.mxu0 0
      %819 = vmatprep.subr.bf16.mxu0 0
      %820 = vmatpush1.bf16.msra.mxu0 %v803
      %821 = vmatprep.subr.bf16.mxu0 0
      %822 = vmatpush2.bf16.msra.mxu0 0
      %823 = vmatprep.subr.bf16.mxu0 0
      %824 = vmatpush2.bf16.msra.mxu0 0
      %825 = vmatprep.subr.bf16.mxu0 0
      %826 = vmatpush2.bf16.msra.mxu0 0
      %827 = vmatprep.subr.bf16.mxu0 0
      %828 = vmatpush2.bf16.msra.mxu0 0
      %829 = vmatprep.subr.bf16.mxu0 0
      %830 = vmatpush2.bf16.msra.mxu0 0
      %831 = vmatprep.subr.bf16.mxu0 0
      %832 = vmatpush2.bf16.msra.mxu0 0
      %833 = vmatprep.subr.bf16.mxu0 0
      %834 = vmatpush2.bf16.msra.mxu0 0
      %835 = vmatprep.subr.bf16.mxu0 0
      %836 = vmatpush2.bf16.msra.mxu0 0
      %837 = vmatprep.mubr.bf16.mxu0 0
      %838 = vmatmul.mubr.bf16.gmra.mxu0 %v799
      %v839 = vpop.f32.mrf.mxu0
      %v840 = vadd.f32 0.0, %v839
      %v841 = vpop.f32.mrf.mxu0
      %v842 = vpop.f32.mrf.mxu0
      %v843 = vpop.f32.mrf.mxu0
      %844 = vdwg.mxu0
      %846 = vrot.lane.b32.xlu0 %v725, 112
      %v847 = vpop.permute.xlu0 %846
      %848 = vrot.lane.b32.xlu0 %v726, 48
      %v849 = vpop.permute.xlu0 %848
      %v851 = vsel %vm736, %v847, 0
      %v854 = vsel %vm736, %v849, 0
      %856 = vmatprep.subr.bf16.mxu0 0
      %857 = vmatpush1.bf16.xpose.msra.mxu0 0
      %858 = vmatprep.subr.bf16.mxu0 0
      %859 = vmatpush1.bf16.xpose.msra.mxu0 0
      %860 = vmatprep.subr.bf16.mxu0 0
      %861 = vmatpush1.bf16.xpose.msra.mxu0 0
      %862 = vmatprep.subr.bf16.mxu0 0
      %863 = vmatpush1.bf16.xpose.msra.mxu0 0
      %864 = vmatprep.subr.bf16.mxu0 0
      %865 = vmatpush1.bf16.xpose.msra.mxu0 0
      %866 = vmatprep.subr.bf16.mxu0 0
      %867 = vmatpush1.bf16.xpose.msra.mxu0 0
      %868 = vmatprep.subr.bf16.mxu0 0
      %869 = vmatpush1.bf16.xpose.msra.mxu0 0
      %870 = vmatprep.subr.bf16.mxu0 0
      %871 = vmatpush1.bf16.xpose.msra.mxu0 %v854
      %872 = vmatprep.subr.bf16.mxu0 0
      %873 = vmatpush2.bf16.xpose.msra.mxu0 0
      %874 = vmatprep.subr.bf16.mxu0 0
      %875 = vmatpush2.bf16.xpose.msra.mxu0 0
      %876 = vmatprep.subr.bf16.mxu0 0
      %877 = vmatpush2.bf16.xpose.msra.mxu0 0
      %878 = vmatprep.subr.bf16.mxu0 0
      %879 = vmatpush2.bf16.xpose.msra.mxu0 0
      %880 = vmatprep.subr.bf16.mxu0 0
      %881 = vmatpush2.bf16.xpose.msra.mxu0 0
      %882 = vmatprep.subr.bf16.mxu0 0
      %883 = vmatpush2.bf16.xpose.msra.mxu0 0
      %884 = vmatprep.subr.bf16.mxu0 0
      %885 = vmatpush2.bf16.xpose.msra.mxu0 0
      %886 = vmatprep.subr.bf16.mxu0 0
      %887 = vmatpush2.bf16.xpose.msra.mxu0 0
      %888 = vmatprep.mubr.bf16.mxu0 0
      %889 = vmatmul.mubr.bf16.gmra.mxu0 %v851
      %v890 = vpop.f32.mrf.mxu0
      %v891 = vadd.f32 %v731, %v890
      %v892 = vpop.f32.mrf.mxu0
      %v893 = vpop.f32.mrf.mxu0
      %v894 = vpop.f32.mrf.mxu0
      %895 = vdwg.mxu0
      %v896 = vsel %vm723, %v891, -1e+30
      %v897 = vsel %vm784, %v896, -inf
      %898 = vmax.xlane.f32.xlu0 %v897
      %v899 = vpop.xlane.xlu0 %898
      %v900 = vsub.f32 %v896, %v899
      %v901 = vmul.f32 %v900, 1.442695
      %v902 = vpow.pop %v901
      %v903 = vsel %vm784, %v902, 0.0
      %904 = vadd.xlane.f32.xlu0 %v903
      %v905 = vpop.xlane.xlu0 %904
      %v906 = vrcp.pop %v905
      %v907 = vmul.f32 %v902, %v906
      %v908 = vpack.c.bf16 %v907, %v907
      %910 = vrot.lane.b32.xlu0 %v797, 112
      %v911 = vpop.permute.xlu0 %910
      %v913 = vsel %vm784, %v908, 0
      %v916 = vsel %vm801, %v911, 0
      %918 = vmatprep.subr.bf16.mxu0 0
      %919 = vmatpush1.bf16.msra.mxu0 0
      %920 = vmatprep.subr.bf16.mxu0 0
      %921 = vmatpush1.bf16.msra.mxu0 0
      %922 = vmatprep.subr.bf16.mxu0 0
      %923 = vmatpush1.bf16.msra.mxu0 0
      %924 = vmatprep.subr.bf16.mxu0 0
      %925 = vmatpush1.bf16.msra.mxu0 0
      %926 = vmatprep.subr.bf16.mxu0 0
      %927 = vmatpush1.bf16.msra.mxu0 0
      %928 = vmatprep.subr.bf16.mxu0 0
      %929 = vmatpush1.bf16.msra.mxu0 0
      %930 = vmatprep.subr.bf16.mxu0 0
      %931 = vmatpush1.bf16.msra.mxu0 0
      %932 = vmatprep.subr.bf16.mxu0 0
      %933 = vmatpush1.bf16.msra.mxu0 %v916
      %934 = vmatprep.subr.bf16.mxu0 0
      %935 = vmatpush2.bf16.msra.mxu0 0
      %936 = vmatprep.subr.bf16.mxu0 0
      %937 = vmatpush2.bf16.msra.mxu0 0
      %938 = vmatprep.subr.bf16.mxu0 0
      %939 = vmatpush2.bf16.msra.mxu0 0
      %940 = vmatprep.subr.bf16.mxu0 0
      %941 = vmatpush2.bf16.msra.mxu0 0
      %942 = vmatprep.subr.bf16.mxu0 0
      %943 = vmatpush2.bf16.msra.mxu0 0
      %944 = vmatprep.subr.bf16.mxu0 0
      %945 = vmatpush2.bf16.msra.mxu0 0
      %946 = vmatprep.subr.bf16.mxu0 0
      %947 = vmatpush2.bf16.msra.mxu0 0
      %948 = vmatprep.subr.bf16.mxu0 0
      %949 = vmatpush2.bf16.msra.mxu0 0
      %950 = vmatprep.mubr.bf16.mxu0 0
      %951 = vmatmul.mubr.bf16.gmra.mxu0 %v913
      %v952 = vpop.f32.mrf.mxu0
      %v953 = vadd.f32 0.0, %v952
      %v954 = vpop.f32.mrf.mxu0
      %v955 = vpop.f32.mrf.mxu0
      %v956 = vpop.f32.mrf.mxu0
      %957 = vdwg.mxu0
      %958 = vrot.lane.b32.xlu0 %v725, 96
      %v959 = vpop.permute.xlu0 %958
      %960 = vrot.lane.b32.xlu0 %v726, 32
      %v961 = vpop.permute.xlu0 %960
      %v963 = vsel %vm736, %v959, 0
      %v966 = vsel %vm736, %v961, 0
      %968 = vmatprep.subr.bf16.mxu0 0
      %969 = vmatpush1.bf16.xpose.msra.mxu0 0
      %970 = vmatprep.subr.bf16.mxu0 0
      %971 = vmatpush1.bf16.xpose.msra.mxu0 0
      %972 = vmatprep.subr.bf16.mxu0 0
      %973 = vmatpush1.bf16.xpose.msra.mxu0 0
      %974 = vmatprep.subr.bf16.mxu0 0
      %975 = vmatpush1.bf16.xpose.msra.mxu0 0
      %976 = vmatprep.subr.bf16.mxu0 0
      %977 = vmatpush1.bf16.xpose.msra.mxu0 0
      %978 = vmatprep.subr.bf16.mxu0 0
      %979 = vmatpush1.bf16.xpose.msra.mxu0 0
      %980 = vmatprep.subr.bf16.mxu0 0
      %981 = vmatpush1.bf16.xpose.msra.mxu0 0
      %982 = vmatprep.subr.bf16.mxu0 0
      %983 = vmatpush1.bf16.xpose.msra.mxu0 %v966
      %984 = vmatprep.subr.bf16.mxu0 0
      %985 = vmatpush2.bf16.xpose.msra.mxu0 0
      %986 = vmatprep.subr.bf16.mxu0 0
      %987 = vmatpush2.bf16.xpose.msra.mxu0 0
      %988 = vmatprep.subr.bf16.mxu0 0
      %989 = vmatpush2.bf16.xpose.msra.mxu0 0
      %990 = vmatprep.subr.bf16.mxu0 0
      %991 = vmatpush2.bf16.xpose.msra.mxu0 0
      %992 = vmatprep.subr.bf16.mxu0 0
      %993 = vmatpush2.bf16.xpose.msra.mxu0 0
      %994 = vmatprep.subr.bf16.mxu0 0
      %995 = vmatpush2.bf16.xpose.msra.mxu0 0
      %996 = vmatprep.subr.bf16.mxu0 0
      %997 = vmatpush2.bf16.xpose.msra.mxu0 0
      %998 = vmatprep.subr.bf16.mxu0 0
      %999 = vmatpush2.bf16.xpose.msra.mxu0 0
      %1000 = vmatprep.mubr.bf16.mxu0 0
      %1001 = vmatmul.mubr.bf16.gmra.mxu0 %v963
      %v1002 = vpop.f32.mrf.mxu0
      %v1003 = vadd.f32 %v731, %v1002
      %v1004 = vpop.f32.mrf.mxu0
      %v1005 = vpop.f32.mrf.mxu0
      %v1006 = vpop.f32.mrf.mxu0
      %1007 = vdwg.mxu0
      %v1008 = vsel %vm723, %v1003, -1e+30
      %v1009 = vsel %vm784, %v1008, -inf
      %1010 = vmax.xlane.f32.xlu0 %v1009
      %v1011 = vpop.xlane.xlu0 %1010
      %v1012 = vsub.f32 %v1008, %v1011
      %v1013 = vmul.f32 %v1012, 1.442695
      %v1014 = vpow.pop %v1013
      %v1015 = vsel %vm784, %v1014, 0.0
      %1016 = vadd.xlane.f32.xlu0 %v1015
      %v1017 = vpop.xlane.xlu0 %1016
      %v1018 = vrcp.pop %v1017
      %v1019 = vmul.f32 %v1014, %v1018
      %v1020 = vpack.c.bf16 %v1019, %v1019
      %1021 = vrot.lane.b32.xlu0 %v797, 96
      %v1022 = vpop.permute.xlu0 %1021
      %v1024 = vsel %vm784, %v1020, 0
      %v1027 = vsel %vm801, %v1022, 0
      %1029 = vmatprep.subr.bf16.mxu0 0
      %1030 = vmatpush1.bf16.msra.mxu0 0
      %1031 = vmatprep.subr.bf16.mxu0 0
      %1032 = vmatpush1.bf16.msra.mxu0 0
      %1033 = vmatprep.subr.bf16.mxu0 0
      %1034 = vmatpush1.bf16.msra.mxu0 0
      %1035 = vmatprep.subr.bf16.mxu0 0
      %1036 = vmatpush1.bf16.msra.mxu0 0
      %1037 = vmatprep.subr.bf16.mxu0 0
      %1038 = vmatpush1.bf16.msra.mxu0 0
      %1039 = vmatprep.subr.bf16.mxu0 0
      %1040 = vmatpush1.bf16.msra.mxu0 0
      %1041 = vmatprep.subr.bf16.mxu0 0
      %1042 = vmatpush1.bf16.msra.mxu0 0
      %1043 = vmatprep.subr.bf16.mxu0 0
      %1044 = vmatpush1.bf16.msra.mxu0 %v1027
      %1045 = vmatprep.subr.bf16.mxu0 0
      %1046 = vmatpush2.bf16.msra.mxu0 0
      %1047 = vmatprep.subr.bf16.mxu0 0
      %1048 = vmatpush2.bf16.msra.mxu0 0
      %1049 = vmatprep.subr.bf16.mxu0 0
      %1050 = vmatpush2.bf16.msra.mxu0 0
      %1051 = vmatprep.subr.bf16.mxu0 0
      %1052 = vmatpush2.bf16.msra.mxu0 0
      %1053 = vmatprep.subr.bf16.mxu0 0
      %1054 = vmatpush2.bf16.msra.mxu0 0
      %1055 = vmatprep.subr.bf16.mxu0 0
      %1056 = vmatpush2.bf16.msra.mxu0 0
      %1057 = vmatprep.subr.bf16.mxu0 0
      %1058 = vmatpush2.bf16.msra.mxu0 0
      %1059 = vmatprep.subr.bf16.mxu0 0
      %1060 = vmatpush2.bf16.msra.mxu0 0
      %1061 = vmatprep.mubr.bf16.mxu0 0
      %1062 = vmatmul.mubr.bf16.gmra.mxu0 %v1024
      %v1063 = vpop.f32.mrf.mxu0
      %v1064 = vadd.f32 0.0, %v1063
      %v1065 = vpop.f32.mrf.mxu0
      %v1066 = vpop.f32.mrf.mxu0
      %v1067 = vpop.f32.mrf.mxu0
      %1068 = vdwg.mxu0
      %1069 = vrot.lane.b32.xlu0 %v725, 80
      %v1070 = vpop.permute.xlu0 %1069
      %1071 = vrot.lane.b32.xlu0 %v726, 16
      %v1072 = vpop.permute.xlu0 %1071
      %v1074 = vsel %vm736, %v1070, 0
      %v1077 = vsel %vm736, %v1072, 0
      %1079 = vmatprep.subr.bf16.mxu0 0
      %1080 = vmatpush1.bf16.xpose.msra.mxu0 0
      %1081 = vmatprep.subr.bf16.mxu0 0
      %1082 = vmatpush1.bf16.xpose.msra.mxu0 0
      %1083 = vmatprep.subr.bf16.mxu0 0
      %1084 = vmatpush1.bf16.xpose.msra.mxu0 0
      %1085 = vmatprep.subr.bf16.mxu0 0
      %1086 = vmatpush1.bf16.xpose.msra.mxu0 0
      %1087 = vmatprep.subr.bf16.mxu0 0
      %1088 = vmatpush1.bf16.xpose.msra.mxu0 0
      %1089 = vmatprep.subr.bf16.mxu0 0
      %1090 = vmatpush1.bf16.xpose.msra.mxu0 0
      %1091 = vmatprep.subr.bf16.mxu0 0
      %1092 = vmatpush1.bf16.xpose.msra.mxu0 0
      %1093 = vmatprep.subr.bf16.mxu0 0
      %1094 = vmatpush1.bf16.xpose.msra.mxu0 %v1077
      %1095 = vmatprep.subr.bf16.mxu0 0
      %1096 = vmatpush2.bf16.xpose.msra.mxu0 0
      %1097 = vmatprep.subr.bf16.mxu0 0
      %1098 = vmatpush2.bf16.xpose.msra.mxu0 0
      %1099 = vmatprep.subr.bf16.mxu0 0
      %1100 = vmatpush2.bf16.xpose.msra.mxu0 0
      %1101 = vmatprep.subr.bf16.mxu0 0
      %1102 = vmatpush2.bf16.xpose.msra.mxu0 0
      %1103 = vmatprep.subr.bf16.mxu0 0
      %1104 = vmatpush2.bf16.xpose.msra.mxu0 0
      %1105 = vmatprep.subr.bf16.mxu0 0
      %1106 = vmatpush2.bf16.xpose.msra.mxu0 0
      %1107 = vmatprep.subr.bf16.mxu0 0
      %1108 = vmatpush2.bf16.xpose.msra.mxu0 0
      %1109 = vmatprep.subr.bf16.mxu0 0
      %1110 = vmatpush2.bf16.xpose.msra.mxu0 0
      %1111 = vmatprep.mubr.bf16.mxu0 0
      %1112 = vmatmul.mubr.bf16.gmra.mxu0 %v1074
      %v1113 = vpop.f32.mrf.mxu0
      %v1114 = vadd.f32 %v731, %v1113
      %v1115 = vpop.f32.mrf.mxu0
      %v1116 = vpop.f32.mrf.mxu0
      %v1117 = vpop.f32.mrf.mxu0
      %1118 = vdwg.mxu0
      %v1119 = vsel %vm723, %v1114, -1e+30
      %v1120 = vsel %vm784, %v1119, -inf
      %1121 = vmax.xlane.f32.xlu0 %v1120
      %v1122 = vpop.xlane.xlu0 %1121
      %v1123 = vsub.f32 %v1119, %v1122
      %v1124 = vmul.f32 %v1123, 1.442695
      %v1125 = vpow.pop %v1124
      %v1126 = vsel %vm784, %v1125, 0.0
      %1127 = vadd.xlane.f32.xlu0 %v1126
      %v1128 = vpop.xlane.xlu0 %1127
      %v1129 = vrcp.pop %v1128
      %v1130 = vmul.f32 %v1125, %v1129
      %v1131 = vpack.c.bf16 %v1130, %v1130
      %1132 = vrot.lane.b32.xlu0 %v797, 80
      %v1133 = vpop.permute.xlu0 %1132
      %v1135 = vsel %vm784, %v1131, 0
      %v1138 = vsel %vm801, %v1133, 0
      %1140 = vmatprep.subr.bf16.mxu0 0
      %1141 = vmatpush1.bf16.msra.mxu0 0
      %1142 = vmatprep.subr.bf16.mxu0 0
      %1143 = vmatpush1.bf16.msra.mxu0 0
      %1144 = vmatprep.subr.bf16.mxu0 0
      %1145 = vmatpush1.bf16.msra.mxu0 0
      %1146 = vmatprep.subr.bf16.mxu0 0
      %1147 = vmatpush1.bf16.msra.mxu0 0
      %1148 = vmatprep.subr.bf16.mxu0 0
      %1149 = vmatpush1.bf16.msra.mxu0 0
      %1150 = vmatprep.subr.bf16.mxu0 0
      %1151 = vmatpush1.bf16.msra.mxu0 0
      %1152 = vmatprep.subr.bf16.mxu0 0
      %1153 = vmatpush1.bf16.msra.mxu0 0
      %1154 = vmatprep.subr.bf16.mxu0 0
      %1155 = vmatpush1.bf16.msra.mxu0 %v1138
      %1156 = vmatprep.subr.bf16.mxu0 0
      %1157 = vmatpush2.bf16.msra.mxu0 0
      %1158 = vmatprep.subr.bf16.mxu0 0
      %1159 = vmatpush2.bf16.msra.mxu0 0
      %1160 = vmatprep.subr.bf16.mxu0 0
      %1161 = vmatpush2.bf16.msra.mxu0 0
      %1162 = vmatprep.subr.bf16.mxu0 0
      %1163 = vmatpush2.bf16.msra.mxu0 0
      %1164 = vmatprep.subr.bf16.mxu0 0
      %1165 = vmatpush2.bf16.msra.mxu0 0
      %1166 = vmatprep.subr.bf16.mxu0 0
      %1167 = vmatpush2.bf16.msra.mxu0 0
      %1168 = vmatprep.subr.bf16.mxu0 0
      %1169 = vmatpush2.bf16.msra.mxu0 0
      %1170 = vmatprep.subr.bf16.mxu0 0
      %1171 = vmatpush2.bf16.msra.mxu0 0
      %1172 = vmatprep.mubr.bf16.mxu0 0
      %1173 = vmatmul.mubr.bf16.gmra.mxu0 %v1135
      %v1174 = vpop.f32.mrf.mxu0
      %v1175 = vadd.f32 0.0, %v1174
      %v1176 = vpop.f32.mrf.mxu0
      %v1177 = vpop.f32.mrf.mxu0
      %v1178 = vpop.f32.mrf.mxu0
      %1179 = vdwg.mxu0
      %1181 = vrot.lane.b32.xlu0 %v953, 16
      %v1182 = vpop.permute.xlu0 %1181
      %1185 = vrot.lane.b32.xlu0 %v1064, 32
      %v1186 = vpop.permute.xlu0 %1185
      %1189 = vrot.lane.b32.xlu0 %v1175, 48
      %v1190 = vpop.permute.xlu0 %1189
      %v1192 = vsel %vm736, %v840, %v1182
      %vm1193 = vcmask 261120
      %v1194 = vsel %vm1193, %v1192, %v1186
      %vm1195 = vcmask 392192
      %v1196 = vsel %vm1195, %v1194, %v1190
      %v1197 = vpack.c.bf16 %v1196, %v1196
      %s1198 = smul.u32 %s34, 8
      %s1199 = smul.addr %s1198, 4
      %s1200 = scalar_lea.vmem %s4, %s1199
      %v1201 = vld [vmem:[%s1200] sm:$0xf]
      %v1202 = vld [vmem:[%s1200 + $0x4] sm:$0xf]
      %v1203 = vld [vmem:[%s1200 + $0x8] sm:$0xf]
      %v1204 = vld [vmem:[%s1200 + $0xc] sm:$0xf]
      %v1205 = vld [vmem:[%s1200 + $0x10] sm:$0xf]
      %v1206 = vld [vmem:[%s1200 + $0x14] sm:$0xf]
      %v1207 = vld [vmem:[%s1200 + $0x18] sm:$0xf]
      %v1208 = vld [vmem:[%s1200 + $0x1c] sm:$0xf]
      %s1209 = scalar_lea.vmem %s5, %s34
      %v1210 = vld [vmem:[%s1209] sm:$0x1]
      %v1212 = vlaneseq
      %v1213 = vshrl.u32 %v1212, 7
      %v1214 = vsub.s32 0, %v1213
      %v1215 = vrot.slane %v1210, %v1214
      %v1225 = vunpack.c.l.b16 %v1201
      %v1226 = vunpack.c.l.b16 %v1202
      %v1227 = vunpack.c.l.b16 %v1203
      %v1228 = vunpack.c.l.b16 %v1204
      %v1229 = vunpack.c.l.b16 %v1205
      %v1230 = vunpack.c.l.b16 %v1206
      %v1231 = vunpack.c.l.b16 %v1207
      %v1232 = vunpack.c.l.b16 %v1208
      %v1233 = vpack.c.b16 %v1226, %v1225
      %v1234 = vpack.c.b16 %v1228, %v1227
      %v1235 = vpack.c.b16 %v1230, %v1229
      %v1236 = vpack.c.b16 %v1232, %v1231
      %v1242 = vsel %vm673, %v1197, 0
      %1244 = vmatprep.subr.bf16.mxu0 0
      %1245 = vmatpush1.bf16.msra.mxu0 0
      %1246 = vmatprep.subr.bf16.mxu0 0
      %1247 = vmatpush1.bf16.msra.mxu0 0
      %1248 = vmatprep.subr.bf16.mxu0 0
      %1249 = vmatpush1.bf16.msra.mxu0 0
      %1250 = vmatprep.subr.bf16.mxu0 0
      %1251 = vmatpush1.bf16.msra.mxu0 0
      %1252 = vmatprep.subr.bf16.mxu0 0
      %1253 = vmatpush1.bf16.msra.mxu0 %v1236
      %1254 = vmatprep.subr.bf16.mxu0 0
      %1255 = vmatpush1.bf16.msra.mxu0 %v1235
      %1256 = vmatprep.subr.bf16.mxu0 0
      %1257 = vmatpush1.bf16.msra.mxu0 %v1234
      %1258 = vmatprep.subr.bf16.mxu0 0
      %1259 = vmatpush1.bf16.msra.mxu0 %v1233
      %1260 = vmatprep.subr.bf16.mxu0 0
      %1261 = vmatpush2.bf16.msra.mxu0 0
      %1262 = vmatprep.subr.bf16.mxu0 0
      %1263 = vmatpush2.bf16.msra.mxu0 0
      %1264 = vmatprep.subr.bf16.mxu0 0
      %1265 = vmatpush2.bf16.msra.mxu0 0
      %1266 = vmatprep.subr.bf16.mxu0 0
      %1267 = vmatpush2.bf16.msra.mxu0 0
      %1268 = vmatprep.subr.bf16.mxu0 0
      %1269 = vmatpush2.bf16.msra.mxu0 0
      %1270 = vmatprep.subr.bf16.mxu0 0
      %1271 = vmatpush2.bf16.msra.mxu0 0
      %1272 = vmatprep.subr.bf16.mxu0 0
      %1273 = vmatpush2.bf16.msra.mxu0 0
      %1274 = vmatprep.subr.bf16.mxu0 0
      %1275 = vmatpush2.bf16.msra.mxu0 0
      %1276 = vmatprep.mubr.bf16.mxu0 0
      %1277 = vmatmul.mubr.bf16.gmra.mxu0 %v1242
      %v1278 = vpop.f32.mrf.mxu0
      %v1279 = vadd.f32 %v1215, %v1278
      %v1280 = vpop.f32.mrf.mxu0
      %v1281 = vpop.f32.mrf.mxu0
      %v1282 = vpop.f32.mrf.mxu0
      %1283 = vdwg.mxu0
      %v1284 = vadd.f32 %v606, %v1279
      %v1285 = vsel %vm673, %v1284, 0.0
      %1286 = vadd.xlane.f32.xlu0 %v1285
      %v1287 = vpop.xlane.xlu0 %1286
      %v1288 = vrcp.pop 64.0
      %v1289 = vmul.f32 %v1287, %v1288
      %v1290 = vsub.f32 %v1284, %v1289
      %v1291 = vmul.f32 %v1290, %v1290
      %v1292 = vsel %vm673, %v1291, 0.0
      %1293 = vadd.xlane.f32.xlu0 %v1292
      %v1294 = vpop.xlane.xlu0 %1293
      %v1295 = vmul.f32 %v1294, %v1288
      %v1296 = vadd.f32 %v1295, 1e-05
      %v1297 = vrsqrt.pop %v1296
      %v1298 = vmul.f32 %v1290, %v1297
      %s1299 = scalar_lea.vmem %s6, %s34
      %v1300 = vld [vmem:[%s1299] sm:$0x1]
      %v1302 = vlaneseq
      %v1303 = vshrl.u32 %v1302, 7
      %v1304 = vsub.s32 0, %v1303
      %v1305 = vrot.slane %v1300, %v1304
      %v1307 = vmul.f32 %v1298, %v1305
      %s1308 = scalar_lea.vmem %s7, %s34
      %v1309 = vld [vmem:[%s1308] sm:$0x1]
      %v1311 = vlaneseq
      %v1312 = vshrl.u32 %v1311, 7
      %v1313 = vsub.s32 0, %v1312
      %v1314 = vrot.slane %v1309, %v1313
      %v1316 = vadd.f32 %v1307, %v1314
      %v1317 = vpack.c.bf16 %v1316, %v1316
      %s1318 = smul.u32 %s34, 128
      %s1319 = smul.addr %s1318, 4
      %s1320 = scalar_lea.vmem %s8, %s1319
      %v1321 = vld [vmem:[%s1320] sm:$0xff]
      %v1322 = vld [vmem:[%s1320 + $0x8] sm:$0xff]
      %v1323 = vld [vmem:[%s1320 + $0x10] sm:$0xff]
      %v1324 = vld [vmem:[%s1320 + $0x18] sm:$0xff]
      %v1325 = vld [vmem:[%s1320 + $0x20] sm:$0xff]
      %v1326 = vld [vmem:[%s1320 + $0x28] sm:$0xff]
      %v1327 = vld [vmem:[%s1320 + $0x30] sm:$0xff]
      %v1328 = vld [vmem:[%s1320 + $0x38] sm:$0xff]
      %v1329 = vld [vmem:[%s1320 + $0x40] sm:$0xff]
      %v1330 = vld [vmem:[%s1320 + $0x48] sm:$0xff]
      %v1331 = vld [vmem:[%s1320 + $0x50] sm:$0xff]
      %v1332 = vld [vmem:[%s1320 + $0x58] sm:$0xff]
      %v1333 = vld [vmem:[%s1320 + $0x60] sm:$0xff]
      %v1334 = vld [vmem:[%s1320 + $0x68] sm:$0xff]
      %v1335 = vld [vmem:[%s1320 + $0x70] sm:$0xff]
      %v1336 = vld [vmem:[%s1320 + $0x78] sm:$0xff]
      %v1337 = vld [vmem:[%s1320 + $0x80] sm:$0xff]
      %v1338 = vld [vmem:[%s1320 + $0x88] sm:$0xff]
      %v1339 = vld [vmem:[%s1320 + $0x90] sm:$0xff]
      %v1340 = vld [vmem:[%s1320 + $0x98] sm:$0xff]
      %v1341 = vld [vmem:[%s1320 + $0xa0] sm:$0xff]
      %v1342 = vld [vmem:[%s1320 + $0xa8] sm:$0xff]
      %v1343 = vld [vmem:[%s1320 + $0xb0] sm:$0xff]
      %v1344 = vld [vmem:[%s1320 + $0xb8] sm:$0xff]
      %v1345 = vld [vmem:[%s1320 + $0xc0] sm:$0xff]
      %v1346 = vld [vmem:[%s1320 + $0xc8] sm:$0xff]
      %v1347 = vld [vmem:[%s1320 + $0xd0] sm:$0xff]
      %v1348 = vld [vmem:[%s1320 + $0xd8] sm:$0xff]
      %v1349 = vld [vmem:[%s1320 + $0xe0] sm:$0xff]
      %v1350 = vld [vmem:[%s1320 + $0xe8] sm:$0xff]
      %v1351 = vld [vmem:[%s1320 + $0xf0] sm:$0xff]
      %v1352 = vld [vmem:[%s1320 + $0xf8] sm:$0xff]
      %v1353 = vld [vmem:[%s1320 + $0x100] sm:$0xff]
      %v1354 = vld [vmem:[%s1320 + $0x108] sm:$0xff]
      %v1355 = vld [vmem:[%s1320 + $0x110] sm:$0xff]
      %v1356 = vld [vmem:[%s1320 + $0x118] sm:$0xff]
      %v1357 = vld [vmem:[%s1320 + $0x120] sm:$0xff]
      %v1358 = vld [vmem:[%s1320 + $0x128] sm:$0xff]
      %v1359 = vld [vmem:[%s1320 + $0x130] sm:$0xff]
      %v1360 = vld [vmem:[%s1320 + $0x138] sm:$0xff]
      %v1361 = vld [vmem:[%s1320 + $0x140] sm:$0xff]
      %v1362 = vld [vmem:[%s1320 + $0x148] sm:$0xff]
      %v1363 = vld [vmem:[%s1320 + $0x150] sm:$0xff]
      %v1364 = vld [vmem:[%s1320 + $0x158] sm:$0xff]
      %v1365 = vld [vmem:[%s1320 + $0x160] sm:$0xff]
      %v1366 = vld [vmem:[%s1320 + $0x168] sm:$0xff]
      %v1367 = vld [vmem:[%s1320 + $0x170] sm:$0xff]
      %v1368 = vld [vmem:[%s1320 + $0x178] sm:$0xff]
      %v1369 = vld [vmem:[%s1320 + $0x180] sm:$0xff]
      %v1370 = vld [vmem:[%s1320 + $0x188] sm:$0xff]
      %v1371 = vld [vmem:[%s1320 + $0x190] sm:$0xff]
      %v1372 = vld [vmem:[%s1320 + $0x198] sm:$0xff]
      %v1373 = vld [vmem:[%s1320 + $0x1a0] sm:$0xff]
      %v1374 = vld [vmem:[%s1320 + $0x1a8] sm:$0xff]
      %v1375 = vld [vmem:[%s1320 + $0x1b0] sm:$0xff]
      %v1376 = vld [vmem:[%s1320 + $0x1b8] sm:$0xff]
      %v1377 = vld [vmem:[%s1320 + $0x1c0] sm:$0xff]
      %v1378 = vld [vmem:[%s1320 + $0x1c8] sm:$0xff]
      %v1379 = vld [vmem:[%s1320 + $0x1d0] sm:$0xff]
      %v1380 = vld [vmem:[%s1320 + $0x1d8] sm:$0xff]
      %v1381 = vld [vmem:[%s1320 + $0x1e0] sm:$0xff]
      %v1382 = vld [vmem:[%s1320 + $0x1e8] sm:$0xff]
      %v1383 = vld [vmem:[%s1320 + $0x1f0] sm:$0xff]
      %v1384 = vld [vmem:[%s1320 + $0x1f8] sm:$0xff]
      %s1385 = scalar_lea.vmem %s9, %s608
      %v1386 = vld [vmem:[%s1385] sm:$0xff]
      %v1387 = vld [vmem:[%s1385 + $0x8] sm:$0xff]
      %v1390 = vlaneseq
      %v1391 = vshrl.u32 %v1390, 7
      %v1392 = vsub.s32 0, %v1391
      %v1393 = vrot.slane %v1386, %v1392
      %v1394 = vlaneseq
      %v1395 = vshrl.u32 %v1394, 7
      %v1396 = vsub.s32 1, %v1395
      %v1397 = vrot.slane %v1386, %v1396
      %v1398 = vlaneseq
      %v1399 = vshrl.u32 %v1398, 7
      %v1400 = vsub.s32 2, %v1399
      %v1401 = vrot.slane %v1386, %v1400
      %v1402 = vlaneseq
      %v1403 = vshrl.u32 %v1402, 7
      %v1404 = vsub.s32 3, %v1403
      %v1405 = vrot.slane %v1386, %v1404
      %v1406 = vlaneseq
      %v1407 = vshrl.u32 %v1406, 7
      %v1408 = vsub.s32 4, %v1407
      %v1409 = vrot.slane %v1386, %v1408
      %v1410 = vlaneseq
      %v1411 = vshrl.u32 %v1410, 7
      %v1412 = vsub.s32 5, %v1411
      %v1413 = vrot.slane %v1386, %v1412
      %v1414 = vlaneseq
      %v1415 = vshrl.u32 %v1414, 7
      %v1416 = vsub.s32 6, %v1415
      %v1417 = vrot.slane %v1386, %v1416
      %v1418 = vlaneseq
      %v1419 = vshrl.u32 %v1418, 7
      %v1420 = vsub.s32 7, %v1419
      %v1421 = vrot.slane %v1386, %v1420
      %v1422 = vlaneseq
      %v1423 = vshrl.u32 %v1422, 7
      %v1424 = vsub.s32 0, %v1423
      %v1425 = vrot.slane %v1387, %v1424
      %v1426 = vlaneseq
      %v1427 = vshrl.u32 %v1426, 7
      %v1428 = vsub.s32 1, %v1427
      %v1429 = vrot.slane %v1387, %v1428
      %v1430 = vlaneseq
      %v1431 = vshrl.u32 %v1430, 7
      %v1432 = vsub.s32 2, %v1431
      %v1433 = vrot.slane %v1387, %v1432
      %v1434 = vlaneseq
      %v1435 = vshrl.u32 %v1434, 7
      %v1436 = vsub.s32 3, %v1435
      %v1437 = vrot.slane %v1387, %v1436
      %v1438 = vlaneseq
      %v1439 = vshrl.u32 %v1438, 7
      %v1440 = vsub.s32 4, %v1439
      %v1441 = vrot.slane %v1387, %v1440
      %v1442 = vlaneseq
      %v1443 = vshrl.u32 %v1442, 7
      %v1444 = vsub.s32 5, %v1443
      %v1445 = vrot.slane %v1387, %v1444
      %v1446 = vlaneseq
      %v1447 = vshrl.u32 %v1446, 7
      %v1448 = vsub.s32 6, %v1447
      %v1449 = vrot.slane %v1387, %v1448
      %v1450 = vlaneseq
      %v1451 = vshrl.u32 %v1450, 7
      %v1452 = vsub.s32 7, %v1451
      %v1453 = vrot.slane %v1387, %v1452
      %v1534 = vunpack.c.l.b16 %v1321
      %v1535 = vunpack.c.h.b16 %v1321
      %v1536 = vunpack.c.l.b16 %v1322
      %v1537 = vunpack.c.h.b16 %v1322
      %v1538 = vunpack.c.l.b16 %v1323
      %v1539 = vunpack.c.h.b16 %v1323
      %v1540 = vunpack.c.l.b16 %v1324
      %v1541 = vunpack.c.h.b16 %v1324
      %v1542 = vunpack.c.l.b16 %v1325
      %v1543 = vunpack.c.h.b16 %v1325
      %v1544 = vunpack.c.l.b16 %v1326
      %v1545 = vunpack.c.h.b16 %v1326
      %v1546 = vunpack.c.l.b16 %v1327
      %v1547 = vunpack.c.h.b16 %v1327
      %v1548 = vunpack.c.l.b16 %v1328
      %v1549 = vunpack.c.h.b16 %v1328
      %v1550 = vunpack.c.l.b16 %v1329
      %v1551 = vunpack.c.h.b16 %v1329
      %v1552 = vunpack.c.l.b16 %v1330
      %v1553 = vunpack.c.h.b16 %v1330
      %v1554 = vunpack.c.l.b16 %v1331
      %v1555 = vunpack.c.h.b16 %v1331
      %v1556 = vunpack.c.l.b16 %v1332
      %v1557 = vunpack.c.h.b16 %v1332
      %v1558 = vunpack.c.l.b16 %v1333
      %v1559 = vunpack.c.h.b16 %v1333
      %v1560 = vunpack.c.l.b16 %v1334
      %v1561 = vunpack.c.h.b16 %v1334
      %v1562 = vunpack.c.l.b16 %v1335
      %v1563 = vunpack.c.h.b16 %v1335
      %v1564 = vunpack.c.l.b16 %v1336
      %v1565 = vunpack.c.h.b16 %v1336
      %v1566 = vunpack.c.l.b16 %v1337
      %v1567 = vunpack.c.h.b16 %v1337
      %v1568 = vunpack.c.l.b16 %v1338
      %v1569 = vunpack.c.h.b16 %v1338
      %v1570 = vunpack.c.l.b16 %v1339
      %v1571 = vunpack.c.h.b16 %v1339
      %v1572 = vunpack.c.l.b16 %v1340
      %v1573 = vunpack.c.h.b16 %v1340
      %v1574 = vunpack.c.l.b16 %v1341
      %v1575 = vunpack.c.h.b16 %v1341
      %v1576 = vunpack.c.l.b16 %v1342
      %v1577 = vunpack.c.h.b16 %v1342
      %v1578 = vunpack.c.l.b16 %v1343
      %v1579 = vunpack.c.h.b16 %v1343
      %v1580 = vunpack.c.l.b16 %v1344
      %v1581 = vunpack.c.h.b16 %v1344
      %v1582 = vunpack.c.l.b16 %v1345
      %v1583 = vunpack.c.h.b16 %v1345
      %v1584 = vunpack.c.l.b16 %v1346
      %v1585 = vunpack.c.h.b16 %v1346
      %v1586 = vunpack.c.l.b16 %v1347
      %v1587 = vunpack.c.h.b16 %v1347
      %v1588 = vunpack.c.l.b16 %v1348
      %v1589 = vunpack.c.h.b16 %v1348
      %v1590 = vunpack.c.l.b16 %v1349
      %v1591 = vunpack.c.h.b16 %v1349
      %v1592 = vunpack.c.l.b16 %v1350
      %v1593 = vunpack.c.h.b16 %v1350
      %v1594 = vunpack.c.l.b16 %v1351
      %v1595 = vunpack.c.h.b16 %v1351
      %v1596 = vunpack.c.l.b16 %v1352
      %v1597 = vunpack.c.h.b16 %v1352
      %v1598 = vunpack.c.l.b16 %v1353
      %v1599 = vunpack.c.h.b16 %v1353
      %v1600 = vunpack.c.l.b16 %v1354
      %v1601 = vunpack.c.h.b16 %v1354
      %v1602 = vunpack.c.l.b16 %v1355
      %v1603 = vunpack.c.h.b16 %v1355
      %v1604 = vunpack.c.l.b16 %v1356
      %v1605 = vunpack.c.h.b16 %v1356
      %v1606 = vunpack.c.l.b16 %v1357
      %v1607 = vunpack.c.h.b16 %v1357
      %v1608 = vunpack.c.l.b16 %v1358
      %v1609 = vunpack.c.h.b16 %v1358
      %v1610 = vunpack.c.l.b16 %v1359
      %v1611 = vunpack.c.h.b16 %v1359
      %v1612 = vunpack.c.l.b16 %v1360
      %v1613 = vunpack.c.h.b16 %v1360
      %v1614 = vunpack.c.l.b16 %v1361
      %v1615 = vunpack.c.h.b16 %v1361
      %v1616 = vunpack.c.l.b16 %v1362
      %v1617 = vunpack.c.h.b16 %v1362
      %v1618 = vunpack.c.l.b16 %v1363
      %v1619 = vunpack.c.h.b16 %v1363
      %v1620 = vunpack.c.l.b16 %v1364
      %v1621 = vunpack.c.h.b16 %v1364
      %v1622 = vunpack.c.l.b16 %v1365
      %v1623 = vunpack.c.h.b16 %v1365
      %v1624 = vunpack.c.l.b16 %v1366
      %v1625 = vunpack.c.h.b16 %v1366
      %v1626 = vunpack.c.l.b16 %v1367
      %v1627 = vunpack.c.h.b16 %v1367
      %v1628 = vunpack.c.l.b16 %v1368
      %v1629 = vunpack.c.h.b16 %v1368
      %v1630 = vunpack.c.l.b16 %v1369
      %v1631 = vunpack.c.h.b16 %v1369
      %v1632 = vunpack.c.l.b16 %v1370
      %v1633 = vunpack.c.h.b16 %v1370
      %v1634 = vunpack.c.l.b16 %v1371
      %v1635 = vunpack.c.h.b16 %v1371
      %v1636 = vunpack.c.l.b16 %v1372
      %v1637 = vunpack.c.h.b16 %v1372
      %v1638 = vunpack.c.l.b16 %v1373
      %v1639 = vunpack.c.h.b16 %v1373
      %v1640 = vunpack.c.l.b16 %v1374
      %v1641 = vunpack.c.h.b16 %v1374
      %v1642 = vunpack.c.l.b16 %v1375
      %v1643 = vunpack.c.h.b16 %v1375
      %v1644 = vunpack.c.l.b16 %v1376
      %v1645 = vunpack.c.h.b16 %v1376
      %v1646 = vunpack.c.l.b16 %v1377
      %v1647 = vunpack.c.h.b16 %v1377
      %v1648 = vunpack.c.l.b16 %v1378
      %v1649 = vunpack.c.h.b16 %v1378
      %v1650 = vunpack.c.l.b16 %v1379
      %v1651 = vunpack.c.h.b16 %v1379
      %v1652 = vunpack.c.l.b16 %v1380
      %v1653 = vunpack.c.h.b16 %v1380
      %v1654 = vunpack.c.l.b16 %v1381
      %v1655 = vunpack.c.h.b16 %v1381
      %v1656 = vunpack.c.l.b16 %v1382
      %v1657 = vunpack.c.h.b16 %v1382
      %v1658 = vunpack.c.l.b16 %v1383
      %v1659 = vunpack.c.h.b16 %v1383
      %v1660 = vunpack.c.l.b16 %v1384
      %v1661 = vunpack.c.h.b16 %v1384
      %v1662 = vpack.c.b16 %v1550, %v1534
      %v1663 = vpack.c.b16 %v1551, %v1535
      %v1664 = vpack.c.b16 %v1552, %v1536
      %v1665 = vpack.c.b16 %v1553, %v1537
      %v1666 = vpack.c.b16 %v1554, %v1538
      %v1667 = vpack.c.b16 %v1555, %v1539
      %v1668 = vpack.c.b16 %v1556, %v1540
      %v1669 = vpack.c.b16 %v1557, %v1541
      %v1670 = vpack.c.b16 %v1558, %v1542
      %v1671 = vpack.c.b16 %v1559, %v1543
      %v1672 = vpack.c.b16 %v1560, %v1544
      %v1673 = vpack.c.b16 %v1561, %v1545
      %v1674 = vpack.c.b16 %v1562, %v1546
      %v1675 = vpack.c.b16 %v1563, %v1547
      %v1676 = vpack.c.b16 %v1564, %v1548
      %v1677 = vpack.c.b16 %v1565, %v1549
      %v1678 = vpack.c.b16 %v1582, %v1566
      %v1679 = vpack.c.b16 %v1583, %v1567
      %v1680 = vpack.c.b16 %v1584, %v1568
      %v1681 = vpack.c.b16 %v1585, %v1569
      %v1682 = vpack.c.b16 %v1586, %v1570
      %v1683 = vpack.c.b16 %v1587, %v1571
      %v1684 = vpack.c.b16 %v1588, %v1572
      %v1685 = vpack.c.b16 %v1589, %v1573
      %v1686 = vpack.c.b16 %v1590, %v1574
      %v1687 = vpack.c.b16 %v1591, %v1575
      %v1688 = vpack.c.b16 %v1592, %v1576
      %v1689 = vpack.c.b16 %v1593, %v1577
      %v1690 = vpack.c.b16 %v1594, %v1578
      %v1691 = vpack.c.b16 %v1595, %v1579
      %v1692 = vpack.c.b16 %v1596, %v1580
      %v1693 = vpack.c.b16 %v1597, %v1581
      %v1694 = vpack.c.b16 %v1614, %v1598
      %v1695 = vpack.c.b16 %v1615, %v1599
      %v1696 = vpack.c.b16 %v1616, %v1600
      %v1697 = vpack.c.b16 %v1617, %v1601
      %v1698 = vpack.c.b16 %v1618, %v1602
      %v1699 = vpack.c.b16 %v1619, %v1603
      %v1700 = vpack.c.b16 %v1620, %v1604
      %v1701 = vpack.c.b16 %v1621, %v1605
      %v1702 = vpack.c.b16 %v1622, %v1606
      %v1703 = vpack.c.b16 %v1623, %v1607
      %v1704 = vpack.c.b16 %v1624, %v1608
      %v1705 = vpack.c.b16 %v1625, %v1609
      %v1706 = vpack.c.b16 %v1626, %v1610
      %v1707 = vpack.c.b16 %v1627, %v1611
      %v1708 = vpack.c.b16 %v1628, %v1612
      %v1709 = vpack.c.b16 %v1629, %v1613
      %v1710 = vpack.c.b16 %v1646, %v1630
      %v1711 = vpack.c.b16 %v1647, %v1631
      %v1712 = vpack.c.b16 %v1648, %v1632
      %v1713 = vpack.c.b16 %v1649, %v1633
      %v1714 = vpack.c.b16 %v1650, %v1634
      %v1715 = vpack.c.b16 %v1651, %v1635
      %v1716 = vpack.c.b16 %v1652, %v1636
      %v1717 = vpack.c.b16 %v1653, %v1637
      %v1718 = vpack.c.b16 %v1654, %v1638
      %v1719 = vpack.c.b16 %v1655, %v1639
      %v1720 = vpack.c.b16 %v1656, %v1640
      %v1721 = vpack.c.b16 %v1657, %v1641
      %v1722 = vpack.c.b16 %v1658, %v1642
      %v1723 = vpack.c.b16 %v1659, %v1643
      %v1724 = vpack.c.b16 %v1660, %v1644
      %v1725 = vpack.c.b16 %v1661, %v1645
      %v1791 = vsel %vm673, %v1317, 0
      %1793 = vmatprep.subr.bf16.mxu0 0
      %1794 = vmatpush1.bf16.msra.mxu0 0
      %1795 = vmatprep.subr.bf16.mxu0 0
      %1796 = vmatpush1.bf16.msra.mxu0 0
      %1797 = vmatprep.subr.bf16.mxu0 0
      %1798 = vmatpush1.bf16.msra.mxu0 0
      %1799 = vmatprep.subr.bf16.mxu0 0
      %1800 = vmatpush1.bf16.msra.mxu0 0
      %1801 = vmatprep.subr.bf16.mxu0 %v1711
      %1802 = vmatpush1.bf16.msra.mxu0 %v1710
      %1803 = vmatprep.subr.bf16.mxu0 %v1695
      %1804 = vmatpush1.bf16.msra.mxu0 %v1694
      %1805 = vmatprep.subr.bf16.mxu0 %v1679
      %1806 = vmatpush1.bf16.msra.mxu0 %v1678
      %1807 = vmatprep.subr.bf16.mxu0 %v1663
      %1808 = vmatpush1.bf16.msra.mxu0 %v1662
      %1809 = vmatprep.subr.bf16.mxu0 0
      %1810 = vmatpush2.bf16.msra.mxu0 0
      %1811 = vmatprep.subr.bf16.mxu0 0
      %1812 = vmatpush2.bf16.msra.mxu0 0
      %1813 = vmatprep.subr.bf16.mxu0 0
      %1814 = vmatpush2.bf16.msra.mxu0 0
      %1815 = vmatprep.subr.bf16.mxu0 0
      %1816 = vmatpush2.bf16.msra.mxu0 0
      %1817 = vmatprep.subr.bf16.mxu0 0
      %1818 = vmatpush2.bf16.msra.mxu0 0
      %1819 = vmatprep.subr.bf16.mxu0 0
      %1820 = vmatpush2.bf16.msra.mxu0 0
      %1821 = vmatprep.subr.bf16.mxu0 0
      %1822 = vmatpush2.bf16.msra.mxu0 0
      %1823 = vmatprep.subr.bf16.mxu0 0
      %1824 = vmatpush2.bf16.msra.mxu0 0
      %1825 = vmatprep.mubr.bf16.mxu0 0
      %1826 = vmatmul.mubr.bf16.gmra.mxu0 %v1791
      %v1827 = vpop.f32.mrf.mxu0
      %v1828 = vadd.f32 %v1393, %v1827
      %v1829 = vpop.f32.mrf.mxu0
      %v1830 = vadd.f32 %v1397, %v1829
      %v1831 = vpop.f32.mrf.mxu0
      %v1832 = vpop.f32.mrf.mxu0
      %1833 = vdwg.mxu0
      %1834 = vmatprep.subr.bf16.mxu0 0
      %1835 = vmatpush1.bf16.msra.mxu0 0
      %1836 = vmatprep.subr.bf16.mxu0 0
      %1837 = vmatpush1.bf16.msra.mxu0 0
      %1838 = vmatprep.subr.bf16.mxu0 0
      %1839 = vmatpush1.bf16.msra.mxu0 0
      %1840 = vmatprep.subr.bf16.mxu0 0
      %1841 = vmatpush1.bf16.msra.mxu0 0
      %1842 = vmatprep.subr.bf16.mxu0 %v1713
      %1843 = vmatpush1.bf16.msra.mxu0 %v1712
      %1844 = vmatprep.subr.bf16.mxu0 %v1697
      %1845 = vmatpush1.bf16.msra.mxu0 %v1696
      %1846 = vmatprep.subr.bf16.mxu0 %v1681
      %1847 = vmatpush1.bf16.msra.mxu0 %v1680
      %1848 = vmatprep.subr.bf16.mxu0 %v1665
      %1849 = vmatpush1.bf16.msra.mxu0 %v1664
      %1850 = vmatprep.subr.bf16.mxu0 0
      %1851 = vmatpush2.bf16.msra.mxu0 0
      %1852 = vmatprep.subr.bf16.mxu0 0
      %1853 = vmatpush2.bf16.msra.mxu0 0
      %1854 = vmatprep.subr.bf16.mxu0 0
      %1855 = vmatpush2.bf16.msra.mxu0 0
      %1856 = vmatprep.subr.bf16.mxu0 0
      %1857 = vmatpush2.bf16.msra.mxu0 0
      %1858 = vmatprep.subr.bf16.mxu0 0
      %1859 = vmatpush2.bf16.msra.mxu0 0
      %1860 = vmatprep.subr.bf16.mxu0 0
      %1861 = vmatpush2.bf16.msra.mxu0 0
      %1862 = vmatprep.subr.bf16.mxu0 0
      %1863 = vmatpush2.bf16.msra.mxu0 0
      %1864 = vmatprep.subr.bf16.mxu0 0
      %1865 = vmatpush2.bf16.msra.mxu0 0
      %1866 = vmatprep.mubr.bf16.mxu0 0
      %1867 = vmatmul.mubr.bf16.gmra.mxu0 %v1791
      %v1868 = vpop.f32.mrf.mxu0
      %v1869 = vadd.f32 %v1401, %v1868
      %v1870 = vpop.f32.mrf.mxu0
      %v1871 = vadd.f32 %v1405, %v1870
      %v1872 = vpop.f32.mrf.mxu0
      %v1873 = vpop.f32.mrf.mxu0
      %1874 = vdwg.mxu0
      %1875 = vmatprep.subr.bf16.mxu0 0
      %1876 = vmatpush1.bf16.msra.mxu0 0
      %1877 = vmatprep.subr.bf16.mxu0 0
      %1878 = vmatpush1.bf16.msra.mxu0 0
      %1879 = vmatprep.subr.bf16.mxu0 0
      %1880 = vmatpush1.bf16.msra.mxu0 0
      %1881 = vmatprep.subr.bf16.mxu0 0
      %1882 = vmatpush1.bf16.msra.mxu0 0
      %1883 = vmatprep.subr.bf16.mxu0 %v1715
      %1884 = vmatpush1.bf16.msra.mxu0 %v1714
      %1885 = vmatprep.subr.bf16.mxu0 %v1699
      %1886 = vmatpush1.bf16.msra.mxu0 %v1698
      %1887 = vmatprep.subr.bf16.mxu0 %v1683
      %1888 = vmatpush1.bf16.msra.mxu0 %v1682
      %1889 = vmatprep.subr.bf16.mxu0 %v1667
      %1890 = vmatpush1.bf16.msra.mxu0 %v1666
      %1891 = vmatprep.subr.bf16.mxu0 0
      %1892 = vmatpush2.bf16.msra.mxu0 0
      %1893 = vmatprep.subr.bf16.mxu0 0
      %1894 = vmatpush2.bf16.msra.mxu0 0
      %1895 = vmatprep.subr.bf16.mxu0 0
      %1896 = vmatpush2.bf16.msra.mxu0 0
      %1897 = vmatprep.subr.bf16.mxu0 0
      %1898 = vmatpush2.bf16.msra.mxu0 0
      %1899 = vmatprep.subr.bf16.mxu0 0
      %1900 = vmatpush2.bf16.msra.mxu0 0
      %1901 = vmatprep.subr.bf16.mxu0 0
      %1902 = vmatpush2.bf16.msra.mxu0 0
      %1903 = vmatprep.subr.bf16.mxu0 0
      %1904 = vmatpush2.bf16.msra.mxu0 0
      %1905 = vmatprep.subr.bf16.mxu0 0
      %1906 = vmatpush2.bf16.msra.mxu0 0
      %1907 = vmatprep.mubr.bf16.mxu0 0
      %1908 = vmatmul.mubr.bf16.gmra.mxu0 %v1791
      %v1909 = vpop.f32.mrf.mxu0
      %v1910 = vadd.f32 %v1409, %v1909
      %v1911 = vpop.f32.mrf.mxu0
      %v1912 = vadd.f32 %v1413, %v1911
      %v1913 = vpop.f32.mrf.mxu0
      %v1914 = vpop.f32.mrf.mxu0
      %1915 = vdwg.mxu0
      %1916 = vmatprep.subr.bf16.mxu0 0
      %1917 = vmatpush1.bf16.msra.mxu0 0
      %1918 = vmatprep.subr.bf16.mxu0 0
      %1919 = vmatpush1.bf16.msra.mxu0 0
      %1920 = vmatprep.subr.bf16.mxu0 0
      %1921 = vmatpush1.bf16.msra.mxu0 0
      %1922 = vmatprep.subr.bf16.mxu0 0
      %1923 = vmatpush1.bf16.msra.mxu0 0
      %1924 = vmatprep.subr.bf16.mxu0 %v1717
      %1925 = vmatpush1.bf16.msra.mxu0 %v1716
      %1926 = vmatprep.subr.bf16.mxu0 %v1701
      %1927 = vmatpush1.bf16.msra.mxu0 %v1700
      %1928 = vmatprep.subr.bf16.mxu0 %v1685
      %1929 = vmatpush1.bf16.msra.mxu0 %v1684
      %1930 = vmatprep.subr.bf16.mxu0 %v1669
      %1931 = vmatpush1.bf16.msra.mxu0 %v1668
      %1932 = vmatprep.subr.bf16.mxu0 0
      %1933 = vmatpush2.bf16.msra.mxu0 0
      %1934 = vmatprep.subr.bf16.mxu0 0
      %1935 = vmatpush2.bf16.msra.mxu0 0
      %1936 = vmatprep.subr.bf16.mxu0 0
      %1937 = vmatpush2.bf16.msra.mxu0 0
      %1938 = vmatprep.subr.bf16.mxu0 0
      %1939 = vmatpush2.bf16.msra.mxu0 0
      %1940 = vmatprep.subr.bf16.mxu0 0
      %1941 = vmatpush2.bf16.msra.mxu0 0
      %1942 = vmatprep.subr.bf16.mxu0 0
      %1943 = vmatpush2.bf16.msra.mxu0 0
      %1944 = vmatprep.subr.bf16.mxu0 0
      %1945 = vmatpush2.bf16.msra.mxu0 0
      %1946 = vmatprep.subr.bf16.mxu0 0
      %1947 = vmatpush2.bf16.msra.mxu0 0
      %1948 = vmatprep.mubr.bf16.mxu0 0
      %1949 = vmatmul.mubr.bf16.gmra.mxu0 %v1791
      %v1950 = vpop.f32.mrf.mxu0
      %v1951 = vadd.f32 %v1417, %v1950
      %v1952 = vpop.f32.mrf.mxu0
      %v1953 = vadd.f32 %v1421, %v1952
      %v1954 = vpop.f32.mrf.mxu0
      %v1955 = vpop.f32.mrf.mxu0
      %1956 = vdwg.mxu0
      %1957 = vmatprep.subr.bf16.mxu0 0
      %1958 = vmatpush1.bf16.msra.mxu0 0
      %1959 = vmatprep.subr.bf16.mxu0 0
      %1960 = vmatpush1.bf16.msra.mxu0 0
      %1961 = vmatprep.subr.bf16.mxu0 0
      %1962 = vmatpush1.bf16.msra.mxu0 0
      %1963 = vmatprep.subr.bf16.mxu0 0
      %1964 = vmatpush1.bf16.msra.mxu0 0
      %1965 = vmatprep.subr.bf16.mxu0 %v1719
      %1966 = vmatpush1.bf16.msra.mxu0 %v1718
      %1967 = vmatprep.subr.bf16.mxu0 %v1703
      %1968 = vmatpush1.bf16.msra.mxu0 %v1702
      %1969 = vmatprep.subr.bf16.mxu0 %v1687
      %1970 = vmatpush1.bf16.msra.mxu0 %v1686
      %1971 = vmatprep.subr.bf16.mxu0 %v1671
      %1972 = vmatpush1.bf16.msra.mxu0 %v1670
      %1973 = vmatprep.subr.bf16.mxu0 0
      %1974 = vmatpush2.bf16.msra.mxu0 0
      %1975 = vmatprep.subr.bf16.mxu0 0
      %1976 = vmatpush2.bf16.msra.mxu0 0
      %1977 = vmatprep.subr.bf16.mxu0 0
      %1978 = vmatpush2.bf16.msra.mxu0 0
      %1979 = vmatprep.subr.bf16.mxu0 0
      %1980 = vmatpush2.bf16.msra.mxu0 0
      %1981 = vmatprep.subr.bf16.mxu0 0
      %1982 = vmatpush2.bf16.msra.mxu0 0
      %1983 = vmatprep.subr.bf16.mxu0 0
      %1984 = vmatpush2.bf16.msra.mxu0 0
      %1985 = vmatprep.subr.bf16.mxu0 0
      %1986 = vmatpush2.bf16.msra.mxu0 0
      %1987 = vmatprep.subr.bf16.mxu0 0
      %1988 = vmatpush2.bf16.msra.mxu0 0
      %1989 = vmatprep.mubr.bf16.mxu0 0
      %1990 = vmatmul.mubr.bf16.gmra.mxu0 %v1791
      %v1991 = vpop.f32.mrf.mxu0
      %v1992 = vadd.f32 %v1425, %v1991
      %v1993 = vpop.f32.mrf.mxu0
      %v1994 = vadd.f32 %v1429, %v1993
      %v1995 = vpop.f32.mrf.mxu0
      %v1996 = vpop.f32.mrf.mxu0
      %1997 = vdwg.mxu0
      %1998 = vmatprep.subr.bf16.mxu0 0
      %1999 = vmatpush1.bf16.msra.mxu0 0
      %2000 = vmatprep.subr.bf16.mxu0 0
      %2001 = vmatpush1.bf16.msra.mxu0 0
      %2002 = vmatprep.subr.bf16.mxu0 0
      %2003 = vmatpush1.bf16.msra.mxu0 0
      %2004 = vmatprep.subr.bf16.mxu0 0
      %2005 = vmatpush1.bf16.msra.mxu0 0
      %2006 = vmatprep.subr.bf16.mxu0 %v1721
      %2007 = vmatpush1.bf16.msra.mxu0 %v1720
      %2008 = vmatprep.subr.bf16.mxu0 %v1705
      %2009 = vmatpush1.bf16.msra.mxu0 %v1704
      %2010 = vmatprep.subr.bf16.mxu0 %v1689
      %2011 = vmatpush1.bf16.msra.mxu0 %v1688
      %2012 = vmatprep.subr.bf16.mxu0 %v1673
      %2013 = vmatpush1.bf16.msra.mxu0 %v1672
      %2014 = vmatprep.subr.bf16.mxu0 0
      %2015 = vmatpush2.bf16.msra.mxu0 0
      %2016 = vmatprep.subr.bf16.mxu0 0
      %2017 = vmatpush2.bf16.msra.mxu0 0
      %2018 = vmatprep.subr.bf16.mxu0 0
      %2019 = vmatpush2.bf16.msra.mxu0 0
      %2020 = vmatprep.subr.bf16.mxu0 0
      %2021 = vmatpush2.bf16.msra.mxu0 0
      %2022 = vmatprep.subr.bf16.mxu0 0
      %2023 = vmatpush2.bf16.msra.mxu0 0
      %2024 = vmatprep.subr.bf16.mxu0 0
      %2025 = vmatpush2.bf16.msra.mxu0 0
      %2026 = vmatprep.subr.bf16.mxu0 0
      %2027 = vmatpush2.bf16.msra.mxu0 0
      %2028 = vmatprep.subr.bf16.mxu0 0
      %2029 = vmatpush2.bf16.msra.mxu0 0
      %2030 = vmatprep.mubr.bf16.mxu0 0
      %2031 = vmatmul.mubr.bf16.gmra.mxu0 %v1791
      %v2032 = vpop.f32.mrf.mxu0
      %v2033 = vadd.f32 %v1433, %v2032
      %v2034 = vpop.f32.mrf.mxu0
      %v2035 = vadd.f32 %v1437, %v2034
      %v2036 = vpop.f32.mrf.mxu0
      %v2037 = vpop.f32.mrf.mxu0
      %2038 = vdwg.mxu0
      %2039 = vmatprep.subr.bf16.mxu0 0
      %2040 = vmatpush1.bf16.msra.mxu0 0
      %2041 = vmatprep.subr.bf16.mxu0 0
      %2042 = vmatpush1.bf16.msra.mxu0 0
      %2043 = vmatprep.subr.bf16.mxu0 0
      %2044 = vmatpush1.bf16.msra.mxu0 0
      %2045 = vmatprep.subr.bf16.mxu0 0
      %2046 = vmatpush1.bf16.msra.mxu0 0
      %2047 = vmatprep.subr.bf16.mxu0 %v1723
      %2048 = vmatpush1.bf16.msra.mxu0 %v1722
      %2049 = vmatprep.subr.bf16.mxu0 %v1707
      %2050 = vmatpush1.bf16.msra.mxu0 %v1706
      %2051 = vmatprep.subr.bf16.mxu0 %v1691
      %2052 = vmatpush1.bf16.msra.mxu0 %v1690
      %2053 = vmatprep.subr.bf16.mxu0 %v1675
      %2054 = vmatpush1.bf16.msra.mxu0 %v1674
      %2055 = vmatprep.subr.bf16.mxu0 0
      %2056 = vmatpush2.bf16.msra.mxu0 0
      %2057 = vmatprep.subr.bf16.mxu0 0
      %2058 = vmatpush2.bf16.msra.mxu0 0
      %2059 = vmatprep.subr.bf16.mxu0 0
      %2060 = vmatpush2.bf16.msra.mxu0 0
      %2061 = vmatprep.subr.bf16.mxu0 0
      %2062 = vmatpush2.bf16.msra.mxu0 0
      %2063 = vmatprep.subr.bf16.mxu0 0
      %2064 = vmatpush2.bf16.msra.mxu0 0
      %2065 = vmatprep.subr.bf16.mxu0 0
      %2066 = vmatpush2.bf16.msra.mxu0 0
      %2067 = vmatprep.subr.bf16.mxu0 0
      %2068 = vmatpush2.bf16.msra.mxu0 0
      %2069 = vmatprep.subr.bf16.mxu0 0
      %2070 = vmatpush2.bf16.msra.mxu0 0
      %2071 = vmatprep.mubr.bf16.mxu0 0
      %2072 = vmatmul.mubr.bf16.gmra.mxu0 %v1791
      %v2073 = vpop.f32.mrf.mxu0
      %v2074 = vadd.f32 %v1441, %v2073
      %v2075 = vpop.f32.mrf.mxu0
      %v2076 = vadd.f32 %v1445, %v2075
      %v2077 = vpop.f32.mrf.mxu0
      %v2078 = vpop.f32.mrf.mxu0
      %2079 = vdwg.mxu0
      %2080 = vmatprep.subr.bf16.mxu0 0
      %2081 = vmatpush1.bf16.msra.mxu0 0
      %2082 = vmatprep.subr.bf16.mxu0 0
      %2083 = vmatpush1.bf16.msra.mxu0 0
      %2084 = vmatprep.subr.bf16.mxu0 0
      %2085 = vmatpush1.bf16.msra.mxu0 0
      %2086 = vmatprep.subr.bf16.mxu0 0
      %2087 = vmatpush1.bf16.msra.mxu0 0
      %2088 = vmatprep.subr.bf16.mxu0 %v1725
      %2089 = vmatpush1.bf16.msra.mxu0 %v1724
      %2090 = vmatprep.subr.bf16.mxu0 %v1709
      %2091 = vmatpush1.bf16.msra.mxu0 %v1708
      %2092 = vmatprep.subr.bf16.mxu0 %v1693
      %2093 = vmatpush1.bf16.msra.mxu0 %v1692
      %2094 = vmatprep.subr.bf16.mxu0 %v1677
      %2095 = vmatpush1.bf16.msra.mxu0 %v1676
      %2096 = vmatprep.subr.bf16.mxu0 0
      %2097 = vmatpush2.bf16.msra.mxu0 0
      %2098 = vmatprep.subr.bf16.mxu0 0
      %2099 = vmatpush2.bf16.msra.mxu0 0
      %2100 = vmatprep.subr.bf16.mxu0 0
      %2101 = vmatpush2.bf16.msra.mxu0 0
      %2102 = vmatprep.subr.bf16.mxu0 0
      %2103 = vmatpush2.bf16.msra.mxu0 0
      %2104 = vmatprep.subr.bf16.mxu0 0
      %2105 = vmatpush2.bf16.msra.mxu0 0
      %2106 = vmatprep.subr.bf16.mxu0 0
      %2107 = vmatpush2.bf16.msra.mxu0 0
      %2108 = vmatprep.subr.bf16.mxu0 0
      %2109 = vmatpush2.bf16.msra.mxu0 0
      %2110 = vmatprep.subr.bf16.mxu0 0
      %2111 = vmatpush2.bf16.msra.mxu0 0
      %2112 = vmatprep.mubr.bf16.mxu0 0
      %2113 = vmatmul.mubr.bf16.gmra.mxu0 %v1791
      %v2114 = vpop.f32.mrf.mxu0
      %v2115 = vadd.f32 %v1449, %v2114
      %v2116 = vpop.f32.mrf.mxu0
      %v2117 = vadd.f32 %v1453, %v2116
      %v2118 = vpop.f32.mrf.mxu0
      %v2119 = vpop.f32.mrf.mxu0
      %2120 = vdwg.mxu0
      %v2121 = vmax.f32 %v1828, 0.0
      %v2122 = vmax.f32 %v1830, 0.0
      %v2123 = vmax.f32 %v1869, 0.0
      %v2124 = vmax.f32 %v1871, 0.0
      %v2125 = vmax.f32 %v1910, 0.0
      %v2126 = vmax.f32 %v1912, 0.0
      %v2127 = vmax.f32 %v1951, 0.0
      %v2128 = vmax.f32 %v1953, 0.0
      %v2129 = vmax.f32 %v1992, 0.0
      %v2130 = vmax.f32 %v1994, 0.0
      %v2131 = vmax.f32 %v2033, 0.0
      %v2132 = vmax.f32 %v2035, 0.0
      %v2133 = vmax.f32 %v2074, 0.0
      %v2134 = vmax.f32 %v2076, 0.0
      %v2135 = vmax.f32 %v2115, 0.0
      %v2136 = vmax.f32 %v2117, 0.0
      %v2137 = vpack.c.bf16 %v2121, %v2121
      %v2138 = vpack.c.bf16 %v2122, %v2122
      %v2139 = vpack.c.bf16 %v2123, %v2123
      %v2140 = vpack.c.bf16 %v2124, %v2124
      %v2141 = vpack.c.bf16 %v2125, %v2125
      %v2142 = vpack.c.bf16 %v2126, %v2126
      %v2143 = vpack.c.bf16 %v2127, %v2127
      %v2144 = vpack.c.bf16 %v2128, %v2128
      %v2145 = vpack.c.bf16 %v2129, %v2129
      %v2146 = vpack.c.bf16 %v2130, %v2130
      %v2147 = vpack.c.bf16 %v2131, %v2131
      %v2148 = vpack.c.bf16 %v2132, %v2132
      %v2149 = vpack.c.bf16 %v2133, %v2133
      %v2150 = vpack.c.bf16 %v2134, %v2134
      %v2151 = vpack.c.bf16 %v2135, %v2135
      %v2152 = vpack.c.bf16 %v2136, %v2136
      %s2153 = smul.u32 %s34, 256
      %s2154 = smul.addr %s2153, 4
      %s2155 = scalar_lea.vmem %s10, %s2154
      %v2156 = vld [vmem:[%s2155] sm:$0xf]
      %v2157 = vld [vmem:[%s2155 + $0x4] sm:$0xf]
      %v2158 = vld [vmem:[%s2155 + $0x8] sm:$0xf]
      %v2159 = vld [vmem:[%s2155 + $0xc] sm:$0xf]
      %v2160 = vld [vmem:[%s2155 + $0x10] sm:$0xf]
      %v2161 = vld [vmem:[%s2155 + $0x14] sm:$0xf]
      %v2162 = vld [vmem:[%s2155 + $0x18] sm:$0xf]
      %v2163 = vld [vmem:[%s2155 + $0x1c] sm:$0xf]
      %v2164 = vld [vmem:[%s2155 + $0x20] sm:$0xf]
      %v2165 = vld [vmem:[%s2155 + $0x24] sm:$0xf]
      %v2166 = vld [vmem:[%s2155 + $0x28] sm:$0xf]
      %v2167 = vld [vmem:[%s2155 + $0x2c] sm:$0xf]
      %v2168 = vld [vmem:[%s2155 + $0x30] sm:$0xf]
      %v2169 = vld [vmem:[%s2155 + $0x34] sm:$0xf]
      %v2170 = vld [vmem:[%s2155 + $0x38] sm:$0xf]
      %v2171 = vld [vmem:[%s2155 + $0x3c] sm:$0xf]
      %v2172 = vld [vmem:[%s2155 + $0x40] sm:$0xf]
      %v2173 = vld [vmem:[%s2155 + $0x44] sm:$0xf]
      %v2174 = vld [vmem:[%s2155 + $0x48] sm:$0xf]
      %v2175 = vld [vmem:[%s2155 + $0x4c] sm:$0xf]
      %v2176 = vld [vmem:[%s2155 + $0x50] sm:$0xf]
      %v2177 = vld [vmem:[%s2155 + $0x54] sm:$0xf]
      %v2178 = vld [vmem:[%s2155 + $0x58] sm:$0xf]
      %v2179 = vld [vmem:[%s2155 + $0x5c] sm:$0xf]
      %v2180 = vld [vmem:[%s2155 + $0x60] sm:$0xf]
      %v2181 = vld [vmem:[%s2155 + $0x64] sm:$0xf]
      %v2182 = vld [vmem:[%s2155 + $0x68] sm:$0xf]
      %v2183 = vld [vmem:[%s2155 + $0x6c] sm:$0xf]
      %v2184 = vld [vmem:[%s2155 + $0x70] sm:$0xf]
      %v2185 = vld [vmem:[%s2155 + $0x74] sm:$0xf]
      %v2186 = vld [vmem:[%s2155 + $0x78] sm:$0xf]
      %v2187 = vld [vmem:[%s2155 + $0x7c] sm:$0xf]
      %v2188 = vld [vmem:[%s2155 + $0x80] sm:$0xf]
      %v2189 = vld [vmem:[%s2155 + $0x84] sm:$0xf]
      %v2190 = vld [vmem:[%s2155 + $0x88] sm:$0xf]
      %v2191 = vld [vmem:[%s2155 + $0x8c] sm:$0xf]
      %v2192 = vld [vmem:[%s2155 + $0x90] sm:$0xf]
      %v2193 = vld [vmem:[%s2155 + $0x94] sm:$0xf]
      %v2194 = vld [vmem:[%s2155 + $0x98] sm:$0xf]
      %v2195 = vld [vmem:[%s2155 + $0x9c] sm:$0xf]
      %v2196 = vld [vmem:[%s2155 + $0xa0] sm:$0xf]
      %v2197 = vld [vmem:[%s2155 + $0xa4] sm:$0xf]
      %v2198 = vld [vmem:[%s2155 + $0xa8] sm:$0xf]
      %v2199 = vld [vmem:[%s2155 + $0xac] sm:$0xf]
      %v2200 = vld [vmem:[%s2155 + $0xb0] sm:$0xf]
      %v2201 = vld [vmem:[%s2155 + $0xb4] sm:$0xf]
      %v2202 = vld [vmem:[%s2155 + $0xb8] sm:$0xf]
      %v2203 = vld [vmem:[%s2155 + $0xbc] sm:$0xf]
      %v2204 = vld [vmem:[%s2155 + $0xc0] sm:$0xf]
      %v2205 = vld [vmem:[%s2155 + $0xc4] sm:$0xf]
      %v2206 = vld [vmem:[%s2155 + $0xc8] sm:$0xf]
      %v2207 = vld [vmem:[%s2155 + $0xcc] sm:$0xf]
      %v2208 = vld [vmem:[%s2155 + $0xd0] sm:$0xf]
      %v2209 = vld [vmem:[%s2155 + $0xd4] sm:$0xf]
      %v2210 = vld [vmem:[%s2155 + $0xd8] sm:$0xf]
      %v2211 = vld [vmem:[%s2155 + $0xdc] sm:$0xf]
      %v2212 = vld [vmem:[%s2155 + $0xe0] sm:$0xf]
      %v2213 = vld [vmem:[%s2155 + $0xe4] sm:$0xf]
      %v2214 = vld [vmem:[%s2155 + $0xe8] sm:$0xf]
      %v2215 = vld [vmem:[%s2155 + $0xec] sm:$0xf]
      %v2216 = vld [vmem:[%s2155 + $0xf0] sm:$0xf]
      %v2217 = vld [vmem:[%s2155 + $0xf4] sm:$0xf]
      %v2218 = vld [vmem:[%s2155 + $0xf8] sm:$0xf]
      %v2219 = vld [vmem:[%s2155 + $0xfc] sm:$0xf]
      %v2220 = vld [vmem:[%s2155 + $0x100] sm:$0xf]
      %v2221 = vld [vmem:[%s2155 + $0x104] sm:$0xf]
      %v2222 = vld [vmem:[%s2155 + $0x108] sm:$0xf]
      %v2223 = vld [vmem:[%s2155 + $0x10c] sm:$0xf]
      %v2224 = vld [vmem:[%s2155 + $0x110] sm:$0xf]
      %v2225 = vld [vmem:[%s2155 + $0x114] sm:$0xf]
      %v2226 = vld [vmem:[%s2155 + $0x118] sm:$0xf]
      %v2227 = vld [vmem:[%s2155 + $0x11c] sm:$0xf]
      %v2228 = vld [vmem:[%s2155 + $0x120] sm:$0xf]
      %v2229 = vld [vmem:[%s2155 + $0x124] sm:$0xf]
      %v2230 = vld [vmem:[%s2155 + $0x128] sm:$0xf]
      %v2231 = vld [vmem:[%s2155 + $0x12c] sm:$0xf]
      %v2232 = vld [vmem:[%s2155 + $0x130] sm:$0xf]
      %v2233 = vld [vmem:[%s2155 + $0x134] sm:$0xf]
      %v2234 = vld [vmem:[%s2155 + $0x138] sm:$0xf]
      %v2235 = vld [vmem:[%s2155 + $0x13c] sm:$0xf]
      %v2236 = vld [vmem:[%s2155 + $0x140] sm:$0xf]
      %v2237 = vld [vmem:[%s2155 + $0x144] sm:$0xf]
      %v2238 = vld [vmem:[%s2155 + $0x148] sm:$0xf]
      %v2239 = vld [vmem:[%s2155 + $0x14c] sm:$0xf]
      %v2240 = vld [vmem:[%s2155 + $0x150] sm:$0xf]
      %v2241 = vld [vmem:[%s2155 + $0x154] sm:$0xf]
      %v2242 = vld [vmem:[%s2155 + $0x158] sm:$0xf]
      %v2243 = vld [vmem:[%s2155 + $0x15c] sm:$0xf]
      %v2244 = vld [vmem:[%s2155 + $0x160] sm:$0xf]
      %v2245 = vld [vmem:[%s2155 + $0x164] sm:$0xf]
      %v2246 = vld [vmem:[%s2155 + $0x168] sm:$0xf]
      %v2247 = vld [vmem:[%s2155 + $0x16c] sm:$0xf]
      %v2248 = vld [vmem:[%s2155 + $0x170] sm:$0xf]
      %v2249 = vld [vmem:[%s2155 + $0x174] sm:$0xf]
      %v2250 = vld [vmem:[%s2155 + $0x178] sm:$0xf]
      %v2251 = vld [vmem:[%s2155 + $0x17c] sm:$0xf]
      %v2252 = vld [vmem:[%s2155 + $0x180] sm:$0xf]
      %v2253 = vld [vmem:[%s2155 + $0x184] sm:$0xf]
      %v2254 = vld [vmem:[%s2155 + $0x188] sm:$0xf]
      %v2255 = vld [vmem:[%s2155 + $0x18c] sm:$0xf]
      %v2256 = vld [vmem:[%s2155 + $0x190] sm:$0xf]
      %v2257 = vld [vmem:[%s2155 + $0x194] sm:$0xf]
      %v2258 = vld [vmem:[%s2155 + $0x198] sm:$0xf]
      %v2259 = vld [vmem:[%s2155 + $0x19c] sm:$0xf]
      %v2260 = vld [vmem:[%s2155 + $0x1a0] sm:$0xf]
      %v2261 = vld [vmem:[%s2155 + $0x1a4] sm:$0xf]
      %v2262 = vld [vmem:[%s2155 + $0x1a8] sm:$0xf]
      %v2263 = vld [vmem:[%s2155 + $0x1ac] sm:$0xf]
      %v2264 = vld [vmem:[%s2155 + $0x1b0] sm:$0xf]
      %v2265 = vld [vmem:[%s2155 + $0x1b4] sm:$0xf]
      %v2266 = vld [vmem:[%s2155 + $0x1b8] sm:$0xf]
      %v2267 = vld [vmem:[%s2155 + $0x1bc] sm:$0xf]
      %v2268 = vld [vmem:[%s2155 + $0x1c0] sm:$0xf]
      %v2269 = vld [vmem:[%s2155 + $0x1c4] sm:$0xf]
      %v2270 = vld [vmem:[%s2155 + $0x1c8] sm:$0xf]
      %v2271 = vld [vmem:[%s2155 + $0x1cc] sm:$0xf]
      %v2272 = vld [vmem:[%s2155 + $0x1d0] sm:$0xf]
      %v2273 = vld [vmem:[%s2155 + $0x1d4] sm:$0xf]
      %v2274 = vld [vmem:[%s2155 + $0x1d8] sm:$0xf]
      %v2275 = vld [vmem:[%s2155 + $0x1dc] sm:$0xf]
      %v2276 = vld [vmem:[%s2155 + $0x1e0] sm:$0xf]
      %v2277 = vld [vmem:[%s2155 + $0x1e4] sm:$0xf]
      %v2278 = vld [vmem:[%s2155 + $0x1e8] sm:$0xf]
      %v2279 = vld [vmem:[%s2155 + $0x1ec] sm:$0xf]
      %v2280 = vld [vmem:[%s2155 + $0x1f0] sm:$0xf]
      %v2281 = vld [vmem:[%s2155 + $0x1f4] sm:$0xf]
      %v2282 = vld [vmem:[%s2155 + $0x1f8] sm:$0xf]
      %v2283 = vld [vmem:[%s2155 + $0x1fc] sm:$0xf]
      %v2284 = vld [vmem:[%s2155 + $0x200] sm:$0xf]
      %v2285 = vld [vmem:[%s2155 + $0x204] sm:$0xf]
      %v2286 = vld [vmem:[%s2155 + $0x208] sm:$0xf]
      %v2287 = vld [vmem:[%s2155 + $0x20c] sm:$0xf]
      %v2288 = vld [vmem:[%s2155 + $0x210] sm:$0xf]
      %v2289 = vld [vmem:[%s2155 + $0x214] sm:$0xf]
      %v2290 = vld [vmem:[%s2155 + $0x218] sm:$0xf]
      %v2291 = vld [vmem:[%s2155 + $0x21c] sm:$0xf]
      %v2292 = vld [vmem:[%s2155 + $0x220] sm:$0xf]
      %v2293 = vld [vmem:[%s2155 + $0x224] sm:$0xf]
      %v2294 = vld [vmem:[%s2155 + $0x228] sm:$0xf]
      %v2295 = vld [vmem:[%s2155 + $0x22c] sm:$0xf]
      %v2296 = vld [vmem:[%s2155 + $0x230] sm:$0xf]
      %v2297 = vld [vmem:[%s2155 + $0x234] sm:$0xf]
      %v2298 = vld [vmem:[%s2155 + $0x238] sm:$0xf]
      %v2299 = vld [vmem:[%s2155 + $0x23c] sm:$0xf]
      %v2300 = vld [vmem:[%s2155 + $0x240] sm:$0xf]
      %v2301 = vld [vmem:[%s2155 + $0x244] sm:$0xf]
      %v2302 = vld [vmem:[%s2155 + $0x248] sm:$0xf]
      %v2303 = vld [vmem:[%s2155 + $0x24c] sm:$0xf]
      %v2304 = vld [vmem:[%s2155 + $0x250] sm:$0xf]
      %v2305 = vld [vmem:[%s2155 + $0x254] sm:$0xf]
      %v2306 = vld [vmem:[%s2155 + $0x258] sm:$0xf]
      %v2307 = vld [vmem:[%s2155 + $0x25c] sm:$0xf]
      %v2308 = vld [vmem:[%s2155 + $0x260] sm:$0xf]
      %v2309 = vld [vmem:[%s2155 + $0x264] sm:$0xf]
      %v2310 = vld [vmem:[%s2155 + $0x268] sm:$0xf]
      %v2311 = vld [vmem:[%s2155 + $0x26c] sm:$0xf]
      %v2312 = vld [vmem:[%s2155 + $0x270] sm:$0xf]
      %v2313 = vld [vmem:[%s2155 + $0x274] sm:$0xf]
      %v2314 = vld [vmem:[%s2155 + $0x278] sm:$0xf]
      %v2315 = vld [vmem:[%s2155 + $0x27c] sm:$0xf]
      %v2316 = vld [vmem:[%s2155 + $0x280] sm:$0xf]
      %v2317 = vld [vmem:[%s2155 + $0x284] sm:$0xf]
      %v2318 = vld [vmem:[%s2155 + $0x288] sm:$0xf]
      %v2319 = vld [vmem:[%s2155 + $0x28c] sm:$0xf]
      %v2320 = vld [vmem:[%s2155 + $0x290] sm:$0xf]
      %v2321 = vld [vmem:[%s2155 + $0x294] sm:$0xf]
      %v2322 = vld [vmem:[%s2155 + $0x298] sm:$0xf]
      %v2323 = vld [vmem:[%s2155 + $0x29c] sm:$0xf]
      %v2324 = vld [vmem:[%s2155 + $0x2a0] sm:$0xf]
      %v2325 = vld [vmem:[%s2155 + $0x2a4] sm:$0xf]
      %v2326 = vld [vmem:[%s2155 + $0x2a8] sm:$0xf]
      %v2327 = vld [vmem:[%s2155 + $0x2ac] sm:$0xf]
      %v2328 = vld [vmem:[%s2155 + $0x2b0] sm:$0xf]
      %v2329 = vld [vmem:[%s2155 + $0x2b4] sm:$0xf]
      %v2330 = vld [vmem:[%s2155 + $0x2b8] sm:$0xf]
      %v2331 = vld [vmem:[%s2155 + $0x2bc] sm:$0xf]
      %v2332 = vld [vmem:[%s2155 + $0x2c0] sm:$0xf]
      %v2333 = vld [vmem:[%s2155 + $0x2c4] sm:$0xf]
      %v2334 = vld [vmem:[%s2155 + $0x2c8] sm:$0xf]
      %v2335 = vld [vmem:[%s2155 + $0x2cc] sm:$0xf]
      %v2336 = vld [vmem:[%s2155 + $0x2d0] sm:$0xf]
      %v2337 = vld [vmem:[%s2155 + $0x2d4] sm:$0xf]
      %v2338 = vld [vmem:[%s2155 + $0x2d8] sm:$0xf]
      %v2339 = vld [vmem:[%s2155 + $0x2dc] sm:$0xf]
      %v2340 = vld [vmem:[%s2155 + $0x2e0] sm:$0xf]
      %v2341 = vld [vmem:[%s2155 + $0x2e4] sm:$0xf]
      %v2342 = vld [vmem:[%s2155 + $0x2e8] sm:$0xf]
      %v2343 = vld [vmem:[%s2155 + $0x2ec] sm:$0xf]
      %v2344 = vld [vmem:[%s2155 + $0x2f0] sm:$0xf]
      %v2345 = vld [vmem:[%s2155 + $0x2f4] sm:$0xf]
      %v2346 = vld [vmem:[%s2155 + $0x2f8] sm:$0xf]
      %v2347 = vld [vmem:[%s2155 + $0x2fc] sm:$0xf]
      %v2348 = vld [vmem:[%s2155 + $0x300] sm:$0xf]
      %v2349 = vld [vmem:[%s2155 + $0x304] sm:$0xf]
      %v2350 = vld [vmem:[%s2155 + $0x308] sm:$0xf]
      %v2351 = vld [vmem:[%s2155 + $0x30c] sm:$0xf]
      %v2352 = vld [vmem:[%s2155 + $0x310] sm:$0xf]
      %v2353 = vld [vmem:[%s2155 + $0x314] sm:$0xf]
      %v2354 = vld [vmem:[%s2155 + $0x318] sm:$0xf]
      %v2355 = vld [vmem:[%s2155 + $0x31c] sm:$0xf]
      %v2356 = vld [vmem:[%s2155 + $0x320] sm:$0xf]
      %v2357 = vld [vmem:[%s2155 + $0x324] sm:$0xf]
      %v2358 = vld [vmem:[%s2155 + $0x328] sm:$0xf]
      %v2359 = vld [vmem:[%s2155 + $0x32c] sm:$0xf]
      %v2360 = vld [vmem:[%s2155 + $0x330] sm:$0xf]
      %v2361 = vld [vmem:[%s2155 + $0x334] sm:$0xf]
      %v2362 = vld [vmem:[%s2155 + $0x338] sm:$0xf]
      %v2363 = vld [vmem:[%s2155 + $0x33c] sm:$0xf]
      %v2364 = vld [vmem:[%s2155 + $0x340] sm:$0xf]
      %v2365 = vld [vmem:[%s2155 + $0x344] sm:$0xf]
      %v2366 = vld [vmem:[%s2155 + $0x348] sm:$0xf]
      %v2367 = vld [vmem:[%s2155 + $0x34c] sm:$0xf]
      %v2368 = vld [vmem:[%s2155 + $0x350] sm:$0xf]
      %v2369 = vld [vmem:[%s2155 + $0x354] sm:$0xf]
      %v2370 = vld [vmem:[%s2155 + $0x358] sm:$0xf]
      %v2371 = vld [vmem:[%s2155 + $0x35c] sm:$0xf]
      %v2372 = vld [vmem:[%s2155 + $0x360] sm:$0xf]
      %v2373 = vld [vmem:[%s2155 + $0x364] sm:$0xf]
      %v2374 = vld [vmem:[%s2155 + $0x368] sm:$0xf]
      %v2375 = vld [vmem:[%s2155 + $0x36c] sm:$0xf]
      %v2376 = vld [vmem:[%s2155 + $0x370] sm:$0xf]
      %v2377 = vld [vmem:[%s2155 + $0x374] sm:$0xf]
      %v2378 = vld [vmem:[%s2155 + $0x378] sm:$0xf]
      %v2379 = vld [vmem:[%s2155 + $0x37c] sm:$0xf]
      %v2380 = vld [vmem:[%s2155 + $0x380] sm:$0xf]
      %v2381 = vld [vmem:[%s2155 + $0x384] sm:$0xf]
      %v2382 = vld [vmem:[%s2155 + $0x388] sm:$0xf]
      %v2383 = vld [vmem:[%s2155 + $0x38c] sm:$0xf]
      %v2384 = vld [vmem:[%s2155 + $0x390] sm:$0xf]
      %v2385 = vld [vmem:[%s2155 + $0x394] sm:$0xf]
      %v2386 = vld [vmem:[%s2155 + $0x398] sm:$0xf]
      %v2387 = vld [vmem:[%s2155 + $0x39c] sm:$0xf]
      %v2388 = vld [vmem:[%s2155 + $0x3a0] sm:$0xf]
      %v2389 = vld [vmem:[%s2155 + $0x3a4] sm:$0xf]
      %v2390 = vld [vmem:[%s2155 + $0x3a8] sm:$0xf]
      %v2391 = vld [vmem:[%s2155 + $0x3ac] sm:$0xf]
      %v2392 = vld [vmem:[%s2155 + $0x3b0] sm:$0xf]
      %v2393 = vld [vmem:[%s2155 + $0x3b4] sm:$0xf]
      %v2394 = vld [vmem:[%s2155 + $0x3b8] sm:$0xf]
      %v2395 = vld [vmem:[%s2155 + $0x3bc] sm:$0xf]
      %v2396 = vld [vmem:[%s2155 + $0x3c0] sm:$0xf]
      %v2397 = vld [vmem:[%s2155 + $0x3c4] sm:$0xf]
      %v2398 = vld [vmem:[%s2155 + $0x3c8] sm:$0xf]
      %v2399 = vld [vmem:[%s2155 + $0x3cc] sm:$0xf]
      %v2400 = vld [vmem:[%s2155 + $0x3d0] sm:$0xf]
      %v2401 = vld [vmem:[%s2155 + $0x3d4] sm:$0xf]
      %v2402 = vld [vmem:[%s2155 + $0x3d8] sm:$0xf]
      %v2403 = vld [vmem:[%s2155 + $0x3dc] sm:$0xf]
      %v2404 = vld [vmem:[%s2155 + $0x3e0] sm:$0xf]
      %v2405 = vld [vmem:[%s2155 + $0x3e4] sm:$0xf]
      %v2406 = vld [vmem:[%s2155 + $0x3e8] sm:$0xf]
      %v2407 = vld [vmem:[%s2155 + $0x3ec] sm:$0xf]
      %v2408 = vld [vmem:[%s2155 + $0x3f0] sm:$0xf]
      %v2409 = vld [vmem:[%s2155 + $0x3f4] sm:$0xf]
      %v2410 = vld [vmem:[%s2155 + $0x3f8] sm:$0xf]
      %v2411 = vld [vmem:[%s2155 + $0x3fc] sm:$0xf]
      %s2412 = scalar_lea.vmem %s11, %s34
      %v2413 = vld [vmem:[%s2412] sm:$0x1]
      %v2415 = vlaneseq
      %v2416 = vshrl.u32 %v2415, 7
      %v2417 = vsub.s32 0, %v2416
      %v2418 = vrot.slane %v2413, %v2417
      %v2676 = vunpack.c.l.b16 %v2156
      %v2677 = vunpack.c.l.b16 %v2157
      %v2678 = vunpack.c.l.b16 %v2158
      %v2679 = vunpack.c.l.b16 %v2159
      %v2680 = vunpack.c.l.b16 %v2160
      %v2681 = vunpack.c.l.b16 %v2161
      %v2682 = vunpack.c.l.b16 %v2162
      %v2683 = vunpack.c.l.b16 %v2163
      %v2684 = vunpack.c.l.b16 %v2164
      %v2685 = vunpack.c.l.b16 %v2165
      %v2686 = vunpack.c.l.b16 %v2166
      %v2687 = vunpack.c.l.b16 %v2167
      %v2688 = vunpack.c.l.b16 %v2168
      %v2689 = vunpack.c.l.b16 %v2169
      %v2690 = vunpack.c.l.b16 %v2170
      %v2691 = vunpack.c.l.b16 %v2171
      %v2692 = vunpack.c.l.b16 %v2172
      %v2693 = vunpack.c.l.b16 %v2173
      %v2694 = vunpack.c.l.b16 %v2174
      %v2695 = vunpack.c.l.b16 %v2175
      %v2696 = vunpack.c.l.b16 %v2176
      %v2697 = vunpack.c.l.b16 %v2177
      %v2698 = vunpack.c.l.b16 %v2178
      %v2699 = vunpack.c.l.b16 %v2179
      %v2700 = vunpack.c.l.b16 %v2180
      %v2701 = vunpack.c.l.b16 %v2181
      %v2702 = vunpack.c.l.b16 %v2182
      %v2703 = vunpack.c.l.b16 %v2183
      %v2704 = vunpack.c.l.b16 %v2184
      %v2705 = vunpack.c.l.b16 %v2185
      %v2706 = vunpack.c.l.b16 %v2186
      %v2707 = vunpack.c.l.b16 %v2187
      %v2708 = vunpack.c.l.b16 %v2188
      %v2709 = vunpack.c.l.b16 %v2189
      %v2710 = vunpack.c.l.b16 %v2190
      %v2711 = vunpack.c.l.b16 %v2191
      %v2712 = vunpack.c.l.b16 %v2192
      %v2713 = vunpack.c.l.b16 %v2193
      %v2714 = vunpack.c.l.b16 %v2194
      %v2715 = vunpack.c.l.b16 %v2195
      %v2716 = vunpack.c.l.b16 %v2196
      %v2717 = vunpack.c.l.b16 %v2197
      %v2718 = vunpack.c.l.b16 %v2198
      %v2719 = vunpack.c.l.b16 %v2199
      %v2720 = vunpack.c.l.b16 %v2200
      %v2721 = vunpack.c.l.b16 %v2201
      %v2722 = vunpack.c.l.b16 %v2202
      %v2723 = vunpack.c.l.b16 %v2203
      %v2724 = vunpack.c.l.b16 %v2204
      %v2725 = vunpack.c.l.b16 %v2205
      %v2726 = vunpack.c.l.b16 %v2206
      %v2727 = vunpack.c.l.b16 %v2207
      %v2728 = vunpack.c.l.b16 %v2208
      %v2729 = vunpack.c.l.b16 %v2209
      %v2730 = vunpack.c.l.b16 %v2210
      %v2731 = vunpack.c.l.b16 %v2211
      %v2732 = vunpack.c.l.b16 %v2212
      %v2733 = vunpack.c.l.b16 %v2213
      %v2734 = vunpack.c.l.b16 %v2214
      %v2735 = vunpack.c.l.b16 %v2215
      %v2736 = vunpack.c.l.b16 %v2216
      %v2737 = vunpack.c.l.b16 %v2217
      %v2738 = vunpack.c.l.b16 %v2218
      %v2739 = vunpack.c.l.b16 %v2219
      %v2740 = vunpack.c.l.b16 %v2220
      %v2741 = vunpack.c.l.b16 %v2221
      %v2742 = vunpack.c.l.b16 %v2222
      %v2743 = vunpack.c.l.b16 %v2223
      %v2744 = vunpack.c.l.b16 %v2224
      %v2745 = vunpack.c.l.b16 %v2225
      %v2746 = vunpack.c.l.b16 %v2226
      %v2747 = vunpack.c.l.b16 %v2227
      %v2748 = vunpack.c.l.b16 %v2228
      %v2749 = vunpack.c.l.b16 %v2229
      %v2750 = vunpack.c.l.b16 %v2230
      %v2751 = vunpack.c.l.b16 %v2231
      %v2752 = vunpack.c.l.b16 %v2232
      %v2753 = vunpack.c.l.b16 %v2233
      %v2754 = vunpack.c.l.b16 %v2234
      %v2755 = vunpack.c.l.b16 %v2235
      %v2756 = vunpack.c.l.b16 %v2236
      %v2757 = vunpack.c.l.b16 %v2237
      %v2758 = vunpack.c.l.b16 %v2238
      %v2759 = vunpack.c.l.b16 %v2239
      %v2760 = vunpack.c.l.b16 %v2240
      %v2761 = vunpack.c.l.b16 %v2241
      %v2762 = vunpack.c.l.b16 %v2242
      %v2763 = vunpack.c.l.b16 %v2243
      %v2764 = vunpack.c.l.b16 %v2244
      %v2765 = vunpack.c.l.b16 %v2245
      %v2766 = vunpack.c.l.b16 %v2246
      %v2767 = vunpack.c.l.b16 %v2247
      %v2768 = vunpack.c.l.b16 %v2248
      %v2769 = vunpack.c.l.b16 %v2249
      %v2770 = vunpack.c.l.b16 %v2250
      %v2771 = vunpack.c.l.b16 %v2251
      %v2772 = vunpack.c.l.b16 %v2252
      %v2773 = vunpack.c.l.b16 %v2253
      %v2774 = vunpack.c.l.b16 %v2254
      %v2775 = vunpack.c.l.b16 %v2255
      %v2776 = vunpack.c.l.b16 %v2256
      %v2777 = vunpack.c.l.b16 %v2257
      %v2778 = vunpack.c.l.b16 %v2258
      %v2779 = vunpack.c.l.b16 %v2259
      %v2780 = vunpack.c.l.b16 %v2260
      %v2781 = vunpack.c.l.b16 %v2261
      %v2782 = vunpack.c.l.b16 %v2262
      %v2783 = vunpack.c.l.b16 %v2263
      %v2784 = vunpack.c.l.b16 %v2264
      %v2785 = vunpack.c.l.b16 %v2265
      %v2786 = vunpack.c.l.b16 %v2266
      %v2787 = vunpack.c.l.b16 %v2267
      %v2788 = vunpack.c.l.b16 %v2268
      %v2789 = vunpack.c.l.b16 %v2269
      %v2790 = vunpack.c.l.b16 %v2270
      %v2791 = vunpack.c.l.b16 %v2271
      %v2792 = vunpack.c.l.b16 %v2272
      %v2793 = vunpack.c.l.b16 %v2273
      %v2794 = vunpack.c.l.b16 %v2274
      %v2795 = vunpack.c.l.b16 %v2275
      %v2796 = vunpack.c.l.b16 %v2276
      %v2797 = vunpack.c.l.b16 %v2277
      %v2798 = vunpack.c.l.b16 %v2278
      %v2799 = vunpack.c.l.b16 %v2279
      %v2800 = vunpack.c.l.b16 %v2280
      %v2801 = vunpack.c.l.b16 %v2281
      %v2802 = vunpack.c.l.b16 %v2282
      %v2803 = vunpack.c.l.b16 %v2283
      %v2804 = vunpack.c.l.b16 %v2284
      %v2805 = vunpack.c.l.b16 %v2285
      %v2806 = vunpack.c.l.b16 %v2286
      %v2807 = vunpack.c.l.b16 %v2287
      %v2808 = vunpack.c.l.b16 %v2288
      %v2809 = vunpack.c.l.b16 %v2289
      %v2810 = vunpack.c.l.b16 %v2290
      %v2811 = vunpack.c.l.b16 %v2291
      %v2812 = vunpack.c.l.b16 %v2292
      %v2813 = vunpack.c.l.b16 %v2293
      %v2814 = vunpack.c.l.b16 %v2294
      %v2815 = vunpack.c.l.b16 %v2295
      %v2816 = vunpack.c.l.b16 %v2296
      %v2817 = vunpack.c.l.b16 %v2297
      %v2818 = vunpack.c.l.b16 %v2298
      %v2819 = vunpack.c.l.b16 %v2299
      %v2820 = vunpack.c.l.b16 %v2300
      %v2821 = vunpack.c.l.b16 %v2301
      %v2822 = vunpack.c.l.b16 %v2302
      %v2823 = vunpack.c.l.b16 %v2303
      %v2824 = vunpack.c.l.b16 %v2304
      %v2825 = vunpack.c.l.b16 %v2305
      %v2826 = vunpack.c.l.b16 %v2306
      %v2827 = vunpack.c.l.b16 %v2307
      %v2828 = vunpack.c.l.b16 %v2308
      %v2829 = vunpack.c.l.b16 %v2309
      %v2830 = vunpack.c.l.b16 %v2310
      %v2831 = vunpack.c.l.b16 %v2311
      %v2832 = vunpack.c.l.b16 %v2312
      %v2833 = vunpack.c.l.b16 %v2313
      %v2834 = vunpack.c.l.b16 %v2314
      %v2835 = vunpack.c.l.b16 %v2315
      %v2836 = vunpack.c.l.b16 %v2316
      %v2837 = vunpack.c.l.b16 %v2317
      %v2838 = vunpack.c.l.b16 %v2318
      %v2839 = vunpack.c.l.b16 %v2319
      %v2840 = vunpack.c.l.b16 %v2320
      %v2841 = vunpack.c.l.b16 %v2321
      %v2842 = vunpack.c.l.b16 %v2322
      %v2843 = vunpack.c.l.b16 %v2323
      %v2844 = vunpack.c.l.b16 %v2324
      %v2845 = vunpack.c.l.b16 %v2325
      %v2846 = vunpack.c.l.b16 %v2326
      %v2847 = vunpack.c.l.b16 %v2327
      %v2848 = vunpack.c.l.b16 %v2328
      %v2849 = vunpack.c.l.b16 %v2329
      %v2850 = vunpack.c.l.b16 %v2330
      %v2851 = vunpack.c.l.b16 %v2331
      %v2852 = vunpack.c.l.b16 %v2332
      %v2853 = vunpack.c.l.b16 %v2333
      %v2854 = vunpack.c.l.b16 %v2334
      %v2855 = vunpack.c.l.b16 %v2335
      %v2856 = vunpack.c.l.b16 %v2336
      %v2857 = vunpack.c.l.b16 %v2337
      %v2858 = vunpack.c.l.b16 %v2338
      %v2859 = vunpack.c.l.b16 %v2339
      %v2860 = vunpack.c.l.b16 %v2340
      %v2861 = vunpack.c.l.b16 %v2341
      %v2862 = vunpack.c.l.b16 %v2342
      %v2863 = vunpack.c.l.b16 %v2343
      %v2864 = vunpack.c.l.b16 %v2344
      %v2865 = vunpack.c.l.b16 %v2345
      %v2866 = vunpack.c.l.b16 %v2346
      %v2867 = vunpack.c.l.b16 %v2347
      %v2868 = vunpack.c.l.b16 %v2348
      %v2869 = vunpack.c.l.b16 %v2349
      %v2870 = vunpack.c.l.b16 %v2350
      %v2871 = vunpack.c.l.b16 %v2351
      %v2872 = vunpack.c.l.b16 %v2352
      %v2873 = vunpack.c.l.b16 %v2353
      %v2874 = vunpack.c.l.b16 %v2354
      %v2875 = vunpack.c.l.b16 %v2355
      %v2876 = vunpack.c.l.b16 %v2356
      %v2877 = vunpack.c.l.b16 %v2357
      %v2878 = vunpack.c.l.b16 %v2358
      %v2879 = vunpack.c.l.b16 %v2359
      %v2880 = vunpack.c.l.b16 %v2360
      %v2881 = vunpack.c.l.b16 %v2361
      %v2882 = vunpack.c.l.b16 %v2362
      %v2883 = vunpack.c.l.b16 %v2363
      %v2884 = vunpack.c.l.b16 %v2364
      %v2885 = vunpack.c.l.b16 %v2365
      %v2886 = vunpack.c.l.b16 %v2366
      %v2887 = vunpack.c.l.b16 %v2367
      %v2888 = vunpack.c.l.b16 %v2368
      %v2889 = vunpack.c.l.b16 %v2369
      %v2890 = vunpack.c.l.b16 %v2370
      %v2891 = vunpack.c.l.b16 %v2371
      %v2892 = vunpack.c.l.b16 %v2372
      %v2893 = vunpack.c.l.b16 %v2373
      %v2894 = vunpack.c.l.b16 %v2374
      %v2895 = vunpack.c.l.b16 %v2375
      %v2896 = vunpack.c.l.b16 %v2376
      %v2897 = vunpack.c.l.b16 %v2377
      %v2898 = vunpack.c.l.b16 %v2378
      %v2899 = vunpack.c.l.b16 %v2379
      %v2900 = vunpack.c.l.b16 %v2380
      %v2901 = vunpack.c.l.b16 %v2381
      %v2902 = vunpack.c.l.b16 %v2382
      %v2903 = vunpack.c.l.b16 %v2383
      %v2904 = vunpack.c.l.b16 %v2384
      %v2905 = vunpack.c.l.b16 %v2385
      %v2906 = vunpack.c.l.b16 %v2386
      %v2907 = vunpack.c.l.b16 %v2387
      %v2908 = vunpack.c.l.b16 %v2388
      %v2909 = vunpack.c.l.b16 %v2389
      %v2910 = vunpack.c.l.b16 %v2390
      %v2911 = vunpack.c.l.b16 %v2391
      %v2912 = vunpack.c.l.b16 %v2392
      %v2913 = vunpack.c.l.b16 %v2393
      %v2914 = vunpack.c.l.b16 %v2394
      %v2915 = vunpack.c.l.b16 %v2395
      %v2916 = vunpack.c.l.b16 %v2396
      %v2917 = vunpack.c.l.b16 %v2397
      %v2918 = vunpack.c.l.b16 %v2398
      %v2919 = vunpack.c.l.b16 %v2399
      %v2920 = vunpack.c.l.b16 %v2400
      %v2921 = vunpack.c.l.b16 %v2401
      %v2922 = vunpack.c.l.b16 %v2402
      %v2923 = vunpack.c.l.b16 %v2403
      %v2924 = vunpack.c.l.b16 %v2404
      %v2925 = vunpack.c.l.b16 %v2405
      %v2926 = vunpack.c.l.b16 %v2406
      %v2927 = vunpack.c.l.b16 %v2407
      %v2928 = vunpack.c.l.b16 %v2408
      %v2929 = vunpack.c.l.b16 %v2409
      %v2930 = vunpack.c.l.b16 %v2410
      %v2931 = vunpack.c.l.b16 %v2411
      %v2932 = vpack.c.b16 %v2677, %v2676
      %v2933 = vpack.c.b16 %v2679, %v2678
      %v2934 = vpack.c.b16 %v2681, %v2680
      %v2935 = vpack.c.b16 %v2683, %v2682
      %v2936 = vpack.c.b16 %v2685, %v2684
      %v2937 = vpack.c.b16 %v2687, %v2686
      %v2938 = vpack.c.b16 %v2689, %v2688
      %v2939 = vpack.c.b16 %v2691, %v2690
      %v2940 = vpack.c.b16 %v2693, %v2692
      %v2941 = vpack.c.b16 %v2695, %v2694
      %v2942 = vpack.c.b16 %v2697, %v2696
      %v2943 = vpack.c.b16 %v2699, %v2698
      %v2944 = vpack.c.b16 %v2701, %v2700
      %v2945 = vpack.c.b16 %v2703, %v2702
      %v2946 = vpack.c.b16 %v2705, %v2704
      %v2947 = vpack.c.b16 %v2707, %v2706
      %v2948 = vpack.c.b16 %v2709, %v2708
      %v2949 = vpack.c.b16 %v2711, %v2710
      %v2950 = vpack.c.b16 %v2713, %v2712
      %v2951 = vpack.c.b16 %v2715, %v2714
      %v2952 = vpack.c.b16 %v2717, %v2716
      %v2953 = vpack.c.b16 %v2719, %v2718
      %v2954 = vpack.c.b16 %v2721, %v2720
      %v2955 = vpack.c.b16 %v2723, %v2722
      %v2956 = vpack.c.b16 %v2725, %v2724
      %v2957 = vpack.c.b16 %v2727, %v2726
      %v2958 = vpack.c.b16 %v2729, %v2728
      %v2959 = vpack.c.b16 %v2731, %v2730
      %v2960 = vpack.c.b16 %v2733, %v2732
      %v2961 = vpack.c.b16 %v2735, %v2734
      %v2962 = vpack.c.b16 %v2737, %v2736
      %v2963 = vpack.c.b16 %v2739, %v2738
      %v2964 = vpack.c.b16 %v2741, %v2740
      %v2965 = vpack.c.b16 %v2743, %v2742
      %v2966 = vpack.c.b16 %v2745, %v2744
      %v2967 = vpack.c.b16 %v2747, %v2746
      %v2968 = vpack.c.b16 %v2749, %v2748
      %v2969 = vpack.c.b16 %v2751, %v2750
      %v2970 = vpack.c.b16 %v2753, %v2752
      %v2971 = vpack.c.b16 %v2755, %v2754
      %v2972 = vpack.c.b16 %v2757, %v2756
      %v2973 = vpack.c.b16 %v2759, %v2758
      %v2974 = vpack.c.b16 %v2761, %v2760
      %v2975 = vpack.c.b16 %v2763, %v2762
      %v2976 = vpack.c.b16 %v2765, %v2764
      %v2977 = vpack.c.b16 %v2767, %v2766
      %v2978 = vpack.c.b16 %v2769, %v2768
      %v2979 = vpack.c.b16 %v2771, %v2770
      %v2980 = vpack.c.b16 %v2773, %v2772
      %v2981 = vpack.c.b16 %v2775, %v2774
      %v2982 = vpack.c.b16 %v2777, %v2776
      %v2983 = vpack.c.b16 %v2779, %v2778
      %v2984 = vpack.c.b16 %v2781, %v2780
      %v2985 = vpack.c.b16 %v2783, %v2782
      %v2986 = vpack.c.b16 %v2785, %v2784
      %v2987 = vpack.c.b16 %v2787, %v2786
      %v2988 = vpack.c.b16 %v2789, %v2788
      %v2989 = vpack.c.b16 %v2791, %v2790
      %v2990 = vpack.c.b16 %v2793, %v2792
      %v2991 = vpack.c.b16 %v2795, %v2794
      %v2992 = vpack.c.b16 %v2797, %v2796
      %v2993 = vpack.c.b16 %v2799, %v2798
      %v2994 = vpack.c.b16 %v2801, %v2800
      %v2995 = vpack.c.b16 %v2803, %v2802
      %v2996 = vpack.c.b16 %v2805, %v2804
      %v2997 = vpack.c.b16 %v2807, %v2806
      %v2998 = vpack.c.b16 %v2809, %v2808
      %v2999 = vpack.c.b16 %v2811, %v2810
      %v3000 = vpack.c.b16 %v2813, %v2812
      %v3001 = vpack.c.b16 %v2815, %v2814
      %v3002 = vpack.c.b16 %v2817, %v2816
      %v3003 = vpack.c.b16 %v2819, %v2818
      %v3004 = vpack.c.b16 %v2821, %v2820
      %v3005 = vpack.c.b16 %v2823, %v2822
      %v3006 = vpack.c.b16 %v2825, %v2824
      %v3007 = vpack.c.b16 %v2827, %v2826
      %v3008 = vpack.c.b16 %v2829, %v2828
      %v3009 = vpack.c.b16 %v2831, %v2830
      %v3010 = vpack.c.b16 %v2833, %v2832
      %v3011 = vpack.c.b16 %v2835, %v2834
      %v3012 = vpack.c.b16 %v2837, %v2836
      %v3013 = vpack.c.b16 %v2839, %v2838
      %v3014 = vpack.c.b16 %v2841, %v2840
      %v3015 = vpack.c.b16 %v2843, %v2842
      %v3016 = vpack.c.b16 %v2845, %v2844
      %v3017 = vpack.c.b16 %v2847, %v2846
      %v3018 = vpack.c.b16 %v2849, %v2848
      %v3019 = vpack.c.b16 %v2851, %v2850
      %v3020 = vpack.c.b16 %v2853, %v2852
      %v3021 = vpack.c.b16 %v2855, %v2854
      %v3022 = vpack.c.b16 %v2857, %v2856
      %v3023 = vpack.c.b16 %v2859, %v2858
      %v3024 = vpack.c.b16 %v2861, %v2860
      %v3025 = vpack.c.b16 %v2863, %v2862
      %v3026 = vpack.c.b16 %v2865, %v2864
      %v3027 = vpack.c.b16 %v2867, %v2866
      %v3028 = vpack.c.b16 %v2869, %v2868
      %v3029 = vpack.c.b16 %v2871, %v2870
      %v3030 = vpack.c.b16 %v2873, %v2872
      %v3031 = vpack.c.b16 %v2875, %v2874
      %v3032 = vpack.c.b16 %v2877, %v2876
      %v3033 = vpack.c.b16 %v2879, %v2878
      %v3034 = vpack.c.b16 %v2881, %v2880
      %v3035 = vpack.c.b16 %v2883, %v2882
      %v3036 = vpack.c.b16 %v2885, %v2884
      %v3037 = vpack.c.b16 %v2887, %v2886
      %v3038 = vpack.c.b16 %v2889, %v2888
      %v3039 = vpack.c.b16 %v2891, %v2890
      %v3040 = vpack.c.b16 %v2893, %v2892
      %v3041 = vpack.c.b16 %v2895, %v2894
      %v3042 = vpack.c.b16 %v2897, %v2896
      %v3043 = vpack.c.b16 %v2899, %v2898
      %v3044 = vpack.c.b16 %v2901, %v2900
      %v3045 = vpack.c.b16 %v2903, %v2902
      %v3046 = vpack.c.b16 %v2905, %v2904
      %v3047 = vpack.c.b16 %v2907, %v2906
      %v3048 = vpack.c.b16 %v2909, %v2908
      %v3049 = vpack.c.b16 %v2911, %v2910
      %v3050 = vpack.c.b16 %v2913, %v2912
      %v3051 = vpack.c.b16 %v2915, %v2914
      %v3052 = vpack.c.b16 %v2917, %v2916
      %v3053 = vpack.c.b16 %v2919, %v2918
      %v3054 = vpack.c.b16 %v2921, %v2920
      %v3055 = vpack.c.b16 %v2923, %v2922
      %v3056 = vpack.c.b16 %v2925, %v2924
      %v3057 = vpack.c.b16 %v2927, %v2926
      %v3058 = vpack.c.b16 %v2929, %v2928
      %v3059 = vpack.c.b16 %v2931, %v2930
      %3188 = vmatprep.subr.bf16.mxu0 0
      %3189 = vmatpush1.bf16.msra.mxu0 %v2939
      %3190 = vmatprep.subr.bf16.mxu0 0
      %3191 = vmatpush1.bf16.msra.mxu0 %v2938
      %3192 = vmatprep.subr.bf16.mxu0 0
      %3193 = vmatpush1.bf16.msra.mxu0 %v2937
      %3194 = vmatprep.subr.bf16.mxu0 0
      %3195 = vmatpush1.bf16.msra.mxu0 %v2936
      %3196 = vmatprep.subr.bf16.mxu0 0
      %3197 = vmatpush1.bf16.msra.mxu0 %v2935
      %3198 = vmatprep.subr.bf16.mxu0 0
      %3199 = vmatpush1.bf16.msra.mxu0 %v2934
      %3200 = vmatprep.subr.bf16.mxu0 0
      %3201 = vmatpush1.bf16.msra.mxu0 %v2933
      %3202 = vmatprep.subr.bf16.mxu0 0
      %3203 = vmatpush1.bf16.msra.mxu0 %v2932
      %3204 = vmatprep.subr.bf16.mxu0 0
      %3205 = vmatpush2.bf16.msra.mxu0 %v2947
      %3206 = vmatprep.subr.bf16.mxu0 0
      %3207 = vmatpush2.bf16.msra.mxu0 %v2946
      %3208 = vmatprep.subr.bf16.mxu0 0
      %3209 = vmatpush2.bf16.msra.mxu0 %v2945
      %3210 = vmatprep.subr.bf16.mxu0 0
      %3211 = vmatpush2.bf16.msra.mxu0 %v2944
      %3212 = vmatprep.subr.bf16.mxu0 0
      %3213 = vmatpush2.bf16.msra.mxu0 %v2943
      %3214 = vmatprep.subr.bf16.mxu0 0
      %3215 = vmatpush2.bf16.msra.mxu0 %v2942
      %3216 = vmatprep.subr.bf16.mxu0 0
      %3217 = vmatpush2.bf16.msra.mxu0 %v2941
      %3218 = vmatprep.subr.bf16.mxu0 0
      %3219 = vmatpush2.bf16.msra.mxu0 %v2940
      %3220 = vmatprep.mubr.bf16.mxu0 %v2138
      %3221 = vmatmul.mubr.bf16.gmra.mxu0 %v2137
      %v3222 = vpop.f32.mrf.mxu0
      %v3223 = vadd.f32 %v2418, %v3222
      %v3224 = vpop.f32.mrf.mxu0
      %v3225 = vpop.f32.mrf.mxu0
      %v3226 = vpop.f32.mrf.mxu0
      %3227 = vdwg.mxu0
      %3228 = vmatprep.subr.bf16.mxu0 0
      %3229 = vmatpush1.bf16.msra.mxu0 %v2955
      %3230 = vmatprep.subr.bf16.mxu0 0
      %3231 = vmatpush1.bf16.msra.mxu0 %v2954
      %3232 = vmatprep.subr.bf16.mxu0 0
      %3233 = vmatpush1.bf16.msra.mxu0 %v2953
      %3234 = vmatprep.subr.bf16.mxu0 0
      %3235 = vmatpush1.bf16.msra.mxu0 %v2952
      %3236 = vmatprep.subr.bf16.mxu0 0
      %3237 = vmatpush1.bf16.msra.mxu0 %v2951
      %3238 = vmatprep.subr.bf16.mxu0 0
      %3239 = vmatpush1.bf16.msra.mxu0 %v2950
      %3240 = vmatprep.subr.bf16.mxu0 0
      %3241 = vmatpush1.bf16.msra.mxu0 %v2949
      %3242 = vmatprep.subr.bf16.mxu0 0
      %3243 = vmatpush1.bf16.msra.mxu0 %v2948
      %3244 = vmatprep.subr.bf16.mxu0 0
      %3245 = vmatpush2.bf16.msra.mxu0 %v2963
      %3246 = vmatprep.subr.bf16.mxu0 0
      %3247 = vmatpush2.bf16.msra.mxu0 %v2962
      %3248 = vmatprep.subr.bf16.mxu0 0
      %3249 = vmatpush2.bf16.msra.mxu0 %v2961
      %3250 = vmatprep.subr.bf16.mxu0 0
      %3251 = vmatpush2.bf16.msra.mxu0 %v2960
      %3252 = vmatprep.subr.bf16.mxu0 0
      %3253 = vmatpush2.bf16.msra.mxu0 %v2959
      %3254 = vmatprep.subr.bf16.mxu0 0
      %3255 = vmatpush2.bf16.msra.mxu0 %v2958
      %3256 = vmatprep.subr.bf16.mxu0 0
      %3257 = vmatpush2.bf16.msra.mxu0 %v2957
      %3258 = vmatprep.subr.bf16.mxu0 0
      %3259 = vmatpush2.bf16.msra.mxu0 %v2956
      %3260 = vmatprep.mubr.bf16.mxu0 %v2140
      %3261 = vmatmul.mubr.bf16.gmra.mxu0 %v2139
      %v3262 = vpop.f32.mrf.mxu0
      %v3263 = vadd.f32 %v3223, %v3262
      %v3264 = vpop.f32.mrf.mxu0
      %v3265 = vpop.f32.mrf.mxu0
      %v3266 = vpop.f32.mrf.mxu0
      %3267 = vdwg.mxu0
      %3268 = vmatprep.subr.bf16.mxu0 0
      %3269 = vmatpush1.bf16.msra.mxu0 %v2971
      %3270 = vmatprep.subr.bf16.mxu0 0
      %3271 = vmatpush1.bf16.msra.mxu0 %v2970
      %3272 = vmatprep.subr.bf16.mxu0 0
      %3273 = vmatpush1.bf16.msra.mxu0 %v2969
      %3274 = vmatprep.subr.bf16.mxu0 0
      %3275 = vmatpush1.bf16.msra.mxu0 %v2968
      %3276 = vmatprep.subr.bf16.mxu0 0
      %3277 = vmatpush1.bf16.msra.mxu0 %v2967
      %3278 = vmatprep.subr.bf16.mxu0 0
      %3279 = vmatpush1.bf16.msra.mxu0 %v2966
      %3280 = vmatprep.subr.bf16.mxu0 0
      %3281 = vmatpush1.bf16.msra.mxu0 %v2965
      %3282 = vmatprep.subr.bf16.mxu0 0
      %3283 = vmatpush1.bf16.msra.mxu0 %v2964
      %3284 = vmatprep.subr.bf16.mxu0 0
      %3285 = vmatpush2.bf16.msra.mxu0 %v2979
      %3286 = vmatprep.subr.bf16.mxu0 0
      %3287 = vmatpush2.bf16.msra.mxu0 %v2978
      %3288 = vmatprep.subr.bf16.mxu0 0
      %3289 = vmatpush2.bf16.msra.mxu0 %v2977
      %3290 = vmatprep.subr.bf16.mxu0 0
      %3291 = vmatpush2.bf16.msra.mxu0 %v2976
      %3292 = vmatprep.subr.bf16.mxu0 0
      %3293 = vmatpush2.bf16.msra.mxu0 %v2975
      %3294 = vmatprep.subr.bf16.mxu0 0
      %3295 = vmatpush2.bf16.msra.mxu0 %v2974
      %3296 = vmatprep.subr.bf16.mxu0 0
      %3297 = vmatpush2.bf16.msra.mxu0 %v2973
      %3298 = vmatprep.subr.bf16.mxu0 0
      %3299 = vmatpush2.bf16.msra.mxu0 %v2972
      %3300 = vmatprep.mubr.bf16.mxu0 %v2142
      %3301 = vmatmul.mubr.bf16.gmra.mxu0 %v2141
      %v3302 = vpop.f32.mrf.mxu0
      %v3303 = vadd.f32 %v3263, %v3302
      %v3304 = vpop.f32.mrf.mxu0
      %v3305 = vpop.f32.mrf.mxu0
      %v3306 = vpop.f32.mrf.mxu0
      %3307 = vdwg.mxu0
      %3308 = vmatprep.subr.bf16.mxu0 0
      %3309 = vmatpush1.bf16.msra.mxu0 %v2987
      %3310 = vmatprep.subr.bf16.mxu0 0
      %3311 = vmatpush1.bf16.msra.mxu0 %v2986
      %3312 = vmatprep.subr.bf16.mxu0 0
      %3313 = vmatpush1.bf16.msra.mxu0 %v2985
      %3314 = vmatprep.subr.bf16.mxu0 0
      %3315 = vmatpush1.bf16.msra.mxu0 %v2984
      %3316 = vmatprep.subr.bf16.mxu0 0
      %3317 = vmatpush1.bf16.msra.mxu0 %v2983
      %3318 = vmatprep.subr.bf16.mxu0 0
      %3319 = vmatpush1.bf16.msra.mxu0 %v2982
      %3320 = vmatprep.subr.bf16.mxu0 0
      %3321 = vmatpush1.bf16.msra.mxu0 %v2981
      %3322 = vmatprep.subr.bf16.mxu0 0
      %3323 = vmatpush1.bf16.msra.mxu0 %v2980
      %3324 = vmatprep.subr.bf16.mxu0 0
      %3325 = vmatpush2.bf16.msra.mxu0 %v2995
      %3326 = vmatprep.subr.bf16.mxu0 0
      %3327 = vmatpush2.bf16.msra.mxu0 %v2994
      %3328 = vmatprep.subr.bf16.mxu0 0
      %3329 = vmatpush2.bf16.msra.mxu0 %v2993
      %3330 = vmatprep.subr.bf16.mxu0 0
      %3331 = vmatpush2.bf16.msra.mxu0 %v2992
      %3332 = vmatprep.subr.bf16.mxu0 0
      %3333 = vmatpush2.bf16.msra.mxu0 %v2991
      %3334 = vmatprep.subr.bf16.mxu0 0
      %3335 = vmatpush2.bf16.msra.mxu0 %v2990
      %3336 = vmatprep.subr.bf16.mxu0 0
      %3337 = vmatpush2.bf16.msra.mxu0 %v2989
      %3338 = vmatprep.subr.bf16.mxu0 0
      %3339 = vmatpush2.bf16.msra.mxu0 %v2988
      %3340 = vmatprep.mubr.bf16.mxu0 %v2144
      %3341 = vmatmul.mubr.bf16.gmra.mxu0 %v2143
      %v3342 = vpop.f32.mrf.mxu0
      %v3343 = vadd.f32 %v3303, %v3342
      %v3344 = vpop.f32.mrf.mxu0
      %v3345 = vpop.f32.mrf.mxu0
      %v3346 = vpop.f32.mrf.mxu0
      %3347 = vdwg.mxu0
      %3348 = vmatprep.subr.bf16.mxu0 0
      %3349 = vmatpush1.bf16.msra.mxu0 %v3003
      %3350 = vmatprep.subr.bf16.mxu0 0
      %3351 = vmatpush1.bf16.msra.mxu0 %v3002
      %3352 = vmatprep.subr.bf16.mxu0 0
      %3353 = vmatpush1.bf16.msra.mxu0 %v3001
      %3354 = vmatprep.subr.bf16.mxu0 0
      %3355 = vmatpush1.bf16.msra.mxu0 %v3000
      %3356 = vmatprep.subr.bf16.mxu0 0
      %3357 = vmatpush1.bf16.msra.mxu0 %v2999
      %3358 = vmatprep.subr.bf16.mxu0 0
      %3359 = vmatpush1.bf16.msra.mxu0 %v2998
      %3360 = vmatprep.subr.bf16.mxu0 0
      %3361 = vmatpush1.bf16.msra.mxu0 %v2997
      %3362 = vmatprep.subr.bf16.mxu0 0
      %3363 = vmatpush1.bf16.msra.mxu0 %v2996
      %3364 = vmatprep.subr.bf16.mxu0 0
      %3365 = vmatpush2.bf16.msra.mxu0 %v3011
      %3366 = vmatprep.subr.bf16.mxu0 0
      %3367 = vmatpush2.bf16.msra.mxu0 %v3010
      %3368 = vmatprep.subr.bf16.mxu0 0
      %3369 = vmatpush2.bf16.msra.mxu0 %v3009
      %3370 = vmatprep.subr.bf16.mxu0 0
      %3371 = vmatpush2.bf16.msra.mxu0 %v3008
      %3372 = vmatprep.subr.bf16.mxu0 0
      %3373 = vmatpush2.bf16.msra.mxu0 %v3007
      %3374 = vmatprep.subr.bf16.mxu0 0
      %3375 = vmatpush2.bf16.msra.mxu0 %v3006
      %3376 = vmatprep.subr.bf16.mxu0 0
      %3377 = vmatpush2.bf16.msra.mxu0 %v3005
      %3378 = vmatprep.subr.bf16.mxu0 0
      %3379 = vmatpush2.bf16.msra.mxu0 %v3004
      %3380 = vmatprep.mubr.bf16.mxu0 %v2146
      %3381 = vmatmul.mubr.bf16.gmra.mxu0 %v2145
      %v3382 = vpop.f32.mrf.mxu0
      %v3383 = vadd.f32 %v3343, %v3382
      %v3384 = vpop.f32.mrf.mxu0
      %v3385 = vpop.f32.mrf.mxu0
      %v3386 = vpop.f32.mrf.mxu0
      %3387 = vdwg.mxu0
      %3388 = vmatprep.subr.bf16.mxu0 0
      %3389 = vmatpush1.bf16.msra.mxu0 %v3019
      %3390 = vmatprep.subr.bf16.mxu0 0
      %3391 = vmatpush1.bf16.msra.mxu0 %v3018
      %3392 = vmatprep.subr.bf16.mxu0 0
      %3393 = vmatpush1.bf16.msra.mxu0 %v3017
      %3394 = vmatprep.subr.bf16.mxu0 0
      %3395 = vmatpush1.bf16.msra.mxu0 %v3016
      %3396 = vmatprep.subr.bf16.mxu0 0
      %3397 = vmatpush1.bf16.msra.mxu0 %v3015
      %3398 = vmatprep.subr.bf16.mxu0 0
      %3399 = vmatpush1.bf16.msra.mxu0 %v3014
      %3400 = vmatprep.subr.bf16.mxu0 0
      %3401 = vmatpush1.bf16.msra.mxu0 %v3013
      %3402 = vmatprep.subr.bf16.mxu0 0
      %3403 = vmatpush1.bf16.msra.mxu0 %v3012
      %3404 = vmatprep.subr.bf16.mxu0 0
      %3405 = vmatpush2.bf16.msra.mxu0 %v3027
      %3406 = vmatprep.subr.bf16.mxu0 0
      %3407 = vmatpush2.bf16.msra.mxu0 %v3026
      %3408 = vmatprep.subr.bf16.mxu0 0
      %3409 = vmatpush2.bf16.msra.mxu0 %v3025
      %3410 = vmatprep.subr.bf16.mxu0 0
      %3411 = vmatpush2.bf16.msra.mxu0 %v3024
      %3412 = vmatprep.subr.bf16.mxu0 0
      %3413 = vmatpush2.bf16.msra.mxu0 %v3023
      %3414 = vmatprep.subr.bf16.mxu0 0
      %3415 = vmatpush2.bf16.msra.mxu0 %v3022
      %3416 = vmatprep.subr.bf16.mxu0 0
      %3417 = vmatpush2.bf16.msra.mxu0 %v3021
      %3418 = vmatprep.subr.bf16.mxu0 0
      %3419 = vmatpush2.bf16.msra.mxu0 %v3020
      %3420 = vmatprep.mubr.bf16.mxu0 %v2148
      %3421 = vmatmul.mubr.bf16.gmra.mxu0 %v2147
      %v3422 = vpop.f32.mrf.mxu0
      %v3423 = vadd.f32 %v3383, %v3422
      %v3424 = vpop.f32.mrf.mxu0
      %v3425 = vpop.f32.mrf.mxu0
      %v3426 = vpop.f32.mrf.mxu0
      %3427 = vdwg.mxu0
      %3428 = vmatprep.subr.bf16.mxu0 0
      %3429 = vmatpush1.bf16.msra.mxu0 %v3035
      %3430 = vmatprep.subr.bf16.mxu0 0
      %3431 = vmatpush1.bf16.msra.mxu0 %v3034
      %3432 = vmatprep.subr.bf16.mxu0 0
      %3433 = vmatpush1.bf16.msra.mxu0 %v3033
      %3434 = vmatprep.subr.bf16.mxu0 0
      %3435 = vmatpush1.bf16.msra.mxu0 %v3032
      %3436 = vmatprep.subr.bf16.mxu0 0
      %3437 = vmatpush1.bf16.msra.mxu0 %v3031
      %3438 = vmatprep.subr.bf16.mxu0 0
      %3439 = vmatpush1.bf16.msra.mxu0 %v3030
      %3440 = vmatprep.subr.bf16.mxu0 0
      %3441 = vmatpush1.bf16.msra.mxu0 %v3029
      %3442 = vmatprep.subr.bf16.mxu0 0
      %3443 = vmatpush1.bf16.msra.mxu0 %v3028
      %3444 = vmatprep.subr.bf16.mxu0 0
      %3445 = vmatpush2.bf16.msra.mxu0 %v3043
      %3446 = vmatprep.subr.bf16.mxu0 0
      %3447 = vmatpush2.bf16.msra.mxu0 %v3042
      %3448 = vmatprep.subr.bf16.mxu0 0
      %3449 = vmatpush2.bf16.msra.mxu0 %v3041
      %3450 = vmatprep.subr.bf16.mxu0 0
      %3451 = vmatpush2.bf16.msra.mxu0 %v3040
      %3452 = vmatprep.subr.bf16.mxu0 0
      %3453 = vmatpush2.bf16.msra.mxu0 %v3039
      %3454 = vmatprep.subr.bf16.mxu0 0
      %3455 = vmatpush2.bf16.msra.mxu0 %v3038
      %3456 = vmatprep.subr.bf16.mxu0 0
      %3457 = vmatpush2.bf16.msra.mxu0 %v3037
      %3458 = vmatprep.subr.bf16.mxu0 0
      %3459 = vmatpush2.bf16.msra.mxu0 %v3036
      %3460 = vmatprep.mubr.bf16.mxu0 %v2150
      %3461 = vmatmul.mubr.bf16.gmra.mxu0 %v2149
      %v3462 = vpop.f32.mrf.mxu0
      %v3463 = vadd.f32 %v3423, %v3462
      %v3464 = vpop.f32.mrf.mxu0
      %v3465 = vpop.f32.mrf.mxu0
      %v3466 = vpop.f32.mrf.mxu0
      %3467 = vdwg.mxu0
      %3468 = vmatprep.subr.bf16.mxu0 0
      %3469 = vmatpush1.bf16.msra.mxu0 %v3051
      %3470 = vmatprep.subr.bf16.mxu0 0
      %3471 = vmatpush1.bf16.msra.mxu0 %v3050
      %3472 = vmatprep.subr.bf16.mxu0 0
      %3473 = vmatpush1.bf16.msra.mxu0 %v3049
      %3474 = vmatprep.subr.bf16.mxu0 0
      %3475 = vmatpush1.bf16.msra.mxu0 %v3048
      %3476 = vmatprep.subr.bf16.mxu0 0
      %3477 = vmatpush1.bf16.msra.mxu0 %v3047
      %3478 = vmatprep.subr.bf16.mxu0 0
      %3479 = vmatpush1.bf16.msra.mxu0 %v3046
      %3480 = vmatprep.subr.bf16.mxu0 0
      %3481 = vmatpush1.bf16.msra.mxu0 %v3045
      %3482 = vmatprep.subr.bf16.mxu0 0
      %3483 = vmatpush1.bf16.msra.mxu0 %v3044
      %3484 = vmatprep.subr.bf16.mxu0 0
      %3485 = vmatpush2.bf16.msra.mxu0 %v3059
      %3486 = vmatprep.subr.bf16.mxu0 0
      %3487 = vmatpush2.bf16.msra.mxu0 %v3058
      %3488 = vmatprep.subr.bf16.mxu0 0
      %3489 = vmatpush2.bf16.msra.mxu0 %v3057
      %3490 = vmatprep.subr.bf16.mxu0 0
      %3491 = vmatpush2.bf16.msra.mxu0 %v3056
      %3492 = vmatprep.subr.bf16.mxu0 0
      %3493 = vmatpush2.bf16.msra.mxu0 %v3055
      %3494 = vmatprep.subr.bf16.mxu0 0
      %3495 = vmatpush2.bf16.msra.mxu0 %v3054
      %3496 = vmatprep.subr.bf16.mxu0 0
      %3497 = vmatpush2.bf16.msra.mxu0 %v3053
      %3498 = vmatprep.subr.bf16.mxu0 0
      %3499 = vmatpush2.bf16.msra.mxu0 %v3052
      %3500 = vmatprep.mubr.bf16.mxu0 %v2152
      %3501 = vmatmul.mubr.bf16.gmra.mxu0 %v2151
      %v3502 = vpop.f32.mrf.mxu0
      %v3503 = vadd.f32 %v3463, %v3502
      %v3504 = vpop.f32.mrf.mxu0
      %v3505 = vpop.f32.mrf.mxu0
      %v3506 = vpop.f32.mrf.mxu0
      %3507 = vdwg.mxu0
      %v3508 = vadd.f32 %v1316, %v3503
      %v3509 = vsel %vm673, %v3508, 0.0
      %3510 = vadd.xlane.f32.xlu0 %v3509
      %v3511 = vpop.xlane.xlu0 %3510
      %v3512 = vmul.f32 %v3511, %v1288
      %v3513 = vsub.f32 %v3508, %v3512
      %v3514 = vmul.f32 %v3513, %v3513
      %v3515 = vsel %vm673, %v3514, 0.0
      %3516 = vadd.xlane.f32.xlu0 %v3515
      %v3517 = vpop.xlane.xlu0 %3516
      %v3518 = vmul.f32 %v3517, %v1288
      %v3519 = vadd.f32 %v3518, 1e-05
      %v3520 = vrsqrt.pop %v3519
      %v3521 = vmul.f32 %v3513, %v3520
      %s3522 = scalar_lea.vmem %s12, %s34
      %v3523 = vld [vmem:[%s3522] sm:$0x1]
      %v3525 = vlaneseq
      %v3526 = vshrl.u32 %v3525, 7
      %v3527 = vsub.s32 0, %v3526
      %v3528 = vrot.slane %v3523, %v3527
      %v3530 = vmul.f32 %v3521, %v3528
      %s3531 = scalar_lea.vmem %s13, %s34
      %v3532 = vld [vmem:[%s3531] sm:$0x1]
      %v3534 = vlaneseq
      %v3535 = vshrl.u32 %v3534, 7
      %v3536 = vsub.s32 0, %v3535
      %v3537 = vrot.slane %v3532, %v3536
      %v3539 = vadd.f32 %v3530, %v3537
      %3540 = vst.msk [vmem:[#allocation2] sm:$0xff] %vm673, %v3539
      %p3541 = scmp.eq.s32.totalorder %s34, 1
      // Predicated region
      $region97: #{forward.1} parent=91 // pred_check
        %p3542 = pneg %p3541
      $region98: #{forward.1} parent=91 // pred_check_branch
        %3544 = sbr.rel (%p3542) target = $region100
      $region99: #{forward.1} parent=91 // pred_region
        %v3545 = vpack.c.bf16 %v3539, %v3539
        %v3546 = vld [vmem:[%s14] sm:$0xf]
        %v3547 = vld [vmem:[%s14 + $0x4] sm:$0xf]
        %v3548 = vld [vmem:[%s14 + $0x8] sm:$0xf]
        %v3549 = vld [vmem:[%s14 + $0xc] sm:$0xf]
        %v3550 = vld [vmem:[%s14 + $0x10] sm:$0xf]
        %v3551 = vld [vmem:[%s14 + $0x14] sm:$0xf]
        %v3552 = vld [vmem:[%s14 + $0x18] sm:$0xf]
        %v3553 = vld [vmem:[%s14 + $0x1c] sm:$0xf]
        %v3554 = vld [vmem:[%s15] sm:$0x1]
        %v3556 = vlaneseq
        %v3557 = vshrl.u32 %v3556, 7
        %v3558 = vsub.s32 0, %v3557
        %v3559 = vrot.slane %v3554, %v3558
        %v3569 = vunpack.c.l.b16 %v3546
        %v3570 = vunpack.c.l.b16 %v3547
        %v3571 = vunpack.c.l.b16 %v3548
        %v3572 = vunpack.c.l.b16 %v3549
        %v3573 = vunpack.c.l.b16 %v3550
        %v3574 = vunpack.c.l.b16 %v3551
        %v3575 = vunpack.c.l.b16 %v3552
        %v3576 = vunpack.c.l.b16 %v3553
        %v3577 = vpack.c.b16 %v3570, %v3569
        %v3578 = vpack.c.b16 %v3572, %v3571
        %v3579 = vpack.c.b16 %v3574, %v3573
        %v3580 = vpack.c.b16 %v3576, %v3575
        %v3586 = vsel %vm673, %v3545, 0
        %3588 = vmatprep.subr.bf16.mxu0 0
        %3589 = vmatpush1.bf16.msra.mxu0 0
        %3590 = vmatprep.subr.bf16.mxu0 0
        %3591 = vmatpush1.bf16.msra.mxu0 0
        %3592 = vmatprep.subr.bf16.mxu0 0
        %3593 = vmatpush1.bf16.msra.mxu0 0
        %3594 = vmatprep.subr.bf16.mxu0 0
        %3595 = vmatpush1.bf16.msra.mxu0 0
        %3596 = vmatprep.subr.bf16.mxu0 0
        %3597 = vmatpush1.bf16.msra.mxu0 %v3580
        %3598 = vmatprep.subr.bf16.mxu0 0
        %3599 = vmatpush1.bf16.msra.mxu0 %v3579
        %3600 = vmatprep.subr.bf16.mxu0 0
        %3601 = vmatpush1.bf16.msra.mxu0 %v3578
        %3602 = vmatprep.subr.bf16.mxu0 0
        %3603 = vmatpush1.bf16.msra.mxu0 %v3577
        %3604 = vmatprep.subr.bf16.mxu0 0
        %3605 = vmatpush2.bf16.msra.mxu0 0
        %3606 = vmatprep.subr.bf16.mxu0 0
        %3607 = vmatpush2.bf16.msra.mxu0 0
        %3608 = vmatprep.subr.bf16.mxu0 0
        %3609 = vmatpush2.bf16.msra.mxu0 0
        %3610 = vmatprep.subr.bf16.mxu0 0
        %3611 = vmatpush2.bf16.msra.mxu0 0
        %3612 = vmatprep.subr.bf16.mxu0 0
        %3613 = vmatpush2.bf16.msra.mxu0 0
        %3614 = vmatprep.subr.bf16.mxu0 0
        %3615 = vmatpush2.bf16.msra.mxu0 0
        %3616 = vmatprep.subr.bf16.mxu0 0
        %3617 = vmatpush2.bf16.msra.mxu0 0
        %3618 = vmatprep.subr.bf16.mxu0 0
        %3619 = vmatpush2.bf16.msra.mxu0 0
        %3620 = vmatprep.mubr.bf16.mxu0 0
        %3621 = vmatmul.mubr.bf16.gmra.mxu0 %v3586
        %v3622 = vpop.f32.mrf.mxu0
        %v3623 = vadd.f32 %v3559, %v3622
        %v3624 = vpop.f32.mrf.mxu0
        %v3625 = vpop.f32.mrf.mxu0
        %v3626 = vpop.f32.mrf.mxu0
        %3627 = vdwg.mxu0
        %v3628 = vmax.f32 %v3623, 0.0
        %v3629 = vpack.c.bf16 %v3628, %v3628
        %v3630 = vld [vmem:[%s16] sm:$0xf]
        %v3631 = vld [vmem:[%s16 + $0x4] sm:$0xf]
        %v3632 = vld [vmem:[%s16 + $0x8] sm:$0xf]
        %v3633 = vld [vmem:[%s16 + $0xc] sm:$0xf]
        %v3634 = vld [vmem:[%s16 + $0x10] sm:$0xf]
        %v3635 = vld [vmem:[%s16 + $0x14] sm:$0xf]
        %v3636 = vld [vmem:[%s16 + $0x18] sm:$0xf]
        %v3637 = vld [vmem:[%s16 + $0x1c] sm:$0xf]
        %v3638 = vld [vmem:[%s17] sm:$0x1]
        %v3640 = vlaneseq
        %v3641 = vshrl.u32 %v3640, 7
        %v3642 = vsub.s32 0, %v3641
        %v3643 = vrot.slane %v3638, %v3642
        %v3653 = vunpack.c.l.b16 %v3630
        %v3654 = vunpack.c.l.b16 %v3631
        %v3655 = vunpack.c.l.b16 %v3632
        %v3656 = vunpack.c.l.b16 %v3633
        %v3657 = vunpack.c.l.b16 %v3634
        %v3658 = vunpack.c.l.b16 %v3635
        %v3659 = vunpack.c.l.b16 %v3636
        %v3660 = vunpack.c.l.b16 %v3637
        %v3661 = vpack.c.b16 %v3654, %v3653
        %v3662 = vpack.c.b16 %v3656, %v3655
        %v3663 = vpack.c.b16 %v3658, %v3657
        %v3664 = vpack.c.b16 %v3660, %v3659
        %v3670 = vsel %vm673, %v3629, 0
        %3672 = vmatprep.subr.bf16.mxu0 0
        %3673 = vmatpush1.bf16.msra.mxu0 0
        %3674 = vmatprep.subr.bf16.mxu0 0
        %3675 = vmatpush1.bf16.msra.mxu0 0
        %3676 = vmatprep.subr.bf16.mxu0 0
        %3677 = vmatpush1.bf16.msra.mxu0 0
        %3678 = vmatprep.subr.bf16.mxu0 0
        %3679 = vmatpush1.bf16.msra.mxu0 0
        %3680 = vmatprep.subr.bf16.mxu0 0
        %3681 = vmatpush1.bf16.msra.mxu0 %v3664
        %3682 = vmatprep.subr.bf16.mxu0 0
        %3683 = vmatpush1.bf16.msra.mxu0 %v3663
        %3684 = vmatprep.subr.bf16.mxu0 0
        %3685 = vmatpush1.bf16.msra.mxu0 %v3662
        %3686 = vmatprep.subr.bf16.mxu0 0
        %3687 = vmatpush1.bf16.msra.mxu0 %v3661
        %3688 = vmatprep.subr.bf16.mxu0 0
        %3689 = vmatpush2.bf16.msra.mxu0 0
        %3690 = vmatprep.subr.bf16.mxu0 0
        %3691 = vmatpush2.bf16.msra.mxu0 0
        %3692 = vmatprep.subr.bf16.mxu0 0
        %3693 = vmatpush2.bf16.msra.mxu0 0
        %3694 = vmatprep.subr.bf16.mxu0 0
        %3695 = vmatpush2.bf16.msra.mxu0 0
        %3696 = vmatprep.subr.bf16.mxu0 0
        %3697 = vmatpush2.bf16.msra.mxu0 0
        %3698 = vmatprep.subr.bf16.mxu0 0
        %3699 = vmatpush2.bf16.msra.mxu0 0
        %3700 = vmatprep.subr.bf16.mxu0 0
        %3701 = vmatpush2.bf16.msra.mxu0 0
        %3702 = vmatprep.subr.bf16.mxu0 0
        %3703 = vmatpush2.bf16.msra.mxu0 0
        %3704 = vmatprep.mubr.bf16.mxu0 0
        %3705 = vmatmul.mubr.bf16.gmra.mxu0 %v3670
        %v3706 = vpop.f32.mrf.mxu0
        %v3707 = vadd.f32 %v3643, %v3706
        %v3708 = vpop.f32.mrf.mxu0
        %v3709 = vpop.f32.mrf.mxu0
        %v3710 = vpop.f32.mrf.mxu0
        %3711 = vdwg.mxu0
        %3712 = vst [vmem:[%s596] sm:$0xff] %v3707
      $region100: #{forward.1} parent=91 // pred_fallthru
        _
      %p3713 = scmp.lt.s32.totalorder %s33, 1
      %s3714 = scalar_select %p3713, %s33, 1
      %s3715 = smul.addr %s3714, 8
      %s3716 = scalar_lea.vmem %s18, %s3715
      // Predicated region
      $region101: #{forward.1} parent=91 // pred_check
        %p3717 = pneg %p447
      $region102: #{forward.1} parent=91 // pred_check_branch
        %3719 = sbr.rel (%p3717) target = $region104
      $region103: #{forward.1} parent=91 // pred_region
        _
      $region104: #{forward.1} parent=91 // pred_fallthru
        _
    $region92: #{forward.1} parent=5 // pred_fallthru
      _
    %p3720 = scmp.le.s32.totalorder 2, %s24
    // Predicated region
    $region105: #{forward.1} parent=5 // pred_check
      %p3721 = pneg %p3720
    $region106: #{forward.1} parent=5 // pred_check_branch
      %3723 = sbr.rel (%p3721) target = $region108
    $region107: #{forward.1} parent=5 // pred_region
      %s3724 = ssub.s32 %s24, 2
      // Predicated region
      $region109: #{forward.1} parent=107 // pred_check
        %p3725 = pneg %p453
      $region110: #{forward.1} parent=107 // pred_check_branch
        %3727 = sbr.rel (%p3725) target = $region112
      $region111: #{forward.1} parent=107 // pred_region
        %p3728 = scmp.lt.s32.totalorder %s35, 1
        %s3729 = scalar_select %p3728, %s35, 1
        %s3730 = smul.addr %s3729, 8
        %s3731 = scalar_lea.vmem %s18, %s3730
      $region112: #{forward.1} parent=107 // pred_fallthru
        _
    $region108: #{forward.1} parent=5 // pred_fallthru
      _
  $region6: #{forward.1} parent=0 // loop_footer
    %s28 = sadd.s32 1, %s24
  $region7: #{forward.1} parent=0 // loop_footer_branch
    %23 = sbr.rel target = $region3
  $region8: #{forward.1} parent=0 // loop_exit
    _

</llo_original>
